<compile_context>
chip_gen: v6e
topology: v6e:2x2x1
jax: 0.10.0
libtpu: 0.0.40
codegen_flags: <defaults>
</compile_context>

<pallas_src>
import numpy as np
import jax
import jax.numpy as jnp
from jax import lax
from jax.experimental import pallas as pl
from jax.experimental.pallas import tpu as pltpu

# ----------------------------- config ---------------------------------------
SAMPLING_RATE = 16000
BLOCK_SIZE = 16
N_HARMONICS = 16
N_MAG_NOISE = 8
N_MELS = 80
HIDDEN = 256
N_OUT = (BLOCK_SIZE + 1) + N_HARMONICS + N_MAG_NOISE   # harmonic_phase + amps + noise mag
GN_GROUPS = 4
LEAKY_SLOPE = 0.01
EPS = 1e-5
VMEM_LIMIT_BYTES = 32 * 1024 * 1024   # explicit, safe on v5e/v6e/v7x (usage is far below)


def _round_up(x, m):
    return ((x + m - 1) // m) * m


# --------------------------- Pallas kernels ---------------------------------
def _conv3_gn_lrelu_kernel(x_ref, w_ref, b_ref, g_ref, beta_ref, gmat_ref, o_ref):
    """Conv1d(k=3) as 3 full-block tap matmuls (f32-shifted combine) + GroupNorm + LeakyReLU."""
    t = o_ref.shape[1]
    x = x_ref[0]                                                        # (T+2, Cin) bf16
    f0 = jnp.dot(x, w_ref[0], preferred_element_type=jnp.float32)      # (T+2, Cout) f32
    f1 = jnp.dot(x, w_ref[1], preferred_element_type=jnp.float32)
    f2 = jnp.dot(x, w_ref[2], preferred_element_type=jnp.float32)
    acc = f0[0:t, :] + f1[1:t + 1, :] + f2[2:t + 2, :] + b_ref[...]    # (T, Cout)
    c = acc.shape[-1]
    inv_n = 1.0 / float(t * (c // GN_GROUPS))
    # group stats: one sublane reduction + tiny (1,C)@(C,C) matmuls against the
    # block-diagonal group indicator (lane-dense, no per-group loop / concats).
    s_row = jnp.sum(acc, axis=0, keepdims=True)                        # (1, C)
    mu = jnp.dot(s_row, gmat_ref[...], preferred_element_type=jnp.float32) * inv_n
    d = acc - mu
    sq_row = jnp.sum(d * d, axis=0, keepdims=True)                     # (1, C)
    var = jnp.dot(sq_row, gmat_ref[...], preferred_element_type=jnp.float32) * inv_n
    y = d * lax.rsqrt(var + EPS) * g_ref[...] + beta_ref[...]
    y = jnp.where(y >= 0.0, y, LEAKY_SLOPE * y)
    o_ref[0] = y.astype(o_ref.dtype)


def _conv3_ln_dense_kernel(x_ref, w_ref, b_ref, g_ref, beta_ref, dw_ref, db_ref, o_ref):
    """Conv1d(k=3) + bias + LayerNorm + fused dense_out head (f32 head for accuracy)."""
    t = o_ref.shape[1]
    x = x_ref[0]                                                        # (T+2, Cin) bf16
    f0 = jnp.dot(x, w_ref[0], preferred_element_type=jnp.float32)
    f1 = jnp.dot(x, w_ref[1], preferred_element_type=jnp.float32)
    f2 = jnp.dot(x, w_ref[2], preferred_element_type=jnp.float32)
    acc = f0[0:t, :] + f1[1:t + 1, :] + f2[2:t + 2, :] + b_ref[...]    # (T, Cout)
    mu = jnp.mean(acc, axis=-1, keepdims=True)
    d = acc - mu
    var = jnp.mean(d * d, axis=-1, keepdims=True)
    y = d * lax.rsqrt(var + EPS) * g_ref[...] + beta_ref[...]          # (T, Cout) f32
    o_ref[0] = (jnp.dot(y, dw_ref[...], preferred_element_type=jnp.float32)
                + db_ref[...]).astype(o_ref.dtype)                     # (T, N_OUT_P)


def _sinusoid_kernel(phase_ref, amp_ref, e_ref, o_ref):
    """sum_h sin(h*phase) * amp_h, sublane-dense (rows,128) layout.

    amp_ref carries per-(harmonic, lane-row) frame windows; one tiny MXU matmul
    against a static per-row interpolation stencil gives per-sample amps already
    laid out (H*rows, 128)."""
    phase = phase_ref[0]                                                # (rows, 128) f32
    rows = phase.shape[0]
    amp = jnp.dot(amp_ref[0, 0], e_ref[...],
                  preferred_element_type=jnp.float32)                  # (H*rows, 128)
    nh = amp.shape[0] // rows
    s1 = jnp.sin(phase)                                                 # sin(1*p)
    c2 = 2.0 * jnp.cos(phase)                                           # 2*cos(p)
    acc = s1 * amp[0:rows, :]
    s_prev = jnp.zeros_like(s1)                                         # sin(0*p)
    s_cur = s1
    for h in range(1, nh):                                              # Chebyshev recurrence
        s_next = c2 * s_cur - s_prev                                    # sin((h+1)p)
        acc = acc + s_next * amp[h * rows:(h + 1) * rows, :]
        s_prev, s_cur = s_cur, s_next
    o_ref[0] = acc.astype(o_ref.dtype)


# --------------------------- Pallas wrappers ---------------------------------
def conv_gn_lrelu(x, w, b, gamma, beta):
    """Conv1d(3, pad=1) + GroupNorm(4) + LeakyReLU.  x: (B,T,Cin), w: (Cout,Cin,3)."""
    B, T, Cin = x.shape
    Cout = w.shape[0]
    cin_p = _round_up(Cin, 128)                       # lane-dense streamed operand
    xp = jnp.pad(x.astype(jnp.bfloat16), ((0, 0), (1, 1), (0, cin_p - Cin)))
    wk = jnp.pad(jnp.transpose(w, (2, 1, 0)).astype(jnp.bfloat16),
                 ((0, 0), (0, cin_p - Cin), (0, 0)))                    # (3, Cin_p, Cout)
    gi = np.arange(Cout) // (Cout // GN_GROUPS)
    gmat = jnp.asarray((gi[:, None] == gi[None, :]).astype(np.float32))  # (Cout, Cout)
    return pl.pallas_call(
        _conv3_gn_lrelu_kernel,
        out_shape=jax.ShapeDtypeStruct((B, T, Cout), jnp.bfloat16),
        grid=(B,),
        in_specs=[
            pl.BlockSpec((1, T + 2, cin_p), lambda i: (i, 0, 0)),
            pl.BlockSpec((3, cin_p, Cout), lambda i: (0, 0, 0)),
            pl.BlockSpec((1, Cout), lambda i: (0, 0)),
            pl.BlockSpec((1, Cout), lambda i: (0, 0)),
            pl.BlockSpec((1, Cout), lambda i: (0, 0)),
            pl.BlockSpec((Cout, Cout), lambda i: (0, 0)),
        ],
        out_specs=pl.BlockSpec((1, T, Cout), lambda i: (i, 0, 0)),
        compiler_params=pltpu.CompilerParams(
            dimension_semantics=("parallel",), vmem_limit_bytes=VMEM_LIMIT_BYTES),
    )(xp, wk,
      b.reshape(1, Cout).astype(jnp.float32),
      gamma.reshape(1, Cout).astype(jnp.float32),
      beta.reshape(1, Cout).astype(jnp.float32),
      gmat)


def conv_ln_dense(x, w, b, gamma, beta, dense_w, dense_b):
    """Conv1d(3, pad=1) + LayerNorm + dense head fused.  Returns (B, T, n_out) f32."""
    B, T, Cin = x.shape
    Cout = w.shape[0]
    n_out = dense_w.shape[0]
    n_out_p = _round_up(n_out, 128)                   # lane-dense output stores
    cin_p = _round_up(Cin, 128)
    xp = jnp.pad(x.astype(jnp.bfloat16), ((0, 0), (1, 1), (0, cin_p - Cin)))
    wk = jnp.pad(jnp.transpose(w, (2, 1, 0)).astype(jnp.bfloat16),
                 ((0, 0), (0, cin_p - Cin), (0, 0)))                    # (3, Cin_p, Cout)
    dw = jnp.pad(dense_w.T.astype(jnp.float32), ((0, 0), (0, n_out_p - n_out)))
    db = jnp.pad(dense_b.astype(jnp.float32), (0, n_out_p - n_out)).reshape(1, n_out_p)
    out = pl.pallas_call(
        _conv3_ln_dense_kernel,
        out_shape=jax.ShapeDtypeStruct((B, T, n_out_p), jnp.float32),
        grid=(B,),
        in_specs=[
            pl.BlockSpec((1, T + 2, cin_p), lambda i: (i, 0, 0)),
            pl.BlockSpec((3, cin_p, Cout), lambda i: (0, 0, 0)),
            pl.BlockSpec((1, Cout), lambda i: (0, 0)),
            pl.BlockSpec((1, Cout), lambda i: (0, 0)),
            pl.BlockSpec((1, Cout), lambda i: (0, 0)),
            pl.BlockSpec((Cout, n_out_p), lambda i: (0, 0)),
            pl.BlockSpec((1, n_out_p), lambda i: (0, 0)),
        ],
        out_specs=pl.BlockSpec((1, T, n_out_p), lambda i: (i, 0, 0)),
        compiler_params=pltpu.CompilerParams(
            dimension_semantics=("parallel",), vmem_limit_bytes=VMEM_LIMIT_BYTES),
    )(xp, wk,
      b.reshape(1, Cout).astype(jnp.float32),
      gamma.reshape(1, Cout).astype(jnp.float32),
      beta.reshape(1, Cout).astype(jnp.float32),
      dw, db)
    return out[:, :, :n_out]


def sinusoid_sum(phase, amp_frames, block_size, tile_n=4096):
    """phase: (B,N) radians, amp_frames: (B,T,H) -> (B,N) harmonic stack.

    Fuses upsample(amp_frames) into the kernel with a per-lane-row stencil matmul
    (no (B,N,H) materialisation, no O(tile^2) interpolation matrix).  Blocks are
    (tn//128, 128) so the VALU/EUP recurrence runs at full sublane occupancy and
    the grid (B, n_tiles) pipelines / shards across TensorCores."""
    B, N = phase.shape
    T, H = amp_frames.shape[1], amp_frames.shape[2]
    bs = block_size
    assert 128 % bs == 0, "block_size must divide 128"
    fpr = 128 // bs                                   # frames per 128-lane row
    tile_n = max(int(tile_n), 1024)
    tn = 128
    while tn * 2 <= tile_n and tn < N:
        tn *= 2
    nt = pl.cdiv(N, tn)
    n_p = nt * tn
    rows = tn // 128
    n_rows_total = nt * rows
    t_p = n_p // bs                                   # frames covered after padding

    # frame amps with duplicated last frame (matches torch upsample), padded to t_p+1
    ampf = jnp.concatenate([amp_frames, amp_frames[:, -1:, :]], axis=1)   # (B, T+1, H)
    if t_p + 1 > T + 1:
        ampf = jnp.pad(ampf, ((0, 0), (0, t_p - T), (0, 0)))              # (B, t_p+1, H)

    # overlapping windows of (fpr+1) frames per 128-lane row (stride fpr)
    k_int = fpr + 1
    k_pad = _round_up(k_int, 16)
    win = jnp.stack([ampf[:, k::fpr, :][:, :n_rows_total, :] for k in range(k_int)],
                    axis=2)                                               # (B, R, k_int, H)
    win = jnp.pad(win, ((0, 0), (0, 0), (0, k_pad - k_int), (0, 0)))
    amp_a = jnp.transpose(win.reshape(B, nt, rows, k_pad, H), (0, 1, 4, 2, 3))
    amp_a = amp_a.reshape(B, nt, H * rows, k_pad).astype(jnp.bfloat16)

    # static per-row interpolation stencil (k_pad, 128)
    l = np.arange(128)
    fi = l // bs
    wgt = (l % bs).astype(np.float32) / bs
    e_np = np.zeros((k_pad, 128), np.float32)
    e_np[fi, l] = 1.0 - wgt
    e_np[fi + 1, l] = wgt
    e = jnp.asarray(e_np, jnp.bfloat16)

    phase_p = jnp.pad(phase.astype(jnp.float32), ((0, 0), (0, n_p - N)))
    phase_p = phase_p.reshape(B, n_rows_total, 128)

    out = pl.pallas_call(
        _sinusoid_kernel,
        out_shape=jax.ShapeDtypeStruct((B, n_rows_total, 128), jnp.float32),
        grid=(B, nt),
        in_specs=[
            pl.BlockSpec((1, rows, 128), lambda b, j: (b, j, 0)),
            pl.BlockSpec((1, 1, H * rows, k_pad), lambda b, j: (b, j, 0, 0)),
            pl.BlockSpec((k_pad, 128), lambda b, j: (0, 0)),
        ],
        out_specs=pl.BlockSpec((1, rows, 128), lambda b, j: (b, j, 0)),
        compiler_params=pltpu.CompilerParams(
            dimension_semantics=("parallel", "parallel"),
            vmem_limit_bytes=VMEM_LIMIT_BYTES),
    )(phase_p, amp_a, e)
    return out.reshape(B, n_p)[:, :N]


# ----------------------------- JAX glue -------------------------------------
def hann_window(M):
    # torch.hann_window default (periodic=True)
    n = jnp.arange(M, dtype=jnp.float32)
    return 0.5 - 0.5 * jnp.cos(2.0 * np.pi * n / M)


def upsample(signal, factor):
    """B x T x C -> B x (T*factor) x C; linear (torch-equivalent)."""
    B, T, C = signal.shape
    sig = jnp.concatenate([signal, signal[:, -1:, :]], axis=1)      # (B,T+1,C)
    a0 = sig[:, :T, None, :]
    a1 = sig[:, 1:T + 1, None, :]
    w = (jnp.arange(factor, dtype=jnp.float32) / factor)[None, None, :, None]
    out = a0 * (1.0 - w) + a1 * w
    return out.reshape(B, T * factor, C)


def remove_above_fmax(amplitudes, pitch, fmax, level_start=1):
    n_harm = amplitudes.shape[-1]
    levels = jnp.arange(level_start, n_harm + level_start, dtype=pitch.dtype)
    pitches = pitch * levels
    aa = (pitches < fmax).astype(amplitudes.dtype) + 1e-7
    return amplitudes * aa


def overlap_add(frames, hop):
    """frames: (B, n, L) -> OLA signal of length (n-1)*hop + ceil(L/hop)*hop."""
    B, n, L = frames.shape
    k = -(-L // hop)
    l_p = k * hop
    frames = jnp.pad(frames, ((0, 0), (0, 0), (0, l_p - L)))
    out_len = (n - 1) * hop + l_p
    total = jnp.zeros((B, out_len), frames.dtype)
    for q in range(k):                                              # k is tiny (2 here)
        piece = frames[:, :, q * hop:(q + 1) * hop].reshape(B, n * hop)
        total = total + jnp.pad(piece, ((0, 0), (q * hop, (k - 1 - q) * hop)))
    return total


def frequency_filter(audio, filt_complex):
    """Frame-wise FIR filtering of `audio` (B,N) with windowed IRs.
    # TODO(synk): exact pc_ddsp core.fft_convolve padding/framing convention is
    # approximated with a standard DDSP-style windowed-IR overlap-add filter."""
    ir = jnp.fft.irfft(filt_complex, axis=-1)                       # (B,T,ir_size)
    ir_size = ir.shape[-1]
    ir = jnp.fft.fftshift(ir, axes=-1) * hann_window(ir_size)
    B, N = audio.shape
    T = ir.shape[1]
    hop = N // T
    frames = audio.reshape(B, T, hop)
    fft_size = int(2 ** int(np.ceil(np.log2(hop + ir_size - 1))))
    y = jnp.fft.irfft(
        jnp.fft.rfft(frames, fft_size, axis=-1) * jnp.fft.rfft(ir, fft_size, axis=-1),
        fft_size, axis=-1)                                          # (B,T,fft_size)
    acc = overlap_add(y, hop)
    delay = ir_size // 2
    need = delay + N
    if acc.shape[1] < need:
        acc = jnp.pad(acc, ((0, 0), (0, need - acc.shape[1])))
    return acc[:, delay:delay + N]


def mel2ctrl(params, mel, phase_frames):
    # TODO(synk): the PCmer transformer decoder inside Mel2Control (and its phase
    # conditioning) is omitted; conv-stack -> norms -> weight-normed dense head is kept.
    x = conv_gn_lrelu(mel, params["conv1_w"], params["conv1_b"],
                      params["gn_gamma"], params["gn_beta"])
    e = conv_ln_dense(x, params["conv2_w"], params["conv2_b"],
                      params["ln_gamma"], params["ln_beta"],
                      params["dense_w"], params["dense_b"])         # (B, T, N_OUT)
    nh = BLOCK_SIZE + 1
    return {
        "harmonic_phase": e[:, :, :nh],
        "amplitudes": e[:, :, nh:nh + N_HARMONICS],
        "noise_magnitude": e[:, :, nh + N_HARMONICS:],
    }


def _wrapped_phase(f0, B, T, bs):
    """Block-wise wrapped phase accumulation (bounds f32 error vs torch's f64 cumsum).
    Equivalent to cumsum(f0/sr) mod 1 (phase only matters mod 1)."""
    d = f0[:, :, 0] / SAMPLING_RATE                                 # (B, N)
    dfr = d.reshape(B, T, bs)
    within = jnp.cumsum(dfr, axis=-1)                               # inclusive, per frame
    frame_sum = within[:, :, -1]                                    # (B, T)

    def _step(c, s):
        nxt = c + s
        nxt = nxt - jnp.round(nxt)
        return nxt, c

    _, starts = lax.scan(_step, jnp.zeros((B,), d.dtype),
                         jnp.transpose(frame_sum, (1, 0)))
    starts = jnp.transpose(starts, (1, 0))                          # (B, T), wrapped
    x = starts[:, :, None] + within
    x = x - jnp.round(x)
    return x.reshape(B, T * bs, 1)


def sins_forward(params, mel_frames, f0_frames, noise_key, max_upsample_dim=32):
    B, T, _ = f0_frames.shape
    bs = BLOCK_SIZE
    N = T * bs

    f0 = upsample(f0_frames, bs)                                    # (B,N,1)
    x = _wrapped_phase(f0, B, T, bs)                                # (B,N,1) in [-0.5,0.5]
    phase = 2.0 * np.pi * x
    phase_frames = phase[:, ::bs, :]                                # (B,T,1)

    ctrls = mel2ctrl(params, mel_frames, phase_frames)

    src_allpass = jnp.exp(1j * (np.pi * ctrls["harmonic_phase"]).astype(jnp.complex64))
    src_allpass = jnp.concatenate([src_allpass, src_allpass[:, -1:, :]], axis=1)

    amplitudes_frames = jnp.exp(ctrls["amplitudes"]) / 128.0
    noise_param = jnp.exp(ctrls["noise_magnitude"]) / 128.0
    amplitudes_frames = remove_above_fmax(amplitudes_frames, f0_frames,
                                          SAMPLING_RATE / 2, level_start=1)

    # ---- sinusoid synthesis (Pallas): fused upsample + harmonic stack;
    #      n_harmonics <= max_upsample_dim, so one pass == torch chunked loop ----
    sinusoids = sinusoid_sum(phase[:, :, 0], amplitudes_frames, bs)  # (B,N)

    # ---- STFT-domain all-pass filtering of the harmonic part (JAX FFT glue) ----
    window = jnp.sqrt(hann_window(2 * bs))
    padded = jnp.pad(sinusoids, ((0, 0), (bs, bs)))                  # (B,(T+2)*bs)
    p = padded.reshape(B, T + 2, bs)
    harmonic_frames = jnp.concatenate([p[:, :-1, :], p[:, 1:, :]], axis=-1) * window
    hfft = jnp.fft.rfft(harmonic_frames, 2 * bs, axis=-1) * src_allpass
    frames_out = jnp.fft.irfft(hfft, 2 * bs, axis=-1) * window       # (B,T+1,2bs)
    acc = overlap_add(frames_out, bs)                                # torch Fold == OLA
    harmonic = acc[:, bs:-bs]                                        # (B,N)

    # ---- filtered noise branch ----
    # TODO(synk): torch.rand_like RNG stream cannot be bit-matched; jax.random used.
    noise = jax.random.uniform(noise_key, harmonic.shape, dtype=harmonic.dtype) * 2.0 - 1.0
    noise = frequency_filter(noise, noise_param.astype(jnp.complex64))

    signal = harmonic + noise
    return signal, phase, (harmonic, noise)


# --------------------------- deterministic params ---------------------------
def init_params(key):
    ks = jax.random.split(key, 3)
    s = 0.05
    return {
        "conv1_w": s * jax.random.normal(ks[0], (HIDDEN, N_MELS, 3), jnp.float32),
        "conv1_b": jnp.zeros((HIDDEN,), jnp.float32),
        "gn_gamma": jnp.ones((HIDDEN,), jnp.float32),
        "gn_beta": jnp.zeros((HIDDEN,), jnp.float32),
        "conv2_w": s * jax.random.normal(ks[1], (HIDDEN, HIDDEN, 3), jnp.float32),
        "conv2_b": jnp.zeros((HIDDEN,), jnp.float32),
        "ln_gamma": jnp.ones((HIDDEN,), jnp.float32),
        "ln_beta": jnp.zeros((HIDDEN,), jnp.float32),
        # TODO(synk): weight_norm g/v decomposition must be folded when loading real ckpts.
        "dense_w": s * jax.random.normal(ks[2], (N_OUT, HIDDEN), jnp.float32),
        "dense_b": jnp.zeros((N_OUT,), jnp.float32),
    }


# -------------------------------- main ---------------------------------------
if __name__ == "__main__":
    key = jax.random.PRNGKey(0)
    kmel, kf0, knoise, kparams = jax.random.split(key, 4)

    B, T = 2, 8                                   # batch=2, n_frames=8 -> 128 samples
    mel_frames = jax.random.normal(kmel, (B, T, N_MELS), jnp.float32)
    f0_frames = 100.0 + 400.0 * jax.random.uniform(kf0, (B, T, 1), jnp.float32)

    params = init_params(kparams)

    signal, phase, (harmonic, noise) = jax.jit(sins_forward)(params, mel_frames,
                                                             f0_frames, knoise)
    jax.block_until_ready((signal, phase, harmonic, noise))

    assert signal.shape == (B, T * BLOCK_SIZE)
    assert phase.shape == (B, T * BLOCK_SIZE, 1)
    assert harmonic.shape == (B, T * BLOCK_SIZE)
    assert noise.shape == (B, T * BLOCK_SIZE)
    assert bool(jnp.all(jnp.isfinite(signal)))
    print("KERNEL_OK")
</pallas_src>

<mosaic_0001>
module attributes {stable_mosaic.version = 11 : i64} {
  func.func @_conv3_gn_lrelu_kernel(%arg0: i32, %arg1: memref<1x10x128xbf16, #tpu.memory_space<vmem>>, %arg2: memref<3x128x256xbf16, #tpu.memory_space<vmem>>, %arg3: memref<1x256xf32, #tpu.memory_space<vmem>>, %arg4: memref<1x256xf32, #tpu.memory_space<vmem>>, %arg5: memref<1x256xf32, #tpu.memory_space<vmem>>, %arg6: memref<256x256xf32, #tpu.memory_space<vmem>>, %arg7: memref<1x8x256xbf16, #tpu.memory_space<vmem>>) attributes {dimension_semantics = [#tpu.dimension_semantics<parallel>], iteration_bounds = array<i64: 2>, scalar_prefetch = 0 : i64, scratch_operands = 0 : i64, tpu.core_type = #tpu.core_type<tc>, window_params = [{transform_indices = @transform_0, window_bounds = array<i64: 1, 10, 128>}, {pipeline_mode = #tpu.pipeline_mode<synchronous>, transform_indices = @transform_1, window_bounds = array<i64: 3, 128, 256>}, {pipeline_mode = #tpu.pipeline_mode<synchronous>, transform_indices = @transform_2, window_bounds = array<i64: 1, 256>}, {pipeline_mode = #tpu.pipeline_mode<synchronous>, transform_indices = @transform_3, window_bounds = array<i64: 1, 256>}, {pipeline_mode = #tpu.pipeline_mode<synchronous>, transform_indices = @transform_4, window_bounds = array<i64: 1, 256>}, {pipeline_mode = #tpu.pipeline_mode<synchronous>, transform_indices = @transform_5, window_bounds = array<i64: 256, 256>}, {transform_indices = @transform_6, window_bounds = array<i64: 1, 8, 256>}]} {
    %c0 = arith.constant 0 : index
    %c0_0 = arith.constant 0 : index
    %c0_1 = arith.constant 0 : index
    %0 = vector.load %arg1[%c0, %c0_0, %c0_1] : memref<1x10x128xbf16, #tpu.memory_space<vmem>>, vector<1x10x128xbf16>
    %1 = vector.shape_cast %0 : vector<1x10x128xbf16> to vector<10x128xbf16>
    %c0_2 = arith.constant 0 : index
    %c0_3 = arith.constant 0 : index
    %c0_4 = arith.constant 0 : index
    %2 = vector.load %arg2[%c0_2, %c0_3, %c0_4] : memref<3x128x256xbf16, #tpu.memory_space<vmem>>, vector<1x128x256xbf16>
    %3 = vector.shape_cast %2 : vector<1x128x256xbf16> to vector<128x256xbf16>
    %cst = arith.constant dense<0.000000e+00> : vector<10x256xf32>
    %4 = tpu.matmul %1, %3, %cst {dimension_numbers = #tpu.dot_dimension_numbers<[1], [0], [0], [1], [0, 0, 1, 1], [], []>} : vector<10x128xbf16>, vector<128x256xbf16>, vector<10x256xf32> -> vector<10x256xf32>
    %c1 = arith.constant 1 : index
    %c0_5 = arith.constant 0 : index
    %c0_6 = arith.constant 0 : index
    %5 = vector.load %arg2[%c1, %c0_5, %c0_6] : memref<3x128x256xbf16, #tpu.memory_space<vmem>>, vector<1x128x256xbf16>
    %6 = vector.shape_cast %5 : vector<1x128x256xbf16> to vector<128x256xbf16>
    %cst_7 = arith.constant dense<0.000000e+00> : vector<10x256xf32>
    %7 = tpu.matmul %1, %6, %cst_7 {dimension_numbers = #tpu.dot_dimension_numbers<[1], [0], [0], [1], [0, 0, 1, 1], [], []>} : vector<10x128xbf16>, vector<128x256xbf16>, vector<10x256xf32> -> vector<10x256xf32>
    %c2 = arith.constant 2 : index
    %c0_8 = arith.constant 0 : index
    %c0_9 = arith.constant 0 : index
    %8 = vector.load %arg2[%c2, %c0_8, %c0_9] : memref<3x128x256xbf16, #tpu.memory_space<vmem>>, vector<1x128x256xbf16>
    %9 = vector.shape_cast %8 : vector<1x128x256xbf16> to vector<128x256xbf16>
    %cst_10 = arith.constant dense<0.000000e+00> : vector<10x256xf32>
    %10 = tpu.matmul %1, %9, %cst_10 {dimension_numbers = #tpu.dot_dimension_numbers<[1], [0], [0], [1], [0, 0, 1, 1], [], []>} : vector<10x128xbf16>, vector<128x256xbf16>, vector<10x256xf32> -> vector<10x256xf32>
    %11 = vector.extract_strided_slice %4 {offsets = [0, 0], sizes = [8, 256], strides = [1, 1]} : vector<10x256xf32> to vector<8x256xf32>
    %12 = vector.extract_strided_slice %7 {offsets = [1, 0], sizes = [8, 256], strides = [1, 1]} : vector<10x256xf32> to vector<8x256xf32>
    %13 = arith.addf %11, %12 : vector<8x256xf32>
    %14 = vector.extract_strided_slice %10 {offsets = [2, 0], sizes = [8, 256], strides = [1, 1]} : vector<10x256xf32> to vector<8x256xf32>
    %15 = arith.addf %13, %14 : vector<8x256xf32>
    %c0_11 = arith.constant 0 : index
    %c0_12 = arith.constant 0 : index
    %16 = vector.load %arg3[%c0_11, %c0_12] : memref<1x256xf32, #tpu.memory_space<vmem>>, vector<1x256xf32>
    %17 = vector.broadcast %16 : vector<1x256xf32> to vector<8x256xf32>
    %18 = arith.addf %15, %17 : vector<8x256xf32>
    %cst_13 = arith.constant dense<0.000000e+00> : vector<256xf32>
    %19 = vector.multi_reduction <add>, %18, %cst_13 [0] : vector<8x256xf32> to vector<256xf32>
    %20 = vector.shape_cast %19 : vector<256xf32> to vector<1x256xf32>
    %c0_14 = arith.constant 0 : index
    %c0_15 = arith.constant 0 : index
    %21 = vector.load %arg6[%c0_14, %c0_15] : memref<256x256xf32, #tpu.memory_space<vmem>>, vector<256x256xf32>
    %cst_16 = arith.constant dense<0.000000e+00> : vector<1x256xf32>
    %22 = tpu.matmul %20, %21, %cst_16 {dimension_numbers = #tpu.dot_dimension_numbers<[1], [0], [0], [1], [0, 0, 1, 1], [], []>} : vector<1x256xf32>, vector<256x256xf32>, vector<1x256xf32> -> vector<1x256xf32>
    %cst_17 = arith.constant 0.001953125 : f32
    %23 = vector.broadcast %cst_17 : f32 to vector<1x256xf32>
    %24 = arith.mulf %22, %23 : vector<1x256xf32>
    %25 = vector.broadcast %24 : vector<1x256xf32> to vector<8x256xf32>
    %26 = arith.subf %18, %25 : vector<8x256xf32>
    %27 = arith.mulf %26, %26 : vector<8x256xf32>
    %cst_18 = arith.constant dense<0.000000e+00> : vector<256xf32>
    %28 = vector.multi_reduction <add>, %27, %cst_18 [0] : vector<8x256xf32> to vector<256xf32>
    %29 = vector.shape_cast %28 : vector<256xf32> to vector<1x256xf32>
    %c0_19 = arith.constant 0 : index
    %c0_20 = arith.constant 0 : index
    %30 = vector.load %arg6[%c0_19, %c0_20] : memref<256x256xf32, #tpu.memory_space<vmem>>, vector<256x256xf32>
    %cst_21 = arith.constant dense<0.000000e+00> : vector<1x256xf32>
    %31 = tpu.matmul %29, %30, %cst_21 {dimension_numbers = #tpu.dot_dimension_numbers<[1], [0], [0], [1], [0, 0, 1, 1], [], []>} : vector<1x256xf32>, vector<256x256xf32>, vector<1x256xf32> -> vector<1x256xf32>
    %cst_22 = arith.constant 0.001953125 : f32
    %32 = vector.broadcast %cst_22 : f32 to vector<1x256xf32>
    %33 = arith.mulf %31, %32 : vector<1x256xf32>
    %cst_23 = arith.constant 9.99999974E-6 : f32
    %34 = vector.broadcast %cst_23 : f32 to vector<1x256xf32>
    %35 = arith.addf %33, %34 : vector<1x256xf32>
    %36 = math.rsqrt %35 : vector<1x256xf32>
    %37 = vector.broadcast %36 : vector<1x256xf32> to vector<8x256xf32>
    %38 = arith.mulf %26, %37 : vector<8x256xf32>
    %c0_24 = arith.constant 0 : index
    %c0_25 = arith.constant 0 : index
    %39 = vector.load %arg4[%c0_24, %c0_25] : memref<1x256xf32, #tpu.memory_space<vmem>>, vector<1x256xf32>
    %40 = vector.broadcast %39 : vector<1x256xf32> to vector<8x256xf32>
    %41 = arith.mulf %38, %40 : vector<8x256xf32>
    %c0_26 = arith.constant 0 : index
    %c0_27 = arith.constant 0 : index
    %42 = vector.load %arg5[%c0_26, %c0_27] : memref<1x256xf32, #tpu.memory_space<vmem>>, vector<1x256xf32>
    %43 = vector.broadcast %42 : vector<1x256xf32> to vector<8x256xf32>
    %44 = arith.addf %41, %43 : vector<8x256xf32>
    %cst_28 = arith.constant 0.000000e+00 : f32
    %45 = vector.broadcast %cst_28 : f32 to vector<8x256xf32>
    %46 = arith.cmpf oge, %44, %45 : vector<8x256xf32>
    %cst_29 = arith.constant 0.00999999977 : f32
    %47 = vector.broadcast %cst_29 : f32 to vector<8x256xf32>
    %48 = arith.mulf %47, %44 : vector<8x256xf32>
    %49 = arith.select %46, %44, %48 : vector<8x256xi1>, vector<8x256xf32>
    %50 = arith.truncf %49 : vector<8x256xf32> to vector<8x256xbf16>
    %c0_30 = arith.constant 0 : index
    %c0_31 = arith.constant 0 : index
    %c0_32 = arith.constant 0 : index
    %51 = vector.load %arg7[%c0_30, %c0_31, %c0_32] : memref<1x8x256xbf16, #tpu.memory_space<vmem>>, vector<1x8x256xbf16>
    %52 = vector.shape_cast %51 : vector<1x8x256xbf16> to vector<8x256xbf16>
    %53 = vector.shape_cast %50 : vector<8x256xbf16> to vector<1x8x256xbf16>
    tpu.vector_store %arg7[%c0_30, %c0_31, %c0_32], %53 {strides = array<i32>} : memref<1x8x256xbf16, #tpu.memory_space<vmem>>, vector<1x8x256xbf16>,
    return
  }
  func.func @transform_0(%arg0: i32) -> (i32, i32, i32) {
    %c0_i32 = arith.constant 0 : i32
    %c0_i32_0 = arith.constant 0 : i32
    %c0_i32_1 = arith.constant 0 : i32
    return %arg0, %c0_i32, %c0_i32_0 : i32, i32, i32
  }
  func.func @transform_1(%arg0: i32) -> (i32, i32, i32) {
    %c0_i32 = arith.constant 0 : i32
    %c0_i32_0 = arith.constant 0 : i32
    %c0_i32_1 = arith.constant 0 : i32
    %c0_i32_2 = arith.constant 0 : i32
    return %c0_i32, %c0_i32_0, %c0_i32_1 : i32, i32, i32
  }
  func.func @transform_2(%arg0: i32) -> (i32, i32) {
    %c0_i32 = arith.constant 0 : i32
    %c0_i32_0 = arith.constant 0 : i32
    %c0_i32_1 = arith.constant 0 : i32
    return %c0_i32, %c0_i32_0 : i32, i32
  }
  func.func @transform_3(%arg0: i32) -> (i32, i32) {
    %c0_i32 = arith.constant 0 : i32
    %c0_i32_0 = arith.constant 0 : i32
    %c0_i32_1 = arith.constant 0 : i32
    return %c0_i32, %c0_i32_0 : i32, i32
  }
  func.func @transform_4(%arg0: i32) -> (i32, i32) {
    %c0_i32 = arith.constant 0 : i32
    %c0_i32_0 = arith.constant 0 : i32
    %c0_i32_1 = arith.constant 0 : i32
    return %c0_i32, %c0_i32_0 : i32, i32
  }
  func.func @transform_5(%arg0: i32) -> (i32, i32) {
    %c0_i32 = arith.constant 0 : i32
    %c0_i32_0 = arith.constant 0 : i32
    %c0_i32_1 = arith.constant 0 : i32
    return %c0_i32, %c0_i32_0 : i32, i32
  }
  func.func @transform_6(%arg0: i32) -> (i32, i32, i32) {
    %c0_i32 = arith.constant 0 : i32
    %c0_i32_0 = arith.constant 0 : i32
    %c0_i32_1 = arith.constant 0 : i32
    return %arg0, %c0_i32, %c0_i32_0 : i32, i32, i32
  }
}

module attributes {stable_mosaic.version = 11 : i64} {
  func.func @_conv3_ln_dense_kernel(%arg0: i32, %arg1: memref<1x10x256xbf16, #tpu.memory_space<vmem>>, %arg2: memref<3x256x256xbf16, #tpu.memory_space<vmem>>, %arg3: memref<1x256xf32, #tpu.memory_space<vmem>>, %arg4: memref<1x256xf32, #tpu.memory_space<vmem>>, %arg5: memref<1x256xf32, #tpu.memory_space<vmem>>, %arg6: memref<256x128xf32, #tpu.memory_space<vmem>>, %arg7: memref<1x128xf32, #tpu.memory_space<vmem>>, %arg8: memref<1x8x128xf32, #tpu.memory_space<vmem>>) attributes {dimension_semantics = [#tpu.dimension_semantics<parallel>], iteration_bounds = array<i64: 2>, scalar_prefetch = 0 : i64, scratch_operands = 0 : i64, tpu.core_type = #tpu.core_type<tc>, window_params = [{transform_indices = @transform_0, window_bounds = array<i64: 1, 10, 256>}, {pipeline_mode = #tpu.pipeline_mode<synchronous>, transform_indices = @transform_1, window_bounds = array<i64: 3, 256, 256>}, {pipeline_mode = #tpu.pipeline_mode<synchronous>, transform_indices = @transform_2, window_bounds = array<i64: 1, 256>}, {pipeline_mode = #tpu.pipeline_mode<synchronous>, transform_indices = @transform_3, window_bounds = array<i64: 1, 256>}, {pipeline_mode = #tpu.pipeline_mode<synchronous>, transform_indices = @transform_4, window_bounds = array<i64: 1, 256>}, {pipeline_mode = #tpu.pipeline_mode<synchronous>, transform_indices = @transform_5, window_bounds = array<i64: 256, 128>}, {pipeline_mode = #tpu.pipeline_mode<synchronous>, transform_indices = @transform_6, window_bounds = array<i64: 1, 128>}, {transform_indices = @transform_7, window_bounds = array<i64: 1, 8, 128>}]} {
    %c0 = arith.constant 0 : index
    %c0_0 = arith.constant 0 : index
    %c0_1 = arith.constant 0 : index
    %0 = vector.load %arg1[%c0, %c0_0, %c0_1] : memref<1x10x256xbf16, #tpu.memory_space<vmem>>, vector<1x10x256xbf16>
    %1 = vector.shape_cast %0 : vector<1x10x256xbf16> to vector<10x256xbf16>
    %c0_2 = arith.constant 0 : index
    %c0_3 = arith.constant 0 : index
    %c0_4 = arith.constant 0 : index
    %2 = vector.load %arg2[%c0_2, %c0_3, %c0_4] : memref<3x256x256xbf16, #tpu.memory_space<vmem>>, vector<1x256x256xbf16>
    %3 = vector.shape_cast %2 : vector<1x256x256xbf16> to vector<256x256xbf16>
    %cst = arith.constant dense<0.000000e+00> : vector<10x256xf32>
    %4 = tpu.matmul %1, %3, %cst {dimension_numbers = #tpu.dot_dimension_numbers<[1], [0], [0], [1], [0, 0, 1, 1], [], []>} : vector<10x256xbf16>, vector<256x256xbf16>, vector<10x256xf32> -> vector<10x256xf32>
    %c1 = arith.constant 1 : index
    %c0_5 = arith.constant 0 : index
    %c0_6 = arith.constant 0 : index
    %5 = vector.load %arg2[%c1, %c0_5, %c0_6] : memref<3x256x256xbf16, #tpu.memory_space<vmem>>, vector<1x256x256xbf16>
    %6 = vector.shape_cast %5 : vector<1x256x256xbf16> to vector<256x256xbf16>
    %cst_7 = arith.constant dense<0.000000e+00> : vector<10x256xf32>
    %7 = tpu.matmul %1, %6, %cst_7 {dimension_numbers = #tpu.dot_dimension_numbers<[1], [0], [0], [1], [0, 0, 1, 1], [], []>} : vector<10x256xbf16>, vector<256x256xbf16>, vector<10x256xf32> -> vector<10x256xf32>
    %c2 = arith.constant 2 : index
    %c0_8 = arith.constant 0 : index
    %c0_9 = arith.constant 0 : index
    %8 = vector.load %arg2[%c2, %c0_8, %c0_9] : memref<3x256x256xbf16, #tpu.memory_space<vmem>>, vector<1x256x256xbf16>
    %9 = vector.shape_cast %8 : vector<1x256x256xbf16> to vector<256x256xbf16>
    %cst_10 = arith.constant dense<0.000000e+00> : vector<10x256xf32>
    %10 = tpu.matmul %1, %9, %cst_10 {dimension_numbers = #tpu.dot_dimension_numbers<[1], [0], [0], [1], [0, 0, 1, 1], [], []>} : vector<10x256xbf16>, vector<256x256xbf16>, vector<10x256xf32> -> vector<10x256xf32>
    %11 = vector.extract_strided_slice %4 {offsets = [0, 0], sizes = [8, 256], strides = [1, 1]} : vector<10x256xf32> to vector<8x256xf32>
    %12 = vector.extract_strided_slice %7 {offsets = [1, 0], sizes = [8, 256], strides = [1, 1]} : vector<10x256xf32> to vector<8x256xf32>
    %13 = arith.addf %11, %12 : vector<8x256xf32>
    %14 = vector.extract_strided_slice %10 {offsets = [2, 0], sizes = [8, 256], strides = [1, 1]} : vector<10x256xf32> to vector<8x256xf32>
    %15 = arith.addf %13, %14 : vector<8x256xf32>
    %c0_11 = arith.constant 0 : index
    %c0_12 = arith.constant 0 : index
    %16 = vector.load %arg3[%c0_11, %c0_12] : memref<1x256xf32, #tpu.memory_space<vmem>>, vector<1x256xf32>
    %17 = vector.broadcast %16 : vector<1x256xf32> to vector<8x256xf32>
    %18 = arith.addf %15, %17 : vector<8x256xf32>
    %cst_13 = arith.constant dense<0.000000e+00> : vector<8xf32>
    %19 = vector.multi_reduction <add>, %18, %cst_13 [1] : vector<8x256xf32> to vector<8xf32>
    %20 = vector.shape_cast %19 : vector<8xf32> to vector<8x1xf32>
    %cst_14 = arith.constant 2.560000e+02 : f32
    %21 = vector.broadcast %cst_14 : f32 to vector<8x1xf32>
    %22 = arith.divf %20, %21 : vector<8x1xf32>
    %23 = vector.broadcast %22 : vector<8x1xf32> to vector<8x256xf32>
    %24 = arith.subf %18, %23 : vector<8x256xf32>
    %25 = arith.mulf %24, %24 : vector<8x256xf32>
    %cst_15 = arith.constant dense<0.000000e+00> : vector<8xf32>
    %26 = vector.multi_reduction <add>, %25, %cst_15 [1] : vector<8x256xf32> to vector<8xf32>
    %27 = vector.shape_cast %26 : vector<8xf32> to vector<8x1xf32>
    %cst_16 = arith.constant 2.560000e+02 : f32
    %28 = vector.broadcast %cst_16 : f32 to vector<8x1xf32>
    %29 = arith.divf %27, %28 : vector<8x1xf32>
    %cst_17 = arith.constant 9.99999974E-6 : f32
    %30 = vector.broadcast %cst_17 : f32 to vector<8x1xf32>
    %31 = arith.addf %29, %30 : vector<8x1xf32>
    %32 = math.rsqrt %31 : vector<8x1xf32>
    %33 = vector.broadcast %32 : vector<8x1xf32> to vector<8x256xf32>
    %34 = arith.mulf %24, %33 : vector<8x256xf32>
    %c0_18 = arith.constant 0 : index
    %c0_19 = arith.constant 0 : index
    %35 = vector.load %arg4[%c0_18, %c0_19] : memref<1x256xf32, #tpu.memory_space<vmem>>, vector<1x256xf32>
    %36 = vector.broadcast %35 : vector<1x256xf32> to vector<8x256xf32>
    %37 = arith.mulf %34, %36 : vector<8x256xf32>
    %c0_20 = arith.constant 0 : index
    %c0_21 = arith.constant 0 : index
    %38 = vector.load %arg5[%c0_20, %c0_21] : memref<1x256xf32, #tpu.memory_space<vmem>>, vector<1x256xf32>
    %39 = vector.broadcast %38 : vector<1x256xf32> to vector<8x256xf32>
    %40 = arith.addf %37, %39 : vector<8x256xf32>
    %c0_22 = arith.constant 0 : index
    %c0_23 = arith.constant 0 : index
    %41 = vector.load %arg6[%c0_22, %c0_23] : memref<256x128xf32, #tpu.memory_space<vmem>>, vector<256x128xf32>
    %cst_24 = arith.constant dense<0.000000e+00> : vector<8x128xf32>
    %42 = tpu.matmul %40, %41, %cst_24 {dimension_numbers = #tpu.dot_dimension_numbers<[1], [0], [0], [1], [0, 0, 1, 1], [], []>} : vector<8x256xf32>, vector<256x128xf32>, vector<8x128xf32> -> vector<8x128xf32>
    %c0_25 = arith.constant 0 : index
    %c0_26 = arith.constant 0 : index
    %43 = vector.load %arg7[%c0_25, %c0_26] : memref<1x128xf32, #tpu.memory_space<vmem>>, vector<1x128xf32>
    %44 = vector.broadcast %43 : vector<1x128xf32> to vector<8x128xf32>
    %45 = arith.addf %42, %44 : vector<8x128xf32>
    %c0_27 = arith.constant 0 : index
    %c0_28 = arith.constant 0 : index
    %c0_29 = arith.constant 0 : index
    %46 = vector.load %arg8[%c0_27, %c0_28, %c0_29] : memref<1x8x128xf32, #tpu.memory_space<vmem>>, vector<1x8x128xf32>
    %47 = vector.shape_cast %46 : vector<1x8x128xf32> to vector<8x128xf32>
    %48 = vector.shape_cast %45 : vector<8x128xf32> to vector<1x8x128xf32>
    tpu.vector_store %arg8[%c0_27, %c0_28, %c0_29], %48 {strides = array<i32>} : memref<1x8x128xf32, #tpu.memory_space<vmem>>, vector<1x8x128xf32>,
    return
  }
  func.func @transform_0(%arg0: i32) -> (i32, i32, i32) {
    %c0_i32 = arith.constant 0 : i32
    %c0_i32_0 = arith.constant 0 : i32
    %c0_i32_1 = arith.constant 0 : i32
    return %arg0, %c0_i32, %c0_i32_0 : i32, i32, i32
  }
  func.func @transform_1(%arg0: i32) -> (i32, i32, i32) {
    %c0_i32 = arith.constant 0 : i32
    %c0_i32_0 = arith.constant 0 : i32
    %c0_i32_1 = arith.constant 0 : i32
    %c0_i32_2 = arith.constant 0 : i32
    return %c0_i32, %c0_i32_0, %c0_i32_1 : i32, i32, i32
  }
  func.func @transform_2(%arg0: i32) -> (i32, i32) {
    %c0_i32 = arith.constant 0 : i32
    %c0_i32_0 = arith.constant 0 : i32
    %c0_i32_1 = arith.constant 0 : i32
    return %c0_i32, %c0_i32_0 : i32, i32
  }
  func.func @transform_3(%arg0: i32) -> (i32, i32) {
    %c0_i32 = arith.constant 0 : i32
    %c0_i32_0 = arith.constant 0 : i32
    %c0_i32_1 = arith.constant 0 : i32
    return %c0_i32, %c0_i32_0 : i32, i32
  }
  func.func @transform_4(%arg0: i32) -> (i32, i32) {
    %c0_i32 = arith.constant 0 : i32
    %c0_i32_0 = arith.constant 0 : i32
    %c0_i32_1 = arith.constant 0 : i32
    return %c0_i32, %c0_i32_0 : i32, i32
  }
  func.func @transform_5(%arg0: i32) -> (i32, i32) {
    %c0_i32 = arith.constant 0 : i32
    %c0_i32_0 = arith.constant 0 : i32
    %c0_i32_1 = arith.constant 0 : i32
    return %c0_i32, %c0_i32_0 : i32, i32
  }
  func.func @transform_6(%arg0: i32) -> (i32, i32) {
    %c0_i32 = arith.constant 0 : i32
    %c0_i32_0 = arith.constant 0 : i32
    %c0_i32_1 = arith.constant 0 : i32
    return %c0_i32, %c0_i32_0 : i32, i32
  }
  func.func @transform_7(%arg0: i32) -> (i32, i32, i32) {
    %c0_i32 = arith.constant 0 : i32
    %c0_i32_0 = arith.constant 0 : i32
    %c0_i32_1 = arith.constant 0 : i32
    return %arg0, %c0_i32, %c0_i32_0 : i32, i32, i32
  }
}

module attributes {stable_mosaic.version = 11 : i64} {
  func.func @_sinusoid_kernel(%arg0: i32, %arg1: i32, %arg2: memref<1x1x128xf32, #tpu.memory_space<vmem>>, %arg3: memref<1x1x16x16xbf16, #tpu.memory_space<vmem>>, %arg4: memref<16x128xbf16, #tpu.memory_space<vmem>>, %arg5: memref<1x1x128xf32, #tpu.memory_space<vmem>>) attributes {dimension_semantics = [#tpu.dimension_semantics<parallel>, #tpu.dimension_semantics<parallel>], iteration_bounds = array<i64: 2, 1>, scalar_prefetch = 0 : i64, scratch_operands = 0 : i64, tpu.core_type = #tpu.core_type<tc>, window_params = [{transform_indices = @transform_0, window_bounds = array<i64: 1, 1, 128>}, {transform_indices = @transform_1, window_bounds = array<i64: 1, 1, 16, 16>}, {pipeline_mode = #tpu.pipeline_mode<synchronous>, transform_indices = @transform_2, window_bounds = array<i64: 16, 128>}, {transform_indices = @transform_3, window_bounds = array<i64: 1, 1, 128>}]} {
    %c0 = arith.constant 0 : index
    %c0_0 = arith.constant 0 : index
    %c0_1 = arith.constant 0 : index
    %0 = vector.load %arg2[%c0, %c0_0, %c0_1] : memref<1x1x128xf32, #tpu.memory_space<vmem>>, vector<1x1x128xf32>
    %1 = vector.shape_cast %0 : vector<1x1x128xf32> to vector<1x128xf32>
    %c0_2 = arith.constant 0 : index
    %c0_3 = arith.constant 0 : index
    %c0_4 = arith.constant 0 : index
    %c0_5 = arith.constant 0 : index
    %2 = vector.load %arg3[%c0_2, %c0_3, %c0_4, %c0_5] : memref<1x1x16x16xbf16, #tpu.memory_space<vmem>>, vector<1x1x16x16xbf16>
    %3 = vector.shape_cast %2 : vector<1x1x16x16xbf16> to vector<16x16xbf16>
    %c0_6 = arith.constant 0 : index
    %c0_7 = arith.constant 0 : index
    %4 = vector.load %arg4[%c0_6, %c0_7] : memref<16x128xbf16, #tpu.memory_space<vmem>>, vector<16x128xbf16>
    %cst = arith.constant dense<0.000000e+00> : vector<16x128xf32>
    %5 = tpu.matmul %3, %4, %cst {dimension_numbers = #tpu.dot_dimension_numbers<[1], [0], [0], [1], [0, 0, 1, 1], [], []>} : vector<16x16xbf16>, vector<16x128xbf16>, vector<16x128xf32> -> vector<16x128xf32>
    %6 = math.sin %1 : vector<1x128xf32>
    %7 = math.cos %1 : vector<1x128xf32>
    %cst_8 = arith.constant 2.000000e+00 : f32
    %8 = vector.broadcast %cst_8 : f32 to vector<1x128xf32>
    %9 = arith.mulf %8, %7 : vector<1x128xf32>
    %10 = vector.extract_strided_slice %5 {offsets = [0, 0], sizes = [1, 128], strides = [1, 1]} : vector<16x128xf32> to vector<1x128xf32>
    %11 = arith.mulf %6, %10 : vector<1x128xf32>
    %cst_9 = arith.constant 0.000000e+00 : f32
    %12 = vector.broadcast %cst_9 : f32 to vector<1x128xf32>
    %13 = arith.mulf %9, %6 : vector<1x128xf32>
    %14 = arith.subf %13, %12 : vector<1x128xf32>
    %15 = vector.extract_strided_slice %5 {offsets = [1, 0], sizes = [1, 128], strides = [1, 1]} : vector<16x128xf32> to vector<1x128xf32>
    %16 = arith.mulf %14, %15 : vector<1x128xf32>
    %17 = arith.addf %11, %16 : vector<1x128xf32>
    %18 = arith.mulf %9, %14 : vector<1x128xf32>
    %19 = arith.subf %18, %6 : vector<1x128xf32>
    %20 = vector.extract_strided_slice %5 {offsets = [2, 0], sizes = [1, 128], strides = [1, 1]} : vector<16x128xf32> to vector<1x128xf32>
    %21 = arith.mulf %19, %20 : vector<1x128xf32>
    %22 = arith.addf %17, %21 : vector<1x128xf32>
    %23 = arith.mulf %9, %19 : vector<1x128xf32>
    %24 = arith.subf %23, %14 : vector<1x128xf32>
    %25 = vector.extract_strided_slice %5 {offsets = [3, 0], sizes = [1, 128], strides = [1, 1]} : vector<16x128xf32> to vector<1x128xf32>
    %26 = arith.mulf %24, %25 : vector<1x128xf32>
    %27 = arith.addf %22, %26 : vector<1x128xf32>
    %28 = arith.mulf %9, %24 : vector<1x128xf32>
    %29 = arith.subf %28, %19 : vector<1x128xf32>
    %30 = vector.extract_strided_slice %5 {offsets = [4, 0], sizes = [1, 128], strides = [1, 1]} : vector<16x128xf32> to vector<1x128xf32>
    %31 = arith.mulf %29, %30 : vector<1x128xf32>
    %32 = arith.addf %27, %31 : vector<1x128xf32>
    %33 = arith.mulf %9, %29 : vector<1x128xf32>
    %34 = arith.subf %33, %24 : vector<1x128xf32>
    %35 = vector.extract_strided_slice %5 {offsets = [5, 0], sizes = [1, 128], strides = [1, 1]} : vector<16x128xf32> to vector<1x128xf32>
    %36 = arith.mulf %34, %35 : vector<1x128xf32>
    %37 = arith.addf %32, %36 : vector<1x128xf32>
    %38 = arith.mulf %9, %34 : vector<1x128xf32>
    %39 = arith.subf %38, %29 : vector<1x128xf32>
    %40 = vector.extract_strided_slice %5 {offsets = [6, 0], sizes = [1, 128], strides = [1, 1]} : vector<16x128xf32> to vector<1x128xf32>
    %41 = arith.mulf %39, %40 : vector<1x128xf32>
    %42 = arith.addf %37, %41 : vector<1x128xf32>
    %43 = arith.mulf %9, %39 : vector<1x128xf32>
    %44 = arith.subf %43, %34 : vector<1x128xf32>
    %45 = vector.extract_strided_slice %5 {offsets = [7, 0], sizes = [1, 128], strides = [1, 1]} : vector<16x128xf32> to vector<1x128xf32>
    %46 = arith.mulf %44, %45 : vector<1x128xf32>
    %47 = arith.addf %42, %46 : vector<1x128xf32>
    %48 = arith.mulf %9, %44 : vector<1x128xf32>
    %49 = arith.subf %48, %39 : vector<1x128xf32>
    %50 = vector.extract_strided_slice %5 {offsets = [8, 0], sizes = [1, 128], strides = [1, 1]} : vector<16x128xf32> to vector<1x128xf32>
    %51 = arith.mulf %49, %50 : vector<1x128xf32>
    %52 = arith.addf %47, %51 : vector<1x128xf32>
    %53 = arith.mulf %9, %49 : vector<1x128xf32>
    %54 = arith.subf %53, %44 : vector<1x128xf32>
    %55 = vector.extract_strided_slice %5 {offsets = [9, 0], sizes = [1, 128], strides = [1, 1]} : vector<16x128xf32> to vector<1x128xf32>
    %56 = arith.mulf %54, %55 : vector<1x128xf32>
    %57 = arith.addf %52, %56 : vector<1x128xf32>
    %58 = arith.mulf %9, %54 : vector<1x128xf32>
    %59 = arith.subf %58, %49 : vector<1x128xf32>
    %60 = vector.extract_strided_slice %5 {offsets = [10, 0], sizes = [1, 128], strides = [1, 1]} : vector<16x128xf32> to vector<1x128xf32>
    %61 = arith.mulf %59, %60 : vector<1x128xf32>
    %62 = arith.addf %57, %61 : vector<1x128xf32>
    %63 = arith.mulf %9, %59 : vector<1x128xf32>
    %64 = arith.subf %63, %54 : vector<1x128xf32>
    %65 = vector.extract_strided_slice %5 {offsets = [11, 0], sizes = [1, 128], strides = [1, 1]} : vector<16x128xf32> to vector<1x128xf32>
    %66 = arith.mulf %64, %65 : vector<1x128xf32>
    %67 = arith.addf %62, %66 : vector<1x128xf32>
    %68 = arith.mulf %9, %64 : vector<1x128xf32>
    %69 = arith.subf %68, %59 : vector<1x128xf32>
    %70 = vector.extract_strided_slice %5 {offsets = [12, 0], sizes = [1, 128], strides = [1, 1]} : vector<16x128xf32> to vector<1x128xf32>
    %71 = arith.mulf %69, %70 : vector<1x128xf32>
    %72 = arith.addf %67, %71 : vector<1x128xf32>
    %73 = arith.mulf %9, %69 : vector<1x128xf32>
    %74 = arith.subf %73, %64 : vector<1x128xf32>
    %75 = vector.extract_strided_slice %5 {offsets = [13, 0], sizes = [1, 128], strides = [1, 1]} : vector<16x128xf32> to vector<1x128xf32>
    %76 = arith.mulf %74, %75 : vector<1x128xf32>
    %77 = arith.addf %72, %76 : vector<1x128xf32>
    %78 = arith.mulf %9, %74 : vector<1x128xf32>
    %79 = arith.subf %78, %69 : vector<1x128xf32>
    %80 = vector.extract_strided_slice %5 {offsets = [14, 0], sizes = [1, 128], strides = [1, 1]} : vector<16x128xf32> to vector<1x128xf32>
    %81 = arith.mulf %79, %80 : vector<1x128xf32>
    %82 = arith.addf %77, %81 : vector<1x128xf32>
    %83 = arith.mulf %9, %79 : vector<1x128xf32>
    %84 = arith.subf %83, %74 : vector<1x128xf32>
    %85 = vector.extract_strided_slice %5 {offsets = [15, 0], sizes = [1, 128], strides = [1, 1]} : vector<16x128xf32> to vector<1x128xf32>
    %86 = arith.mulf %84, %85 : vector<1x128xf32>
    %87 = arith.addf %82, %86 : vector<1x128xf32>
    %c0_10 = arith.constant 0 : index
    %c0_11 = arith.constant 0 : index
    %c0_12 = arith.constant 0 : index
    %88 = vector.load %arg5[%c0_10, %c0_11, %c0_12] : memref<1x1x128xf32, #tpu.memory_space<vmem>>, vector<1x1x128xf32>
    %89 = vector.shape_cast %88 : vector<1x1x128xf32> to vector<1x128xf32>
    %90 = vector.shape_cast %87 : vector<1x128xf32> to vector<1x1x128xf32>
    tpu.vector_store %arg5[%c0_10, %c0_11, %c0_12], %90 {strides = array<i32>} : memref<1x1x128xf32, #tpu.memory_space<vmem>>, vector<1x1x128xf32>,
    return
  }
  func.func @transform_0(%arg0: i32, %arg1: i32) -> (i32, i32, i32) {
    %c0_i32 = arith.constant 0 : i32
    %c0_i32_0 = arith.constant 0 : i32
    return %arg0, %arg1, %c0_i32 : i32, i32, i32
  }
  func.func @transform_1(%arg0: i32, %arg1: i32) -> (i32, i32, i32, i32) {
    %c0_i32 = arith.constant 0 : i32
    %c0_i32_0 = arith.constant 0 : i32
    %c0_i32_1 = arith.constant 0 : i32
    return %arg0, %arg1, %c0_i32, %c0_i32_0 : i32, i32, i32, i32
  }
  func.func @transform_2(%arg0: i32, %arg1: i32) -> (i32, i32) {
    %c0_i32 = arith.constant 0 : i32
    %c0_i32_0 = arith.constant 0 : i32
    %c0_i32_1 = arith.constant 0 : i32
    return %c0_i32, %c0_i32_0 : i32, i32
  }
  func.func @transform_3(%arg0: i32, %arg1: i32) -> (i32, i32, i32) {
    %c0_i32 = arith.constant 0 : i32
    %c0_i32_0 = arith.constant 0 : i32
    return %arg0, %arg1, %c0_i32 : i32, i32, i32
  }
}

</mosaic_0001>

<llo_original>
// kernel: custom-call
$region0: #{custom-call}
  %s0 = inlined_call_operand.vmem [shape: f32[2], index: 0, kind: output, shape index: {}]

// kernel: custom-call.1
$region0: #{custom-call.1}
  %s0 = inlined_call_operand.vmem [shape: f32[8,2], index: 0, kind: output, shape index: {}]

// kernel: reverse.4
$region0: #{reverse.4}
  %s0 = inlined_call_operand.vmem [shape: f32[2,8,6], index: 0, kind: input, shape index: {}]
  %s1 = inlined_call_operand.vmem [shape: f32[2,8,6], index: 1, kind: output, shape index: {}]
  %v2 = vlaneseq
  %v3 = vsub.s32 5, %v2
  %4 = vset.pattern.permute.xlu0 %v3
  $region1: #{reverse.4} parent=0
    #allocation0 [shape = 'u8[8192]{0}', space=vmem, size = 0x2000, scoped, tag = 'operand span for operand 0']
    #allocation1 [shape = 'u8[8192]{0}', space=vmem, size = 0x2000, scoped, tag = 'operand span for operand 1']
    // Predicated region
    $region2: #{reverse.4} parent=1 // pred_check
      _
    $region3: #{reverse.4} parent=1 // pred_check_branch
      %6 = sbr.rel (0) target = $region5
    $region4: #{reverse.4} parent=1 // pred_region
      // Predicated region
      $region6: #{reverse.4} parent=4 // pred_check
        _
      $region7: #{reverse.4} parent=4 // pred_check_branch
        %8 = sbr.rel (0) target = $region9
      $region8: #{reverse.4} parent=4 // pred_region
        // Predicated region
        $region21: #{reverse.4} parent=8 // pred_check
          _
        $region22: #{reverse.4} parent=8 // pred_check_branch
          %26 = sbr.rel (0) target = $region24
        $region23: #{reverse.4} parent=8 // pred_region
          loop: start=0, step=1, limit=1
          $region25: #{reverse.4} parent=23 // loop_pre_header
            _
          $region26: #{reverse.4} parent=23 // loop_header
            %s28 = sphi 0, %s32
            %p29 = scmp.ge.s32.totalorder %s28, 1
            %s33 = sphi %s0, %s0
            %s34 = sphi [#allocation0], [#allocation0]
          $region27: #{reverse.4} parent=23 // loop_header_branch
            %31 = sbr.rel (%p29) target = $region31
          $region28: #{reverse.4} parent=23 // loop_body
            %v35 = vld [vmem:[%s33] sm:$0xff]
            %36 = vst [vmem:[%s34] sm:$0xff] %v35
            %v37 = vld [vmem:[%s33 + $0x8] sm:$0xff]
            %38 = vst [vmem:[%s34 + $0x8] sm:$0xff] %v37
          $region29: #{reverse.4} parent=23 // loop_footer
            %s32 = sadd.s32 1, %s28
          $region30: #{reverse.4} parent=23 // loop_footer_branch
            %27 = sbr.rel target = $region26
          $region31: #{reverse.4} parent=23 // loop_exit
            _
        $region24: #{reverse.4} parent=8 // pred_fallthru
          _
        // Predicated region
        $region32: #{reverse.4} parent=8 // pred_check
          _
        $region33: #{reverse.4} parent=8 // pred_check_branch
          %40 = sbr.rel target = $region35
        $region34: #{reverse.4} parent=8 // pred_region
          _
        $region35: #{reverse.4} parent=8 // pred_fallthru
          _
      $region9: #{reverse.4} parent=4 // pred_fallthru
        _
      // Predicated region
      $region10: #{reverse.4} parent=4 // pred_check
        _
      $region11: #{reverse.4} parent=4 // pred_check_branch
        %10 = sbr.rel target = $region13
      $region12: #{reverse.4} parent=4 // pred_region
        %s12 = ssub.s32 256, 1
        loop: start=0, step=1, limit=1
        $region14: #{reverse.4} parent=12 // loop_pre_header
          _
        $region15: #{reverse.4} parent=12 // loop_header
          %s14 = sphi 0, %s18
          %p15 = scmp.ge.s32.totalorder %s14, 1
          %s19 = sphi %s0, %s0
          %s20 = sphi [#allocation0], [#allocation0]
        $region16: #{reverse.4} parent=12 // loop_header_branch
          %17 = sbr.rel (%p15) target = $region20
        $region17: #{reverse.4} parent=12 // loop_body
          %v21 = vld [vmem:[%s19] sm:%s12]
          %22 = vst [vmem:[%s20] sm:%s12] %v21
          %v23 = vld [vmem:[%s19 + $0x8] sm:%s12]
          %24 = vst [vmem:[%s20 + $0x8] sm:%s12] %v23
        $region18: #{reverse.4} parent=12 // loop_footer
          %s18 = sadd.s32 1, %s14
        $region19: #{reverse.4} parent=12 // loop_footer_branch
          %13 = sbr.rel target = $region15
        $region20: #{reverse.4} parent=12 // loop_exit
          _
      $region13: #{reverse.4} parent=4 // pred_fallthru
        _
    $region5: #{reverse.4} parent=1 // pred_fallthru
      _
    %41 = vnop
    %v42 = vld [vmem:[#allocation0] sm:$0xff]
    %43 = vperm.xlu0 %4, %v42
    %v44 = vpop.permute.xlu0 %43
    %45 = vst [vmem:[#allocation1] sm:$0xff] %v44
    %s46 = scalar_lea.vmem [#allocation1], 8
    %s47 = scalar_lea.vmem [#allocation0], 8
    %v48 = vld [vmem:[%s47] sm:$0xff]
    %49 = vperm.xlu0 %4, %v48
    %v50 = vpop.permute.xlu0 %49
    %51 = vst [vmem:[%s46] sm:$0xff] %v50
    // Predicated region
    $region36: #{reverse.4} parent=1 // pred_check
      _
    $region37: #{reverse.4} parent=1 // pred_check_branch
      %53 = sbr.rel (0) target = $region39
    $region38: #{reverse.4} parent=1 // pred_region
      // Predicated region
      $region40: #{reverse.4} parent=38 // pred_check
        _
      $region41: #{reverse.4} parent=38 // pred_check_branch
        %55 = sbr.rel (0) target = $region43
      $region42: #{reverse.4} parent=38 // pred_region
        // Predicated region
        $region55: #{reverse.4} parent=42 // pred_check
          _
        $region56: #{reverse.4} parent=42 // pred_check_branch
          %73 = sbr.rel (0) target = $region58
        $region57: #{reverse.4} parent=42 // pred_region
          loop: start=0, step=1, limit=1
          $region59: #{reverse.4} parent=57 // loop_pre_header
            _
          $region60: #{reverse.4} parent=57 // loop_header
            %s75 = sphi 0, %s79
            %p76 = scmp.ge.s32.totalorder %s75, 1
            %s80 = sphi [#allocation1], [#allocation1]
            %s81 = sphi %s1, %s1
          $region61: #{reverse.4} parent=57 // loop_header_branch
            %78 = sbr.rel (%p76) target = $region65
          $region62: #{reverse.4} parent=57 // loop_body
            %v82 = vld [vmem:[%s80] sm:$0xff]
            %83 = vst [vmem:[%s81] sm:$0xff] %v82
            %v84 = vld [vmem:[%s80 + $0x8] sm:$0xff]
            %85 = vst [vmem:[%s81 + $0x8] sm:$0xff] %v84
          $region63: #{reverse.4} parent=57 // loop_footer
            %s79 = sadd.s32 1, %s75
          $region64: #{reverse.4} parent=57 // loop_footer_branch
            %74 = sbr.rel target = $region60
          $region65: #{reverse.4} parent=57 // loop_exit
            _
        $region58: #{reverse.4} parent=42 // pred_fallthru
          _
        // Predicated region
        $region66: #{reverse.4} parent=42 // pred_check
          _
        $region67: #{reverse.4} parent=42 // pred_check_branch
          %87 = sbr.rel target = $region69
        $region68: #{reverse.4} parent=42 // pred_region
          _
        $region69: #{reverse.4} parent=42 // pred_fallthru
          _
      $region43: #{reverse.4} parent=38 // pred_fallthru
        _
      // Predicated region
      $region44: #{reverse.4} parent=38 // pred_check
        _
      $region45: #{reverse.4} parent=38 // pred_check_branch
        %57 = sbr.rel target = $region47
      $region46: #{reverse.4} parent=38 // pred_region
        %s59 = ssub.s32 256, 1
        loop: start=0, step=1, limit=1
        $region48: #{reverse.4} parent=46 // loop_pre_header
          _
        $region49: #{reverse.4} parent=46 // loop_header
          %s61 = sphi 0, %s65
          %p62 = scmp.ge.s32.totalorder %s61, 1
          %s66 = sphi [#allocation1], [#allocation1]
          %s67 = sphi %s1, %s1
        $region50: #{reverse.4} parent=46 // loop_header_branch
          %64 = sbr.rel (%p62) target = $region54
        $region51: #{reverse.4} parent=46 // loop_body
          %v68 = vld [vmem:[%s66] sm:%s59]
          %69 = vst [vmem:[%s67] sm:%s59] %v68
          %v70 = vld [vmem:[%s66 + $0x8] sm:%s59]
          %71 = vst [vmem:[%s67 + $0x8] sm:%s59] %v70
        $region52: #{reverse.4} parent=46 // loop_footer
          %s65 = sadd.s32 1, %s61
        $region53: #{reverse.4} parent=46 // loop_footer_branch
          %60 = sbr.rel target = $region49
        $region54: #{reverse.4} parent=46 // loop_exit
          _
      $region47: #{reverse.4} parent=38 // pred_fallthru
        _
    $region39: #{reverse.4} parent=1 // pred_fallthru
      _
    %88 = vnop

// kernel: sins_forward.4
$region0: #{sins_forward.4}
  #allocation0 [shape = 'u32[]', space=smem, size = 0x4, offset = 0x4, fixed_abs, tag = 'smem constant byte address 0x4 - core index']
  #allocation1 [shape = 'u32[144,128]{1,0:T(1,128)}', space=vmem, size = 0x12000, scoped, tag = 'internal scratch']
  %s0 = inlined_call_operand.vmem [shape: bf16[2,10,256], index: 0, kind: input, shape index: {}]
  %s1 = inlined_call_operand.vmem [shape: bf16[3,256,256], index: 1, kind: input, shape index: {}]
  %s2 = inlined_call_operand.vmem [shape: f32[1,256], index: 2, kind: input, shape index: {}]
  %s3 = inlined_call_operand.vmem [shape: f32[1,256], index: 3, kind: input, shape index: {}]
  %s4 = inlined_call_operand.vmem [shape: f32[1,256], index: 4, kind: input, shape index: {}]
  %s5 = inlined_call_operand.vmem [shape: f32[256,128], index: 5, kind: input, shape index: {}]
  %s6 = inlined_call_operand.vmem [shape: f32[1,128], index: 6, kind: input, shape index: {}]
  %s7 = inlined_call_operand.vmem [shape: f32[2,8,128], index: 7, kind: output, shape index: {}]
  %s8 = sld [smem:[#allocation0]]
  $region61: #{sins_forward.4} parent=0
    _
  %s10 = ssub.s32 1, %s8
  %s11 = scalar_select 0, %s10, %s8
  loop: start=0, step=1, limit=4
  $region2: #{sins_forward.4} parent=0 // loop_pre_header
    _
  $region3: #{sins_forward.4} parent=0 // loop_header
    %s13 = sphi 0, %s17
    %p14 = scmp.ge.s32.totalorder %s13, 4
    %s23 = sphi 0, %s25
    %s26 = sphi 0, %s23
    %s27 = sphi 0, %s26
    %s43 = sphi 0, %s27
    %s47 = sphi 0, %s47
    %s49 = sphi 0, %s47
    %s50 = sphi 0, %s49
    %s64 = sphi 0, %s50
    %s68 = sphi 0, %s68
    %s70 = sphi 0, %s68
    %s71 = sphi 0, %s70
    %s85 = sphi 0, %s71
    %s89 = sphi 0, %s89
    %s91 = sphi 0, %s89
    %s92 = sphi 0, %s91
    %s106 = sphi 0, %s92
    %s110 = sphi 0, %s110
    %s112 = sphi 0, %s110
    %s113 = sphi 0, %s112
    %s127 = sphi 0, %s113
    %s131 = sphi 0, %s131
    %s133 = sphi 0, %s131
    %s134 = sphi 0, %s133
    %s148 = sphi 0, %s134
    %s152 = sphi 0, %s152
    %s154 = sphi 0, %s152
    %s155 = sphi 0, %s154
    %s169 = sphi 0, %s155
    %s175 = sphi 0, %s177
    %s178 = sphi 0, %s175
    %s179 = sphi 0, %s178
    %s195 = sphi 0, %s179
  $region4: #{sins_forward.4} parent=0 // loop_header_branch
    %16 = sbr.rel (%p14) target = $region8
  $region5: #{sins_forward.4} parent=0 // loop_body
    %s18 = ssub.s32 %s13, 1
    %s19 = ssub.s32 %s13, 2
    %s20 = sadd.s32 %s13, 1
    %s21 = ssub.s32 %s13, %s20
    %p22 = scmp.eq.s32.totalorder %s21, 0
    %s24 = sadd.s32 %s23, 1
    %s25 = scalar_select %p22, %s23, %s24
    %p28 = pneg %p22
    %p29 = scmp.eq.s32.totalorder %s13, 1
    %p30 = por %p28, %p29
    %p31 = scmp.ne.s32.totalorder %s23, %s26
    %p32 = scmp.eq.s32.totalorder %s13, 0
    %p33 = por %p31, %p32
    %p34 = scmp.ne.s32.totalorder %s23, %s26
    %p35 = scmp.eq.s32.totalorder %s18, 1
    %p36 = por %p34, %p35
    %p37 = scmp.ne.s32.totalorder %s26, %s27
    %p38 = scmp.eq.s32.totalorder %s18, 0
    %p39 = por %p37, %p38
    %p40 = scmp.ne.s32.totalorder %s26, %s27
    %p41 = scmp.eq.s32.totalorder %s19, 1
    %p42 = por %p40, %p41
    %p44 = scmp.ne.s32.totalorder %s27, %s43
    %p45 = scmp.eq.s32.totalorder %s19, 0
    %p46 = por %p44, %p45
    %s48 = sadd.s32 %s47, 1
    %p51 = scmp.eq.s32.totalorder %s13, 1
    %p52 = scmp.ne.s32.totalorder %s47, %s49
    %p53 = scmp.eq.s32.totalorder %s13, 0
    %p54 = por %p52, %p53
    %p55 = scmp.ne.s32.totalorder %s47, %s49
    %p56 = scmp.eq.s32.totalorder %s18, 1
    %p57 = por %p55, %p56
    %p58 = scmp.ne.s32.totalorder %s49, %s50
    %p59 = scmp.eq.s32.totalorder %s18, 0
    %p60 = por %p58, %p59
    %p61 = scmp.ne.s32.totalorder %s49, %s50
    %p62 = scmp.eq.s32.totalorder %s19, 1
    %p63 = por %p61, %p62
    %p65 = scmp.ne.s32.totalorder %s50, %s64
    %p66 = scmp.eq.s32.totalorder %s19, 0
    %p67 = por %p65, %p66
    %s69 = sadd.s32 %s68, 1
    %p72 = scmp.eq.s32.totalorder %s13, 1
    %p73 = scmp.ne.s32.totalorder %s68, %s70
    %p74 = scmp.eq.s32.totalorder %s13, 0
    %p75 = por %p73, %p74
    %p76 = scmp.ne.s32.totalorder %s68, %s70
    %p77 = scmp.eq.s32.totalorder %s18, 1
    %p78 = por %p76, %p77
    %p79 = scmp.ne.s32.totalorder %s70, %s71
    %p80 = scmp.eq.s32.totalorder %s18, 0
    %p81 = por %p79, %p80
    %p82 = scmp.ne.s32.totalorder %s70, %s71
    %p83 = scmp.eq.s32.totalorder %s19, 1
    %p84 = por %p82, %p83
    %p86 = scmp.ne.s32.totalorder %s71, %s85
    %p87 = scmp.eq.s32.totalorder %s19, 0
    %p88 = por %p86, %p87
    %s90 = sadd.s32 %s89, 1
    %p93 = scmp.eq.s32.totalorder %s13, 1
    %p94 = scmp.ne.s32.totalorder %s89, %s91
    %p95 = scmp.eq.s32.totalorder %s13, 0
    %p96 = por %p94, %p95
    %p97 = scmp.ne.s32.totalorder %s89, %s91
    %p98 = scmp.eq.s32.totalorder %s18, 1
    %p99 = por %p97, %p98
    %p100 = scmp.ne.s32.totalorder %s91, %s92
    %p101 = scmp.eq.s32.totalorder %s18, 0
    %p102 = por %p100, %p101
    %p103 = scmp.ne.s32.totalorder %s91, %s92
    %p104 = scmp.eq.s32.totalorder %s19, 1
    %p105 = por %p103, %p104
    %p107 = scmp.ne.s32.totalorder %s92, %s106
    %p108 = scmp.eq.s32.totalorder %s19, 0
    %p109 = por %p107, %p108
    %s111 = sadd.s32 %s110, 1
    %p114 = scmp.eq.s32.totalorder %s13, 1
    %p115 = scmp.ne.s32.totalorder %s110, %s112
    %p116 = scmp.eq.s32.totalorder %s13, 0
    %p117 = por %p115, %p116
    %p118 = scmp.ne.s32.totalorder %s110, %s112
    %p119 = scmp.eq.s32.totalorder %s18, 1
    %p120 = por %p118, %p119
    %p121 = scmp.ne.s32.totalorder %s112, %s113
    %p122 = scmp.eq.s32.totalorder %s18, 0
    %p123 = por %p121, %p122
    %p124 = scmp.ne.s32.totalorder %s112, %s113
    %p125 = scmp.eq.s32.totalorder %s19, 1
    %p126 = por %p124, %p125
    %p128 = scmp.ne.s32.totalorder %s113, %s127
    %p129 = scmp.eq.s32.totalorder %s19, 0
    %p130 = por %p128, %p129
    %s132 = sadd.s32 %s131, 1
    %p135 = scmp.eq.s32.totalorder %s13, 1
    %p136 = scmp.ne.s32.totalorder %s131, %s133
    %p137 = scmp.eq.s32.totalorder %s13, 0
    %p138 = por %p136, %p137
    %p139 = scmp.ne.s32.totalorder %s131, %s133
    %p140 = scmp.eq.s32.totalorder %s18, 1
    %p141 = por %p139, %p140
    %p142 = scmp.ne.s32.totalorder %s133, %s134
    %p143 = scmp.eq.s32.totalorder %s18, 0
    %p144 = por %p142, %p143
    %p145 = scmp.ne.s32.totalorder %s133, %s134
    %p146 = scmp.eq.s32.totalorder %s19, 1
    %p147 = por %p145, %p146
    %p149 = scmp.ne.s32.totalorder %s134, %s148
    %p150 = scmp.eq.s32.totalorder %s19, 0
    %p151 = por %p149, %p150
    %s153 = sadd.s32 %s152, 1
    %p156 = scmp.eq.s32.totalorder %s13, 1
    %p157 = scmp.ne.s32.totalorder %s152, %s154
    %p158 = scmp.eq.s32.totalorder %s13, 0
    %p159 = por %p157, %p158
    %p160 = scmp.ne.s32.totalorder %s152, %s154
    %p161 = scmp.eq.s32.totalorder %s18, 1
    %p162 = por %p160, %p161
    %p163 = scmp.ne.s32.totalorder %s154, %s155
    %p164 = scmp.eq.s32.totalorder %s18, 0
    %p165 = por %p163, %p164
    %p166 = scmp.ne.s32.totalorder %s154, %s155
    %p167 = scmp.eq.s32.totalorder %s19, 1
    %p168 = por %p166, %p167
    %p170 = scmp.ne.s32.totalorder %s155, %s169
    %p171 = scmp.eq.s32.totalorder %s19, 0
    %p172 = por %p170, %p171
    %s173 = ssub.s32 %s13, %s20
    %p174 = scmp.eq.s32.totalorder %s173, 0
    %s176 = sadd.s32 %s175, 1
    %s177 = scalar_select %p174, %s175, %s176
    %p180 = pneg %p174
    %p181 = scmp.eq.s32.totalorder %s13, 1
    %p182 = por %p180, %p181
    %p183 = scmp.ne.s32.totalorder %s175, %s178
    %p184 = scmp.eq.s32.totalorder %s13, 0
    %p185 = por %p183, %p184
    %p186 = scmp.ne.s32.totalorder %s175, %s178
    %p187 = scmp.eq.s32.totalorder %s18, 1
    %p188 = por %p186, %p187
    %p189 = scmp.ne.s32.totalorder %s178, %s179
    %p190 = scmp.eq.s32.totalorder %s18, 0
    %p191 = por %p189, %p190
    %p192 = scmp.ne.s32.totalorder %s178, %s179
    %p193 = scmp.eq.s32.totalorder %s19, 1
    %p194 = por %p192, %p193
    %p196 = scmp.ne.s32.totalorder %s179, %s195
    %p197 = scmp.eq.s32.totalorder %s19, 0
    %p198 = por %p196, %p197
    %p199 = scmp.le.s32.totalorder 1, %s13
    %p200 = scmp.lt.s32.totalorder %s13, 3
    %p201 = pnand %p199, %p200
    %p202 = pneg %p201
    // Predicated region
    $region9: #{sins_forward.4} parent=5 // pred_check
      _
    $region10: #{sins_forward.4} parent=5 // pred_check_branch
      %204 = sbr.rel (%p201) target = $region12
    $region11: #{sins_forward.4} parent=5 // pred_region
      %s205 = ssub.s32 %s13, 1
      // Predicated region
      $region13: #{sins_forward.4} parent=11 // pred_check
        %p206 = pneg %p60
      $region14: #{sins_forward.4} parent=11 // pred_check_branch
        %208 = sbr.rel (%p206) target = $region16
      $region15: #{sins_forward.4} parent=11 // pred_region
        _
      $region16: #{sins_forward.4} parent=11 // pred_fallthru
        _
      // Predicated region
      $region17: #{sins_forward.4} parent=11 // pred_check
        %p209 = pneg %p81
      $region18: #{sins_forward.4} parent=11 // pred_check_branch
        %211 = sbr.rel (%p209) target = $region20
      $region19: #{sins_forward.4} parent=11 // pred_region
        _
      $region20: #{sins_forward.4} parent=11 // pred_fallthru
        _
      // Predicated region
      $region21: #{sins_forward.4} parent=11 // pred_check
        %p212 = pneg %p102
      $region22: #{sins_forward.4} parent=11 // pred_check_branch
        %214 = sbr.rel (%p212) target = $region24
      $region23: #{sins_forward.4} parent=11 // pred_region
        _
      $region24: #{sins_forward.4} parent=11 // pred_fallthru
        _
      // Predicated region
      $region25: #{sins_forward.4} parent=11 // pred_check
        %p215 = pneg %p123
      $region26: #{sins_forward.4} parent=11 // pred_check_branch
        %217 = sbr.rel (%p215) target = $region28
      $region27: #{sins_forward.4} parent=11 // pred_region
        _
      $region28: #{sins_forward.4} parent=11 // pred_fallthru
        _
      // Predicated region
      $region29: #{sins_forward.4} parent=11 // pred_check
        %p218 = pneg %p144
      $region30: #{sins_forward.4} parent=11 // pred_check_branch
        %220 = sbr.rel (%p218) target = $region32
      $region31: #{sins_forward.4} parent=11 // pred_region
        _
      $region32: #{sins_forward.4} parent=11 // pred_fallthru
        _
      // Predicated region
      $region33: #{sins_forward.4} parent=11 // pred_check
        %p221 = pneg %p165
      $region34: #{sins_forward.4} parent=11 // pred_check_branch
        %223 = sbr.rel (%p221) target = $region36
      $region35: #{sins_forward.4} parent=11 // pred_region
        _
      $region36: #{sins_forward.4} parent=11 // pred_fallthru
        _
    $region12: #{sins_forward.4} parent=5 // pred_fallthru
      _
    %p224 = scmp.lt.s32.totalorder %s13, 2
    // Predicated region
    $region37: #{sins_forward.4} parent=5 // pred_check
      %p225 = pneg %p224
    $region38: #{sins_forward.4} parent=5 // pred_check_branch
      %227 = sbr.rel (%p225) target = $region40
    $region39: #{sins_forward.4} parent=5 // pred_region
      // Predicated region
      $region41: #{sins_forward.4} parent=39 // pred_check
        %p228 = pneg %p33
      $region42: #{sins_forward.4} parent=39 // pred_check_branch
        %230 = sbr.rel (%p228) target = $region44
      $region43: #{sins_forward.4} parent=39 // pred_region
        %p231 = scmp.lt.s32.totalorder %s13, 1
        %s232 = scalar_select %p231, %s13, 1
        %s233 = smul.addr %s232, 4
        %s234 = smul.addr %s233, 4
        %s235 = scalar_lea.vmem %s0, %s234
      $region44: #{sins_forward.4} parent=39 // pred_fallthru
        _
    $region40: #{sins_forward.4} parent=5 // pred_fallthru
      _
    %p236 = scmp.le.s32.totalorder 1, %s13
    %p237 = scmp.lt.s32.totalorder %s13, 3
    %p238 = pnand %p236, %p237
    %p239 = pneg %p238
    // Predicated region
    $region45: #{sins_forward.4} parent=5 // pred_check
      _
    $region46: #{sins_forward.4} parent=5 // pred_check_branch
      %241 = sbr.rel (%p238) target = $region48
    $region47: #{sins_forward.4} parent=5 // pred_region
      %s242 = ssub.s32 %s13, 1
      %p243 = scmp.lt.s32.totalorder %s18, 1
      %s244 = scalar_select %p243, %s18, 1
      %s245 = smul.addr %s244, 4
      %s246 = smul.addr %s245, 4
      %s247 = scalar_lea.vmem %s0, %s246
      %p248 = pneg %p39
      %p249 = pneg %p36
      %p250 = pneg %p60
      %p251 = pneg %p57
      %p252 = pneg %p81
      %p253 = pneg %p78
      %p254 = pneg %p102
      %p255 = pneg %p99
      %p256 = pneg %p123
      %p257 = pneg %p120
      %p258 = pneg %p144
      %p259 = pneg %p141
      %p260 = pneg %p165
      %p261 = pneg %p162
      %p262 = pneg %p191
      %p263 = pneg %p188
      %p264 = scmp.lt.s32.totalorder %s18, 1
      %s265 = scalar_select %p264, %s18, 1
      %s266 = smul.addr %s265, 8
      %s267 = scalar_lea.vmem %s7, %s266
      %p268 = scmp.lt.s32.totalorder %s18, 1
      %s269 = scalar_select %p268, %s18, 1
      %s270 = smul.addr %s269, 4
      %s271 = smul.addr %s270, 4
      %s272 = scalar_lea.vmem %s0, %s271
      %p273 = scmp.lt.s32.totalorder %s18, 1
      %s274 = scalar_select %p273, %s18, 1
      %s275 = smul.addr %s274, 8
      %s276 = scalar_lea.vmem %s7, %s275
      %v277 = vld [vmem:[%s272] sm:$0xff]
      %v278 = vld [vmem:[%s272 + $0x8] sm:$0x11]
      %v279 = vld [vmem:[%s1] sm:$0xff]
      %v280 = vld [vmem:[%s1 + $0x8] sm:$0xff]
      %v281 = vld [vmem:[%s1 + $0x10] sm:$0xff]
      %v282 = vld [vmem:[%s1 + $0x18] sm:$0xff]
      %v283 = vld [vmem:[%s1 + $0x20] sm:$0xff]
      %v284 = vld [vmem:[%s1 + $0x28] sm:$0xff]
      %v285 = vld [vmem:[%s1 + $0x30] sm:$0xff]
      %v286 = vld [vmem:[%s1 + $0x38] sm:$0xff]
      %v287 = vld [vmem:[%s1 + $0x40] sm:$0xff]
      %v288 = vld [vmem:[%s1 + $0x48] sm:$0xff]
      %v289 = vld [vmem:[%s1 + $0x50] sm:$0xff]
      %v290 = vld [vmem:[%s1 + $0x58] sm:$0xff]
      %v291 = vld [vmem:[%s1 + $0x60] sm:$0xff]
      %v292 = vld [vmem:[%s1 + $0x68] sm:$0xff]
      %v293 = vld [vmem:[%s1 + $0x70] sm:$0xff]
      %v294 = vld [vmem:[%s1 + $0x78] sm:$0xff]
      %v295 = vld [vmem:[%s1 + $0x80] sm:$0xff]
      %v296 = vld [vmem:[%s1 + $0x88] sm:$0xff]
      %v297 = vld [vmem:[%s1 + $0x90] sm:$0xff]
      %v298 = vld [vmem:[%s1 + $0x98] sm:$0xff]
      %v299 = vld [vmem:[%s1 + $0xa0] sm:$0xff]
      %v300 = vld [vmem:[%s1 + $0xa8] sm:$0xff]
      %v301 = vld [vmem:[%s1 + $0xb0] sm:$0xff]
      %v302 = vld [vmem:[%s1 + $0xb8] sm:$0xff]
      %v303 = vld [vmem:[%s1 + $0xc0] sm:$0xff]
      %v304 = vld [vmem:[%s1 + $0xc8] sm:$0xff]
      %v305 = vld [vmem:[%s1 + $0xd0] sm:$0xff]
      %v306 = vld [vmem:[%s1 + $0xd8] sm:$0xff]
      %v307 = vld [vmem:[%s1 + $0xe0] sm:$0xff]
      %v308 = vld [vmem:[%s1 + $0xe8] sm:$0xff]
      %v309 = vld [vmem:[%s1 + $0xf0] sm:$0xff]
      %v310 = vld [vmem:[%s1 + $0xf8] sm:$0xff]
      %v313 = vunpack.c.l.b16 %v277
      %v314 = vunpack.c.h.b16 %v277
      %v315 = vunpack.c.l.b16 %v278
      %v316 = vunpack.c.h.b16 %v278
      %v317 = vpack.c.b16 %v315, %v313
      %v318 = vpack.c.b16 %v316, %v314
      %v353 = vunpack.c.l.b16 %v279
      %v354 = vunpack.c.h.b16 %v279
      %v355 = vunpack.c.l.b16 %v280
      %v356 = vunpack.c.h.b16 %v280
      %v357 = vunpack.c.l.b16 %v281
      %v358 = vunpack.c.h.b16 %v281
      %v359 = vunpack.c.l.b16 %v282
      %v360 = vunpack.c.h.b16 %v282
      %v361 = vunpack.c.l.b16 %v283
      %v362 = vunpack.c.h.b16 %v283
      %v363 = vunpack.c.l.b16 %v284
      %v364 = vunpack.c.h.b16 %v284
      %v365 = vunpack.c.l.b16 %v285
      %v366 = vunpack.c.h.b16 %v285
      %v367 = vunpack.c.l.b16 %v286
      %v368 = vunpack.c.h.b16 %v286
      %v369 = vunpack.c.l.b16 %v287
      %v370 = vunpack.c.h.b16 %v287
      %v371 = vunpack.c.l.b16 %v288
      %v372 = vunpack.c.h.b16 %v288
      %v373 = vunpack.c.l.b16 %v289
      %v374 = vunpack.c.h.b16 %v289
      %v375 = vunpack.c.l.b16 %v290
      %v376 = vunpack.c.h.b16 %v290
      %v377 = vunpack.c.l.b16 %v291
      %v378 = vunpack.c.h.b16 %v291
      %v379 = vunpack.c.l.b16 %v292
      %v380 = vunpack.c.h.b16 %v292
      %v381 = vunpack.c.l.b16 %v293
      %v382 = vunpack.c.h.b16 %v293
      %v383 = vunpack.c.l.b16 %v294
      %v384 = vunpack.c.h.b16 %v294
      %v385 = vunpack.c.l.b16 %v295
      %v386 = vunpack.c.h.b16 %v295
      %v387 = vunpack.c.l.b16 %v296
      %v388 = vunpack.c.h.b16 %v296
      %v389 = vunpack.c.l.b16 %v297
      %v390 = vunpack.c.h.b16 %v297
      %v391 = vunpack.c.l.b16 %v298
      %v392 = vunpack.c.h.b16 %v298
      %v393 = vunpack.c.l.b16 %v299
      %v394 = vunpack.c.h.b16 %v299
      %v395 = vunpack.c.l.b16 %v300
      %v396 = vunpack.c.h.b16 %v300
      %v397 = vunpack.c.l.b16 %v301
      %v398 = vunpack.c.h.b16 %v301
      %v399 = vunpack.c.l.b16 %v302
      %v400 = vunpack.c.h.b16 %v302
      %v401 = vunpack.c.l.b16 %v303
      %v402 = vunpack.c.h.b16 %v303
      %v403 = vunpack.c.l.b16 %v304
      %v404 = vunpack.c.h.b16 %v304
      %v405 = vunpack.c.l.b16 %v305
      %v406 = vunpack.c.h.b16 %v305
      %v407 = vunpack.c.l.b16 %v306
      %v408 = vunpack.c.h.b16 %v306
      %v409 = vunpack.c.l.b16 %v307
      %v410 = vunpack.c.h.b16 %v307
      %v411 = vunpack.c.l.b16 %v308
      %v412 = vunpack.c.h.b16 %v308
      %v413 = vunpack.c.l.b16 %v309
      %v414 = vunpack.c.h.b16 %v309
      %v415 = vunpack.c.l.b16 %v310
      %v416 = vunpack.c.h.b16 %v310
      %v417 = vpack.c.b16 %v355, %v353
      %v418 = vpack.c.b16 %v356, %v354
      %v419 = vpack.c.b16 %v359, %v357
      %v420 = vpack.c.b16 %v360, %v358
      %v421 = vpack.c.b16 %v363, %v361
      %v422 = vpack.c.b16 %v364, %v362
      %v423 = vpack.c.b16 %v367, %v365
      %v424 = vpack.c.b16 %v368, %v366
      %v425 = vpack.c.b16 %v371, %v369
      %v426 = vpack.c.b16 %v372, %v370
      %v427 = vpack.c.b16 %v375, %v373
      %v428 = vpack.c.b16 %v376, %v374
      %v429 = vpack.c.b16 %v379, %v377
      %v430 = vpack.c.b16 %v380, %v378
      %v431 = vpack.c.b16 %v383, %v381
      %v432 = vpack.c.b16 %v384, %v382
      %v433 = vpack.c.b16 %v387, %v385
      %v434 = vpack.c.b16 %v388, %v386
      %v435 = vpack.c.b16 %v391, %v389
      %v436 = vpack.c.b16 %v392, %v390
      %v437 = vpack.c.b16 %v395, %v393
      %v438 = vpack.c.b16 %v396, %v394
      %v439 = vpack.c.b16 %v399, %v397
      %v440 = vpack.c.b16 %v400, %v398
      %v441 = vpack.c.b16 %v403, %v401
      %v442 = vpack.c.b16 %v404, %v402
      %v443 = vpack.c.b16 %v407, %v405
      %v444 = vpack.c.b16 %v408, %v406
      %v445 = vpack.c.b16 %v411, %v409
      %v446 = vpack.c.b16 %v412, %v410
      %v447 = vpack.c.b16 %v415, %v413
      %v448 = vpack.c.b16 %v416, %v414
      %481 = vmatprep.subr.bf16.mxu0 %v432
      %482 = vmatpush1.bf16.msra.mxu0 %v431
      %483 = vmatprep.subr.bf16.mxu0 %v430
      %484 = vmatpush1.bf16.msra.mxu0 %v429
      %485 = vmatprep.subr.bf16.mxu0 %v428
      %486 = vmatpush1.bf16.msra.mxu0 %v427
      %487 = vmatprep.subr.bf16.mxu0 %v426
      %488 = vmatpush1.bf16.msra.mxu0 %v425
      %489 = vmatprep.subr.bf16.mxu0 %v424
      %490 = vmatpush1.bf16.msra.mxu0 %v423
      %491 = vmatprep.subr.bf16.mxu0 %v422
      %492 = vmatpush1.bf16.msra.mxu0 %v421
      %493 = vmatprep.subr.bf16.mxu0 %v420
      %494 = vmatpush1.bf16.msra.mxu0 %v419
      %495 = vmatprep.subr.bf16.mxu0 %v418
      %496 = vmatpush1.bf16.msra.mxu0 %v417
      %497 = vmatprep.subr.bf16.mxu0 %v448
      %498 = vmatpush2.bf16.msra.mxu0 %v447
      %499 = vmatprep.subr.bf16.mxu0 %v446
      %500 = vmatpush2.bf16.msra.mxu0 %v445
      %501 = vmatprep.subr.bf16.mxu0 %v444
      %502 = vmatpush2.bf16.msra.mxu0 %v443
      %503 = vmatprep.subr.bf16.mxu0 %v442
      %504 = vmatpush2.bf16.msra.mxu0 %v441
      %505 = vmatprep.subr.bf16.mxu0 %v440
      %506 = vmatpush2.bf16.msra.mxu0 %v439
      %507 = vmatprep.subr.bf16.mxu0 %v438
      %508 = vmatpush2.bf16.msra.mxu0 %v437
      %509 = vmatprep.subr.bf16.mxu0 %v436
      %510 = vmatpush2.bf16.msra.mxu0 %v435
      %511 = vmatprep.subr.bf16.mxu0 %v434
      %512 = vmatpush2.bf16.msra.mxu0 %v433
      %513 = vmatprep.mubr.bf16.mxu0 %v318
      %514 = vmatmul.mubr.bf16.gmra.mxu0 %v317
      %v515 = vpop.f32.mrf.mxu0
      %v516 = vadd.f32 0.0, %v515
      %v517 = vpop.f32.mrf.mxu0
      %v518 = vadd.f32 0.0, %v517
      %v519 = vpop.f32.mrf.mxu0
      %v520 = vpop.f32.mrf.mxu0
      %521 = vdwg.mxu0
      %s522 = scalar_lea.vmem %s1, 256
      %v523 = vld [vmem:[%s522] sm:$0xff]
      %v524 = vld [vmem:[%s522 + $0x8] sm:$0xff]
      %v525 = vld [vmem:[%s522 + $0x10] sm:$0xff]
      %v526 = vld [vmem:[%s522 + $0x18] sm:$0xff]
      %v527 = vld [vmem:[%s522 + $0x20] sm:$0xff]
      %v528 = vld [vmem:[%s522 + $0x28] sm:$0xff]
      %v529 = vld [vmem:[%s522 + $0x30] sm:$0xff]
      %v530 = vld [vmem:[%s522 + $0x38] sm:$0xff]
      %v531 = vld [vmem:[%s522 + $0x40] sm:$0xff]
      %v532 = vld [vmem:[%s522 + $0x48] sm:$0xff]
      %v533 = vld [vmem:[%s522 + $0x50] sm:$0xff]
      %v534 = vld [vmem:[%s522 + $0x58] sm:$0xff]
      %v535 = vld [vmem:[%s522 + $0x60] sm:$0xff]
      %v536 = vld [vmem:[%s522 + $0x68] sm:$0xff]
      %v537 = vld [vmem:[%s522 + $0x70] sm:$0xff]
      %v538 = vld [vmem:[%s522 + $0x78] sm:$0xff]
      %v539 = vld [vmem:[%s522 + $0x80] sm:$0xff]
      %v540 = vld [vmem:[%s522 + $0x88] sm:$0xff]
      %v541 = vld [vmem:[%s522 + $0x90] sm:$0xff]
      %v542 = vld [vmem:[%s522 + $0x98] sm:$0xff]
      %v543 = vld [vmem:[%s522 + $0xa0] sm:$0xff]
      %v544 = vld [vmem:[%s522 + $0xa8] sm:$0xff]
      %v545 = vld [vmem:[%s522 + $0xb0] sm:$0xff]
      %v546 = vld [vmem:[%s522 + $0xb8] sm:$0xff]
      %v547 = vld [vmem:[%s522 + $0xc0] sm:$0xff]
      %v548 = vld [vmem:[%s522 + $0xc8] sm:$0xff]
      %v549 = vld [vmem:[%s522 + $0xd0] sm:$0xff]
      %v550 = vld [vmem:[%s522 + $0xd8] sm:$0xff]
      %v551 = vld [vmem:[%s522 + $0xe0] sm:$0xff]
      %v552 = vld [vmem:[%s522 + $0xe8] sm:$0xff]
      %v553 = vld [vmem:[%s522 + $0xf0] sm:$0xff]
      %v554 = vld [vmem:[%s522 + $0xf8] sm:$0xff]
      %v587 = vunpack.c.l.b16 %v523
      %v588 = vunpack.c.h.b16 %v523
      %v589 = vunpack.c.l.b16 %v524
      %v590 = vunpack.c.h.b16 %v524
      %v591 = vunpack.c.l.b16 %v525
      %v592 = vunpack.c.h.b16 %v525
      %v593 = vunpack.c.l.b16 %v526
      %v594 = vunpack.c.h.b16 %v526
      %v595 = vunpack.c.l.b16 %v527
      %v596 = vunpack.c.h.b16 %v527
      %v597 = vunpack.c.l.b16 %v528
      %v598 = vunpack.c.h.b16 %v528
      %v599 = vunpack.c.l.b16 %v529
      %v600 = vunpack.c.h.b16 %v529
      %v601 = vunpack.c.l.b16 %v530
      %v602 = vunpack.c.h.b16 %v530
      %v603 = vunpack.c.l.b16 %v531
      %v604 = vunpack.c.h.b16 %v531
      %v605 = vunpack.c.l.b16 %v532
      %v606 = vunpack.c.h.b16 %v532
      %v607 = vunpack.c.l.b16 %v533
      %v608 = vunpack.c.h.b16 %v533
      %v609 = vunpack.c.l.b16 %v534
      %v610 = vunpack.c.h.b16 %v534
      %v611 = vunpack.c.l.b16 %v535
      %v612 = vunpack.c.h.b16 %v535
      %v613 = vunpack.c.l.b16 %v536
      %v614 = vunpack.c.h.b16 %v536
      %v615 = vunpack.c.l.b16 %v537
      %v616 = vunpack.c.h.b16 %v537
      %v617 = vunpack.c.l.b16 %v538
      %v618 = vunpack.c.h.b16 %v538
      %v619 = vunpack.c.l.b16 %v539
      %v620 = vunpack.c.h.b16 %v539
      %v621 = vunpack.c.l.b16 %v540
      %v622 = vunpack.c.h.b16 %v540
      %v623 = vunpack.c.l.b16 %v541
      %v624 = vunpack.c.h.b16 %v541
      %v625 = vunpack.c.l.b16 %v542
      %v626 = vunpack.c.h.b16 %v542
      %v627 = vunpack.c.l.b16 %v543
      %v628 = vunpack.c.h.b16 %v543
      %v629 = vunpack.c.l.b16 %v544
      %v630 = vunpack.c.h.b16 %v544
      %v631 = vunpack.c.l.b16 %v545
      %v632 = vunpack.c.h.b16 %v545
      %v633 = vunpack.c.l.b16 %v546
      %v634 = vunpack.c.h.b16 %v546
      %v635 = vunpack.c.l.b16 %v547
      %v636 = vunpack.c.h.b16 %v547
      %v637 = vunpack.c.l.b16 %v548
      %v638 = vunpack.c.h.b16 %v548
      %v639 = vunpack.c.l.b16 %v549
      %v640 = vunpack.c.h.b16 %v549
      %v641 = vunpack.c.l.b16 %v550
      %v642 = vunpack.c.h.b16 %v550
      %v643 = vunpack.c.l.b16 %v551
      %v644 = vunpack.c.h.b16 %v551
      %v645 = vunpack.c.l.b16 %v552
      %v646 = vunpack.c.h.b16 %v552
      %v647 = vunpack.c.l.b16 %v553
      %v648 = vunpack.c.h.b16 %v553
      %v649 = vunpack.c.l.b16 %v554
      %v650 = vunpack.c.h.b16 %v554
      %v651 = vpack.c.b16 %v589, %v587
      %v652 = vpack.c.b16 %v590, %v588
      %v653 = vpack.c.b16 %v593, %v591
      %v654 = vpack.c.b16 %v594, %v592
      %v655 = vpack.c.b16 %v597, %v595
      %v656 = vpack.c.b16 %v598, %v596
      %v657 = vpack.c.b16 %v601, %v599
      %v658 = vpack.c.b16 %v602, %v600
      %v659 = vpack.c.b16 %v605, %v603
      %v660 = vpack.c.b16 %v606, %v604
      %v661 = vpack.c.b16 %v609, %v607
      %v662 = vpack.c.b16 %v610, %v608
      %v663 = vpack.c.b16 %v613, %v611
      %v664 = vpack.c.b16 %v614, %v612
      %v665 = vpack.c.b16 %v617, %v615
      %v666 = vpack.c.b16 %v618, %v616
      %v667 = vpack.c.b16 %v621, %v619
      %v668 = vpack.c.b16 %v622, %v620
      %v669 = vpack.c.b16 %v625, %v623
      %v670 = vpack.c.b16 %v626, %v624
      %v671 = vpack.c.b16 %v629, %v627
      %v672 = vpack.c.b16 %v630, %v628
      %v673 = vpack.c.b16 %v633, %v631
      %v674 = vpack.c.b16 %v634, %v632
      %v675 = vpack.c.b16 %v637, %v635
      %v676 = vpack.c.b16 %v638, %v636
      %v677 = vpack.c.b16 %v641, %v639
      %v678 = vpack.c.b16 %v642, %v640
      %v679 = vpack.c.b16 %v645, %v643
      %v680 = vpack.c.b16 %v646, %v644
      %v681 = vpack.c.b16 %v649, %v647
      %v682 = vpack.c.b16 %v650, %v648
      %715 = vmatprep.subr.bf16.mxu0 %v666
      %716 = vmatpush1.bf16.msra.mxu0 %v665
      %717 = vmatprep.subr.bf16.mxu0 %v664
      %718 = vmatpush1.bf16.msra.mxu0 %v663
      %719 = vmatprep.subr.bf16.mxu0 %v662
      %720 = vmatpush1.bf16.msra.mxu0 %v661
      %721 = vmatprep.subr.bf16.mxu0 %v660
      %722 = vmatpush1.bf16.msra.mxu0 %v659
      %723 = vmatprep.subr.bf16.mxu0 %v658
      %724 = vmatpush1.bf16.msra.mxu0 %v657
      %725 = vmatprep.subr.bf16.mxu0 %v656
      %726 = vmatpush1.bf16.msra.mxu0 %v655
      %727 = vmatprep.subr.bf16.mxu0 %v654
      %728 = vmatpush1.bf16.msra.mxu0 %v653
      %729 = vmatprep.subr.bf16.mxu0 %v652
      %730 = vmatpush1.bf16.msra.mxu0 %v651
      %731 = vmatprep.subr.bf16.mxu0 %v682
      %732 = vmatpush2.bf16.msra.mxu0 %v681
      %733 = vmatprep.subr.bf16.mxu0 %v680
      %734 = vmatpush2.bf16.msra.mxu0 %v679
      %735 = vmatprep.subr.bf16.mxu0 %v678
      %736 = vmatpush2.bf16.msra.mxu0 %v677
      %737 = vmatprep.subr.bf16.mxu0 %v676
      %738 = vmatpush2.bf16.msra.mxu0 %v675
      %739 = vmatprep.subr.bf16.mxu0 %v674
      %740 = vmatpush2.bf16.msra.mxu0 %v673
      %741 = vmatprep.subr.bf16.mxu0 %v672
      %742 = vmatpush2.bf16.msra.mxu0 %v671
      %743 = vmatprep.subr.bf16.mxu0 %v670
      %744 = vmatpush2.bf16.msra.mxu0 %v669
      %745 = vmatprep.subr.bf16.mxu0 %v668
      %746 = vmatpush2.bf16.msra.mxu0 %v667
      %747 = vmatprep.mubr.bf16.mxu0 %v318
      %748 = vmatmul.mubr.bf16.gmra.mxu0 %v317
      %v749 = vpop.f32.mrf.mxu0
      %v750 = vadd.f32 0.0, %v749
      %v751 = vpop.f32.mrf.mxu0
      %v752 = vadd.f32 0.0, %v751
      %v753 = vpop.f32.mrf.mxu0
      %v754 = vadd.f32 0.0, %v753
      %v755 = vpop.f32.mrf.mxu0
      %v756 = vadd.f32 0.0, %v755
      %757 = vdwg.mxu0
      %s758 = scalar_lea.vmem %s1, 512
      %v759 = vld [vmem:[%s758] sm:$0xff]
      %v760 = vld [vmem:[%s758 + $0x8] sm:$0xff]
      %v761 = vld [vmem:[%s758 + $0x10] sm:$0xff]
      %v762 = vld [vmem:[%s758 + $0x18] sm:$0xff]
      %v763 = vld [vmem:[%s758 + $0x20] sm:$0xff]
      %v764 = vld [vmem:[%s758 + $0x28] sm:$0xff]
      %v765 = vld [vmem:[%s758 + $0x30] sm:$0xff]
      %v766 = vld [vmem:[%s758 + $0x38] sm:$0xff]
      %v767 = vld [vmem:[%s758 + $0x40] sm:$0xff]
      %v768 = vld [vmem:[%s758 + $0x48] sm:$0xff]
      %v769 = vld [vmem:[%s758 + $0x50] sm:$0xff]
      %v770 = vld [vmem:[%s758 + $0x58] sm:$0xff]
      %v771 = vld [vmem:[%s758 + $0x60] sm:$0xff]
      %v772 = vld [vmem:[%s758 + $0x68] sm:$0xff]
      %v773 = vld [vmem:[%s758 + $0x70] sm:$0xff]
      %v774 = vld [vmem:[%s758 + $0x78] sm:$0xff]
      %v775 = vld [vmem:[%s758 + $0x80] sm:$0xff]
      %v776 = vld [vmem:[%s758 + $0x88] sm:$0xff]
      %v777 = vld [vmem:[%s758 + $0x90] sm:$0xff]
      %v778 = vld [vmem:[%s758 + $0x98] sm:$0xff]
      %v779 = vld [vmem:[%s758 + $0xa0] sm:$0xff]
      %v780 = vld [vmem:[%s758 + $0xa8] sm:$0xff]
      %v781 = vld [vmem:[%s758 + $0xb0] sm:$0xff]
      %v782 = vld [vmem:[%s758 + $0xb8] sm:$0xff]
      %v783 = vld [vmem:[%s758 + $0xc0] sm:$0xff]
      %v784 = vld [vmem:[%s758 + $0xc8] sm:$0xff]
      %v785 = vld [vmem:[%s758 + $0xd0] sm:$0xff]
      %v786 = vld [vmem:[%s758 + $0xd8] sm:$0xff]
      %v787 = vld [vmem:[%s758 + $0xe0] sm:$0xff]
      %v788 = vld [vmem:[%s758 + $0xe8] sm:$0xff]
      %v789 = vld [vmem:[%s758 + $0xf0] sm:$0xff]
      %v790 = vld [vmem:[%s758 + $0xf8] sm:$0xff]
      %v823 = vunpack.c.l.b16 %v759
      %v824 = vunpack.c.h.b16 %v759
      %v825 = vunpack.c.l.b16 %v760
      %v826 = vunpack.c.h.b16 %v760
      %v827 = vunpack.c.l.b16 %v761
      %v828 = vunpack.c.h.b16 %v761
      %v829 = vunpack.c.l.b16 %v762
      %v830 = vunpack.c.h.b16 %v762
      %v831 = vunpack.c.l.b16 %v763
      %v832 = vunpack.c.h.b16 %v763
      %v833 = vunpack.c.l.b16 %v764
      %v834 = vunpack.c.h.b16 %v764
      %v835 = vunpack.c.l.b16 %v765
      %v836 = vunpack.c.h.b16 %v765
      %v837 = vunpack.c.l.b16 %v766
      %v838 = vunpack.c.h.b16 %v766
      %v839 = vunpack.c.l.b16 %v767
      %v840 = vunpack.c.h.b16 %v767
      %v841 = vunpack.c.l.b16 %v768
      %v842 = vunpack.c.h.b16 %v768
      %v843 = vunpack.c.l.b16 %v769
      %v844 = vunpack.c.h.b16 %v769
      %v845 = vunpack.c.l.b16 %v770
      %v846 = vunpack.c.h.b16 %v770
      %v847 = vunpack.c.l.b16 %v771
      %v848 = vunpack.c.h.b16 %v771
      %v849 = vunpack.c.l.b16 %v772
      %v850 = vunpack.c.h.b16 %v772
      %v851 = vunpack.c.l.b16 %v773
      %v852 = vunpack.c.h.b16 %v773
      %v853 = vunpack.c.l.b16 %v774
      %v854 = vunpack.c.h.b16 %v774
      %v855 = vunpack.c.l.b16 %v775
      %v856 = vunpack.c.h.b16 %v775
      %v857 = vunpack.c.l.b16 %v776
      %v858 = vunpack.c.h.b16 %v776
      %v859 = vunpack.c.l.b16 %v777
      %v860 = vunpack.c.h.b16 %v777
      %v861 = vunpack.c.l.b16 %v778
      %v862 = vunpack.c.h.b16 %v778
      %v863 = vunpack.c.l.b16 %v779
      %v864 = vunpack.c.h.b16 %v779
      %v865 = vunpack.c.l.b16 %v780
      %v866 = vunpack.c.h.b16 %v780
      %v867 = vunpack.c.l.b16 %v781
      %v868 = vunpack.c.h.b16 %v781
      %v869 = vunpack.c.l.b16 %v782
      %v870 = vunpack.c.h.b16 %v782
      %v871 = vunpack.c.l.b16 %v783
      %v872 = vunpack.c.h.b16 %v783
      %v873 = vunpack.c.l.b16 %v784
      %v874 = vunpack.c.h.b16 %v784
      %v875 = vunpack.c.l.b16 %v785
      %v876 = vunpack.c.h.b16 %v785
      %v877 = vunpack.c.l.b16 %v786
      %v878 = vunpack.c.h.b16 %v786
      %v879 = vunpack.c.l.b16 %v787
      %v880 = vunpack.c.h.b16 %v787
      %v881 = vunpack.c.l.b16 %v788
      %v882 = vunpack.c.h.b16 %v788
      %v883 = vunpack.c.l.b16 %v789
      %v884 = vunpack.c.h.b16 %v789
      %v885 = vunpack.c.l.b16 %v790
      %v886 = vunpack.c.h.b16 %v790
      %v887 = vpack.c.b16 %v825, %v823
      %v888 = vpack.c.b16 %v826, %v824
      %v889 = vpack.c.b16 %v829, %v827
      %v890 = vpack.c.b16 %v830, %v828
      %v891 = vpack.c.b16 %v833, %v831
      %v892 = vpack.c.b16 %v834, %v832
      %v893 = vpack.c.b16 %v837, %v835
      %v894 = vpack.c.b16 %v838, %v836
      %v895 = vpack.c.b16 %v841, %v839
      %v896 = vpack.c.b16 %v842, %v840
      %v897 = vpack.c.b16 %v845, %v843
      %v898 = vpack.c.b16 %v846, %v844
      %v899 = vpack.c.b16 %v849, %v847
      %v900 = vpack.c.b16 %v850, %v848
      %v901 = vpack.c.b16 %v853, %v851
      %v902 = vpack.c.b16 %v854, %v852
      %v903 = vpack.c.b16 %v857, %v855
      %v904 = vpack.c.b16 %v858, %v856
      %v905 = vpack.c.b16 %v861, %v859
      %v906 = vpack.c.b16 %v862, %v860
      %v907 = vpack.c.b16 %v865, %v863
      %v908 = vpack.c.b16 %v866, %v864
      %v909 = vpack.c.b16 %v869, %v867
      %v910 = vpack.c.b16 %v870, %v868
      %v911 = vpack.c.b16 %v873, %v871
      %v912 = vpack.c.b16 %v874, %v872
      %v913 = vpack.c.b16 %v877, %v875
      %v914 = vpack.c.b16 %v878, %v876
      %v915 = vpack.c.b16 %v881, %v879
      %v916 = vpack.c.b16 %v882, %v880
      %v917 = vpack.c.b16 %v885, %v883
      %v918 = vpack.c.b16 %v886, %v884
      %951 = vmatprep.subr.bf16.mxu0 %v902
      %952 = vmatpush1.bf16.msra.mxu0 %v901
      %953 = vmatprep.subr.bf16.mxu0 %v900
      %954 = vmatpush1.bf16.msra.mxu0 %v899
      %955 = vmatprep.subr.bf16.mxu0 %v898
      %956 = vmatpush1.bf16.msra.mxu0 %v897
      %957 = vmatprep.subr.bf16.mxu0 %v896
      %958 = vmatpush1.bf16.msra.mxu0 %v895
      %959 = vmatprep.subr.bf16.mxu0 %v894
      %960 = vmatpush1.bf16.msra.mxu0 %v893
      %961 = vmatprep.subr.bf16.mxu0 %v892
      %962 = vmatpush1.bf16.msra.mxu0 %v891
      %963 = vmatprep.subr.bf16.mxu0 %v890
      %964 = vmatpush1.bf16.msra.mxu0 %v889
      %965 = vmatprep.subr.bf16.mxu0 %v888
      %966 = vmatpush1.bf16.msra.mxu0 %v887
      %967 = vmatprep.subr.bf16.mxu0 %v918
      %968 = vmatpush2.bf16.msra.mxu0 %v917
      %969 = vmatprep.subr.bf16.mxu0 %v916
      %970 = vmatpush2.bf16.msra.mxu0 %v915
      %971 = vmatprep.subr.bf16.mxu0 %v914
      %972 = vmatpush2.bf16.msra.mxu0 %v913
      %973 = vmatprep.subr.bf16.mxu0 %v912
      %974 = vmatpush2.bf16.msra.mxu0 %v911
      %975 = vmatprep.subr.bf16.mxu0 %v910
      %976 = vmatpush2.bf16.msra.mxu0 %v909
      %977 = vmatprep.subr.bf16.mxu0 %v908
      %978 = vmatpush2.bf16.msra.mxu0 %v907
      %979 = vmatprep.subr.bf16.mxu0 %v906
      %980 = vmatpush2.bf16.msra.mxu0 %v905
      %981 = vmatprep.subr.bf16.mxu0 %v904
      %982 = vmatpush2.bf16.msra.mxu0 %v903
      %983 = vmatprep.mubr.bf16.mxu0 %v318
      %984 = vmatmul.mubr.bf16.gmra.mxu0 %v317
      %v985 = vpop.f32.mrf.mxu0
      %v986 = vadd.f32 0.0, %v985
      %v987 = vpop.f32.mrf.mxu0
      %v988 = vadd.f32 0.0, %v987
      %v989 = vpop.f32.mrf.mxu0
      %v990 = vadd.f32 0.0, %v989
      %v991 = vpop.f32.mrf.mxu0
      %v992 = vadd.f32 0.0, %v991
      %993 = vdwg.mxu0
      %vm998 = vcmask 1046528
      %v999 = vrot.slane %v750, 1
      %v1000 = vrot.slane %v754, 1
      %v1001 = vsel %vm998, %v999, %v1000
      %v1002 = vrot.slane %v752, 1
      %v1003 = vrot.slane %v756, 1
      %v1004 = vsel %vm998, %v1002, %v1003
      %v1007 = vadd.f32 %v516, %v1001
      %v1008 = vadd.f32 %v518, %v1004
      %vm1013 = vcmask 1045504
      %v1014 = vrot.slane %v986, 2
      %v1015 = vrot.slane %v990, 2
      %v1016 = vsel %vm1013, %v1014, %v1015
      %v1017 = vrot.slane %v988, 2
      %v1018 = vrot.slane %v992, 2
      %v1019 = vsel %vm1013, %v1017, %v1018
      %v1022 = vadd.f32 %v1007, %v1016
      %v1023 = vadd.f32 %v1008, %v1019
      %v1024 = vld [vmem:[%s2] sm:$0x3]
      %v1026 = vlaneseq
      %v1027 = vshrl.u32 %v1026, 7
      %v1028 = vsub.s32 0, %v1027
      %v1029 = vrot.slane %v1024, %v1028
      %v1030 = vlaneseq
      %v1031 = vshrl.u32 %v1030, 7
      %v1032 = vsub.s32 1, %v1031
      %v1033 = vrot.slane %v1024, %v1032
      %v1036 = vadd.f32 %v1022, %v1029
      %v1037 = vadd.f32 %v1023, %v1033
      %v1038 = vadd.f32 %v1036, %v1037
      %1039 = vadd.xlane.f32.xlu0 %v1038
      %v1040 = vpop.xlane.xlu0 %1039
      %v1041 = vrcp.pop 256.0
      %v1042 = vmul.f32 %v1040, %v1041
      %v1043 = vsub.f32 %v1036, %v1042
      %v1044 = vsub.f32 %v1037, %v1042
      %v1045 = vmul.f32 %v1043, %v1043
      %v1046 = vmul.f32 %v1044, %v1044
      %v1047 = vadd.f32 %v1045, %v1046
      %1048 = vadd.xlane.f32.xlu0 %v1047
      %v1049 = vpop.xlane.xlu0 %1048
      %v1050 = vmul.f32 %v1049, %v1041
      %v1051 = vadd.f32 %v1050, 1e-05
      %v1052 = vrsqrt.pop %v1051
      %v1053 = vmul.f32 %v1043, %v1052
      %v1054 = vmul.f32 %v1044, %v1052
      %v1055 = vld [vmem:[%s3] sm:$0x3]
      %v1057 = vlaneseq
      %v1058 = vshrl.u32 %v1057, 7
      %v1059 = vsub.s32 0, %v1058
      %v1060 = vrot.slane %v1055, %v1059
      %v1061 = vlaneseq
      %v1062 = vshrl.u32 %v1061, 7
      %v1063 = vsub.s32 1, %v1062
      %v1064 = vrot.slane %v1055, %v1063
      %v1067 = vmul.f32 %v1053, %v1060
      %v1068 = vmul.f32 %v1054, %v1064
      %v1069 = vld [vmem:[%s4] sm:$0x3]
      %v1071 = vlaneseq
      %v1072 = vshrl.u32 %v1071, 7
      %v1073 = vsub.s32 0, %v1072
      %v1074 = vrot.slane %v1069, %v1073
      %v1075 = vlaneseq
      %v1076 = vshrl.u32 %v1075, 7
      %v1077 = vsub.s32 1, %v1076
      %v1078 = vrot.slane %v1069, %v1077
      %v1081 = vadd.f32 %v1067, %v1074
      %v1082 = vadd.f32 %v1068, %v1078
      %v1083 = vld [vmem:[%s5] sm:$0xff]
      %v1084 = vld [vmem:[%s5 + $0x8] sm:$0xff]
      %v1085 = vld [vmem:[%s5 + $0x10] sm:$0xff]
      %v1086 = vld [vmem:[%s5 + $0x18] sm:$0xff]
      %v1087 = vld [vmem:[%s5 + $0x20] sm:$0xff]
      %v1088 = vld [vmem:[%s5 + $0x28] sm:$0xff]
      %v1089 = vld [vmem:[%s5 + $0x30] sm:$0xff]
      %v1090 = vld [vmem:[%s5 + $0x38] sm:$0xff]
      %v1091 = vld [vmem:[%s5 + $0x40] sm:$0xff]
      %v1092 = vld [vmem:[%s5 + $0x48] sm:$0xff]
      %v1093 = vld [vmem:[%s5 + $0x50] sm:$0xff]
      %v1094 = vld [vmem:[%s5 + $0x58] sm:$0xff]
      %v1095 = vld [vmem:[%s5 + $0x60] sm:$0xff]
      %v1096 = vld [vmem:[%s5 + $0x68] sm:$0xff]
      %v1097 = vld [vmem:[%s5 + $0x70] sm:$0xff]
      %v1098 = vld [vmem:[%s5 + $0x78] sm:$0xff]
      %v1099 = vld [vmem:[%s5 + $0x80] sm:$0xff]
      %v1100 = vld [vmem:[%s5 + $0x88] sm:$0xff]
      %v1101 = vld [vmem:[%s5 + $0x90] sm:$0xff]
      %v1102 = vld [vmem:[%s5 + $0x98] sm:$0xff]
      %v1103 = vld [vmem:[%s5 + $0xa0] sm:$0xff]
      %v1104 = vld [vmem:[%s5 + $0xa8] sm:$0xff]
      %v1105 = vld [vmem:[%s5 + $0xb0] sm:$0xff]
      %v1106 = vld [vmem:[%s5 + $0xb8] sm:$0xff]
      %v1107 = vld [vmem:[%s5 + $0xc0] sm:$0xff]
      %v1108 = vld [vmem:[%s5 + $0xc8] sm:$0xff]
      %v1109 = vld [vmem:[%s5 + $0xd0] sm:$0xff]
      %v1110 = vld [vmem:[%s5 + $0xd8] sm:$0xff]
      %v1111 = vld [vmem:[%s5 + $0xe0] sm:$0xff]
      %v1112 = vld [vmem:[%s5 + $0xe8] sm:$0xff]
      %v1113 = vld [vmem:[%s5 + $0xf0] sm:$0xff]
      %v1114 = vld [vmem:[%s5 + $0xf8] sm:$0xff]
      %v1115 = vld [vmem:[%s6] sm:$0x1]
      %v1117 = vlaneseq
      %v1118 = vshrl.u32 %v1117, 7
      %v1119 = vsub.s32 0, %v1118
      %v1120 = vrot.slane %v1115, %v1119
      %1122 = vmatprep.subr.mxu0 0.0
      %1123 = vmatpush1.msra.mxu0 %v1098
      %1124 = vmatprep.subr.mxu0 0.0
      %1125 = vmatpush1.msra.mxu0 %v1097
      %1126 = vmatprep.subr.mxu0 0.0
      %1127 = vmatpush1.msra.mxu0 %v1096
      %1128 = vmatprep.subr.mxu0 0.0
      %1129 = vmatpush1.msra.mxu0 %v1095
      %1130 = vmatprep.subr.mxu0 0.0
      %1131 = vmatpush1.msra.mxu0 %v1094
      %1132 = vmatprep.subr.mxu0 0.0
      %1133 = vmatpush1.msra.mxu0 %v1093
      %1134 = vmatprep.subr.mxu0 0.0
      %1135 = vmatpush1.msra.mxu0 %v1092
      %1136 = vmatprep.subr.mxu0 0.0
      %1137 = vmatpush1.msra.mxu0 %v1091
      %1138 = vmatprep.subr.mxu0 0.0
      %1139 = vmatpush1.msra.mxu0 %v1090
      %1140 = vmatprep.subr.mxu0 0.0
      %1141 = vmatpush1.msra.mxu0 %v1089
      %1142 = vmatprep.subr.mxu0 0.0
      %1143 = vmatpush1.msra.mxu0 %v1088
      %1144 = vmatprep.subr.mxu0 0.0
      %1145 = vmatpush1.msra.mxu0 %v1087
      %1146 = vmatprep.subr.mxu0 0.0
      %1147 = vmatpush1.msra.mxu0 %v1086
      %1148 = vmatprep.subr.mxu0 0.0
      %1149 = vmatpush1.msra.mxu0 %v1085
      %1150 = vmatprep.subr.mxu0 0.0
      %1151 = vmatpush1.msra.mxu0 %v1084
      %1152 = vmatprep.subr.mxu0 0.0
      %1153 = vmatpush1.msra.mxu0 %v1083
      %1154 = vmatprep.subr.mxu0 0.0
      %1155 = vmatpush2.msra.mxu0 %v1114
      %1156 = vmatprep.subr.mxu0 0.0
      %1157 = vmatpush2.msra.mxu0 %v1113
      %1158 = vmatprep.subr.mxu0 0.0
      %1159 = vmatpush2.msra.mxu0 %v1112
      %1160 = vmatprep.subr.mxu0 0.0
      %1161 = vmatpush2.msra.mxu0 %v1111
      %1162 = vmatprep.subr.mxu0 0.0
      %1163 = vmatpush2.msra.mxu0 %v1110
      %1164 = vmatprep.subr.mxu0 0.0
      %1165 = vmatpush2.msra.mxu0 %v1109
      %1166 = vmatprep.subr.mxu0 0.0
      %1167 = vmatpush2.msra.mxu0 %v1108
      %1168 = vmatprep.subr.mxu0 0.0
      %1169 = vmatpush2.msra.mxu0 %v1107
      %1170 = vmatprep.subr.mxu0 0.0
      %1171 = vmatpush2.msra.mxu0 %v1106
      %1172 = vmatprep.subr.mxu0 0.0
      %1173 = vmatpush2.msra.mxu0 %v1105
      %1174 = vmatprep.subr.mxu0 0.0
      %1175 = vmatpush2.msra.mxu0 %v1104
      %1176 = vmatprep.subr.mxu0 0.0
      %1177 = vmatpush2.msra.mxu0 %v1103
      %1178 = vmatprep.subr.mxu0 0.0
      %1179 = vmatpush2.msra.mxu0 %v1102
      %1180 = vmatprep.subr.mxu0 0.0
      %1181 = vmatpush2.msra.mxu0 %v1101
      %1182 = vmatprep.subr.mxu0 0.0
      %1183 = vmatpush2.msra.mxu0 %v1100
      %1184 = vmatprep.subr.mxu0 0.0
      %1185 = vmatpush2.msra.mxu0 %v1099
      %1186 = vmatprep.mubr.f32.mxu0 %v1082
      %1187 = vmatmul.mubr.f32.gmra.mxu0 %v1081
      %v1188 = vpop.f32.mrf.mxu0
      %v1189 = vadd.f32 %v1120, %v1188
      %v1190 = vpop.f32.mrf.mxu0
      %1191 = vdwg.mxu0
      %1192 = vst [vmem:[%s276] sm:$0xff] %v1189
      %p1193 = scmp.lt.s32.totalorder %s18, 1
      %s1194 = scalar_select %p1193, %s18, 1
      %s1195 = smul.addr %s1194, 8
      %s1196 = scalar_lea.vmem %s7, %s1195
      // Predicated region
      $region49: #{sins_forward.4} parent=47 // pred_check
        %p1197 = pneg %p188
      $region50: #{sins_forward.4} parent=47 // pred_check_branch
        %1199 = sbr.rel (%p1197) target = $region52
      $region51: #{sins_forward.4} parent=47 // pred_region
        _
      $region52: #{sins_forward.4} parent=47 // pred_fallthru
        _
    $region48: #{sins_forward.4} parent=5 // pred_fallthru
      _
    %p1200 = scmp.le.s32.totalorder 2, %s13
    // Predicated region
    $region53: #{sins_forward.4} parent=5 // pred_check
      %p1201 = pneg %p1200
    $region54: #{sins_forward.4} parent=5 // pred_check_branch
      %1203 = sbr.rel (%p1201) target = $region56
    $region55: #{sins_forward.4} parent=5 // pred_region
      %s1204 = ssub.s32 %s13, 2
      // Predicated region
      $region57: #{sins_forward.4} parent=55 // pred_check
        %p1205 = pneg %p194
      $region58: #{sins_forward.4} parent=55 // pred_check_branch
        %1207 = sbr.rel (%p1205) target = $region60
      $region59: #{sins_forward.4} parent=55 // pred_region
        %p1208 = scmp.lt.s32.totalorder %s19, 1
        %s1209 = scalar_select %p1208, %s19, 1
        %s1210 = smul.addr %s1209, 8
        %s1211 = scalar_lea.vmem %s7, %s1210
      $region60: #{sins_forward.4} parent=55 // pred_fallthru
        _
    $region56: #{sins_forward.4} parent=5 // pred_fallthru
      _
  $region6: #{sins_forward.4} parent=0 // loop_footer
    %s17 = sadd.s32 1, %s13
  $region7: #{sins_forward.4} parent=0 // loop_footer_branch
    %12 = sbr.rel target = $region3
  $region8: #{sins_forward.4} parent=0 // loop_exit
    _

// kernel: sins_forward.3
$region0: #{sins_forward.3}
  #allocation0 [shape = 'u32[]', space=smem, size = 0x4, offset = 0x4, fixed_abs, tag = 'smem constant byte address 0x4 - core index']
  #allocation1 [shape = 'u32[144,128]{1,0:T(1,128)}', space=vmem, size = 0x12000, scoped, tag = 'internal scratch']
  %s0 = inlined_call_operand.vmem [shape: bf16[2,10,128], index: 0, kind: input, shape index: {}]
  %s1 = inlined_call_operand.vmem [shape: bf16[3,128,256], index: 1, kind: input, shape index: {}]
  %s2 = inlined_call_operand.vmem [shape: f32[1,256], index: 2, kind: input, shape index: {}]
  %s3 = inlined_call_operand.vmem [shape: f32[1,256], index: 3, kind: input, shape index: {}]
  %s4 = inlined_call_operand.vmem [shape: f32[1,256], index: 4, kind: input, shape index: {}]
  %s5 = inlined_call_operand.vmem [shape: f32[256,256], index: 5, kind: input, shape index: {}]
  %s6 = inlined_call_operand.vmem [shape: bf16[2,8,256], index: 6, kind: output, shape index: {}]
  %s7 = sld [smem:[#allocation0]]
  $region57: #{sins_forward.3} parent=0
    _
  %s9 = ssub.s32 1, %s7
  %s10 = scalar_select 0, %s9, %s7
  loop: start=0, step=1, limit=4
  $region2: #{sins_forward.3} parent=0 // loop_pre_header
    _
  $region3: #{sins_forward.3} parent=0 // loop_header
    %s12 = sphi 0, %s16
    %p13 = scmp.ge.s32.totalorder %s12, 4
    %s22 = sphi 0, %s24
    %s25 = sphi 0, %s22
    %s26 = sphi 0, %s25
    %s42 = sphi 0, %s26
    %s46 = sphi 0, %s46
    %s48 = sphi 0, %s46
    %s49 = sphi 0, %s48
    %s63 = sphi 0, %s49
    %s67 = sphi 0, %s67
    %s69 = sphi 0, %s67
    %s70 = sphi 0, %s69
    %s84 = sphi 0, %s70
    %s88 = sphi 0, %s88
    %s90 = sphi 0, %s88
    %s91 = sphi 0, %s90
    %s105 = sphi 0, %s91
    %s109 = sphi 0, %s109
    %s111 = sphi 0, %s109
    %s112 = sphi 0, %s111
    %s126 = sphi 0, %s112
    %s130 = sphi 0, %s130
    %s132 = sphi 0, %s130
    %s133 = sphi 0, %s132
    %s147 = sphi 0, %s133
    %s153 = sphi 0, %s155
    %s156 = sphi 0, %s153
    %s157 = sphi 0, %s156
    %s173 = sphi 0, %s157
  $region4: #{sins_forward.3} parent=0 // loop_header_branch
    %15 = sbr.rel (%p13) target = $region8
  $region5: #{sins_forward.3} parent=0 // loop_body
    %s17 = ssub.s32 %s12, 1
    %s18 = ssub.s32 %s12, 2
    %s19 = sadd.s32 %s12, 1
    %s20 = ssub.s32 %s12, %s19
    %p21 = scmp.eq.s32.totalorder %s20, 0
    %s23 = sadd.s32 %s22, 1
    %s24 = scalar_select %p21, %s22, %s23
    %p27 = pneg %p21
    %p28 = scmp.eq.s32.totalorder %s12, 1
    %p29 = por %p27, %p28
    %p30 = scmp.ne.s32.totalorder %s22, %s25
    %p31 = scmp.eq.s32.totalorder %s12, 0
    %p32 = por %p30, %p31
    %p33 = scmp.ne.s32.totalorder %s22, %s25
    %p34 = scmp.eq.s32.totalorder %s17, 1
    %p35 = por %p33, %p34
    %p36 = scmp.ne.s32.totalorder %s25, %s26
    %p37 = scmp.eq.s32.totalorder %s17, 0
    %p38 = por %p36, %p37
    %p39 = scmp.ne.s32.totalorder %s25, %s26
    %p40 = scmp.eq.s32.totalorder %s18, 1
    %p41 = por %p39, %p40
    %p43 = scmp.ne.s32.totalorder %s26, %s42
    %p44 = scmp.eq.s32.totalorder %s18, 0
    %p45 = por %p43, %p44
    %s47 = sadd.s32 %s46, 1
    %p50 = scmp.eq.s32.totalorder %s12, 1
    %p51 = scmp.ne.s32.totalorder %s46, %s48
    %p52 = scmp.eq.s32.totalorder %s12, 0
    %p53 = por %p51, %p52
    %p54 = scmp.ne.s32.totalorder %s46, %s48
    %p55 = scmp.eq.s32.totalorder %s17, 1
    %p56 = por %p54, %p55
    %p57 = scmp.ne.s32.totalorder %s48, %s49
    %p58 = scmp.eq.s32.totalorder %s17, 0
    %p59 = por %p57, %p58
    %p60 = scmp.ne.s32.totalorder %s48, %s49
    %p61 = scmp.eq.s32.totalorder %s18, 1
    %p62 = por %p60, %p61
    %p64 = scmp.ne.s32.totalorder %s49, %s63
    %p65 = scmp.eq.s32.totalorder %s18, 0
    %p66 = por %p64, %p65
    %s68 = sadd.s32 %s67, 1
    %p71 = scmp.eq.s32.totalorder %s12, 1
    %p72 = scmp.ne.s32.totalorder %s67, %s69
    %p73 = scmp.eq.s32.totalorder %s12, 0
    %p74 = por %p72, %p73
    %p75 = scmp.ne.s32.totalorder %s67, %s69
    %p76 = scmp.eq.s32.totalorder %s17, 1
    %p77 = por %p75, %p76
    %p78 = scmp.ne.s32.totalorder %s69, %s70
    %p79 = scmp.eq.s32.totalorder %s17, 0
    %p80 = por %p78, %p79
    %p81 = scmp.ne.s32.totalorder %s69, %s70
    %p82 = scmp.eq.s32.totalorder %s18, 1
    %p83 = por %p81, %p82
    %p85 = scmp.ne.s32.totalorder %s70, %s84
    %p86 = scmp.eq.s32.totalorder %s18, 0
    %p87 = por %p85, %p86
    %s89 = sadd.s32 %s88, 1
    %p92 = scmp.eq.s32.totalorder %s12, 1
    %p93 = scmp.ne.s32.totalorder %s88, %s90
    %p94 = scmp.eq.s32.totalorder %s12, 0
    %p95 = por %p93, %p94
    %p96 = scmp.ne.s32.totalorder %s88, %s90
    %p97 = scmp.eq.s32.totalorder %s17, 1
    %p98 = por %p96, %p97
    %p99 = scmp.ne.s32.totalorder %s90, %s91
    %p100 = scmp.eq.s32.totalorder %s17, 0
    %p101 = por %p99, %p100
    %p102 = scmp.ne.s32.totalorder %s90, %s91
    %p103 = scmp.eq.s32.totalorder %s18, 1
    %p104 = por %p102, %p103
    %p106 = scmp.ne.s32.totalorder %s91, %s105
    %p107 = scmp.eq.s32.totalorder %s18, 0
    %p108 = por %p106, %p107
    %s110 = sadd.s32 %s109, 1
    %p113 = scmp.eq.s32.totalorder %s12, 1
    %p114 = scmp.ne.s32.totalorder %s109, %s111
    %p115 = scmp.eq.s32.totalorder %s12, 0
    %p116 = por %p114, %p115
    %p117 = scmp.ne.s32.totalorder %s109, %s111
    %p118 = scmp.eq.s32.totalorder %s17, 1
    %p119 = por %p117, %p118
    %p120 = scmp.ne.s32.totalorder %s111, %s112
    %p121 = scmp.eq.s32.totalorder %s17, 0
    %p122 = por %p120, %p121
    %p123 = scmp.ne.s32.totalorder %s111, %s112
    %p124 = scmp.eq.s32.totalorder %s18, 1
    %p125 = por %p123, %p124
    %p127 = scmp.ne.s32.totalorder %s112, %s126
    %p128 = scmp.eq.s32.totalorder %s18, 0
    %p129 = por %p127, %p128
    %s131 = sadd.s32 %s130, 1
    %p134 = scmp.eq.s32.totalorder %s12, 1
    %p135 = scmp.ne.s32.totalorder %s130, %s132
    %p136 = scmp.eq.s32.totalorder %s12, 0
    %p137 = por %p135, %p136
    %p138 = scmp.ne.s32.totalorder %s130, %s132
    %p139 = scmp.eq.s32.totalorder %s17, 1
    %p140 = por %p138, %p139
    %p141 = scmp.ne.s32.totalorder %s132, %s133
    %p142 = scmp.eq.s32.totalorder %s17, 0
    %p143 = por %p141, %p142
    %p144 = scmp.ne.s32.totalorder %s132, %s133
    %p145 = scmp.eq.s32.totalorder %s18, 1
    %p146 = por %p144, %p145
    %p148 = scmp.ne.s32.totalorder %s133, %s147
    %p149 = scmp.eq.s32.totalorder %s18, 0
    %p150 = por %p148, %p149
    %s151 = ssub.s32 %s12, %s19
    %p152 = scmp.eq.s32.totalorder %s151, 0
    %s154 = sadd.s32 %s153, 1
    %s155 = scalar_select %p152, %s153, %s154
    %p158 = pneg %p152
    %p159 = scmp.eq.s32.totalorder %s12, 1
    %p160 = por %p158, %p159
    %p161 = scmp.ne.s32.totalorder %s153, %s156
    %p162 = scmp.eq.s32.totalorder %s12, 0
    %p163 = por %p161, %p162
    %p164 = scmp.ne.s32.totalorder %s153, %s156
    %p165 = scmp.eq.s32.totalorder %s17, 1
    %p166 = por %p164, %p165
    %p167 = scmp.ne.s32.totalorder %s156, %s157
    %p168 = scmp.eq.s32.totalorder %s17, 0
    %p169 = por %p167, %p168
    %p170 = scmp.ne.s32.totalorder %s156, %s157
    %p171 = scmp.eq.s32.totalorder %s18, 1
    %p172 = por %p170, %p171
    %p174 = scmp.ne.s32.totalorder %s157, %s173
    %p175 = scmp.eq.s32.totalorder %s18, 0
    %p176 = por %p174, %p175
    %p177 = scmp.le.s32.totalorder 1, %s12
    %p178 = scmp.lt.s32.totalorder %s12, 3
    %p179 = pnand %p177, %p178
    %p180 = pneg %p179
    // Predicated region
    $region9: #{sins_forward.3} parent=5 // pred_check
      _
    $region10: #{sins_forward.3} parent=5 // pred_check_branch
      %182 = sbr.rel (%p179) target = $region12
    $region11: #{sins_forward.3} parent=5 // pred_region
      %s183 = ssub.s32 %s12, 1
      // Predicated region
      $region13: #{sins_forward.3} parent=11 // pred_check
        %p184 = pneg %p59
      $region14: #{sins_forward.3} parent=11 // pred_check_branch
        %186 = sbr.rel (%p184) target = $region16
      $region15: #{sins_forward.3} parent=11 // pred_region
        _
      $region16: #{sins_forward.3} parent=11 // pred_fallthru
        _
      // Predicated region
      $region17: #{sins_forward.3} parent=11 // pred_check
        %p187 = pneg %p80
      $region18: #{sins_forward.3} parent=11 // pred_check_branch
        %189 = sbr.rel (%p187) target = $region20
      $region19: #{sins_forward.3} parent=11 // pred_region
        _
      $region20: #{sins_forward.3} parent=11 // pred_fallthru
        _
      // Predicated region
      $region21: #{sins_forward.3} parent=11 // pred_check
        %p190 = pneg %p101
      $region22: #{sins_forward.3} parent=11 // pred_check_branch
        %192 = sbr.rel (%p190) target = $region24
      $region23: #{sins_forward.3} parent=11 // pred_region
        _
      $region24: #{sins_forward.3} parent=11 // pred_fallthru
        _
      // Predicated region
      $region25: #{sins_forward.3} parent=11 // pred_check
        %p193 = pneg %p122
      $region26: #{sins_forward.3} parent=11 // pred_check_branch
        %195 = sbr.rel (%p193) target = $region28
      $region27: #{sins_forward.3} parent=11 // pred_region
        _
      $region28: #{sins_forward.3} parent=11 // pred_fallthru
        _
      // Predicated region
      $region29: #{sins_forward.3} parent=11 // pred_check
        %p196 = pneg %p143
      $region30: #{sins_forward.3} parent=11 // pred_check_branch
        %198 = sbr.rel (%p196) target = $region32
      $region31: #{sins_forward.3} parent=11 // pred_region
        _
      $region32: #{sins_forward.3} parent=11 // pred_fallthru
        _
    $region12: #{sins_forward.3} parent=5 // pred_fallthru
      _
    %p199 = scmp.lt.s32.totalorder %s12, 2
    // Predicated region
    $region33: #{sins_forward.3} parent=5 // pred_check
      %p200 = pneg %p199
    $region34: #{sins_forward.3} parent=5 // pred_check_branch
      %202 = sbr.rel (%p200) target = $region36
    $region35: #{sins_forward.3} parent=5 // pred_region
      // Predicated region
      $region37: #{sins_forward.3} parent=35 // pred_check
        %p203 = pneg %p32
      $region38: #{sins_forward.3} parent=35 // pred_check_branch
        %205 = sbr.rel (%p203) target = $region40
      $region39: #{sins_forward.3} parent=35 // pred_region
        %p206 = scmp.lt.s32.totalorder %s12, 1
        %s207 = scalar_select %p206, %s12, 1
        %s208 = smul.addr %s207, 2
        %s209 = smul.addr %s208, 4
        %s210 = scalar_lea.vmem %s0, %s209
      $region40: #{sins_forward.3} parent=35 // pred_fallthru
        _
    $region36: #{sins_forward.3} parent=5 // pred_fallthru
      _
    %p211 = scmp.le.s32.totalorder 1, %s12
    %p212 = scmp.lt.s32.totalorder %s12, 3
    %p213 = pnand %p211, %p212
    %p214 = pneg %p213
    // Predicated region
    $region41: #{sins_forward.3} parent=5 // pred_check
      _
    $region42: #{sins_forward.3} parent=5 // pred_check_branch
      %216 = sbr.rel (%p213) target = $region44
    $region43: #{sins_forward.3} parent=5 // pred_region
      %s217 = ssub.s32 %s12, 1
      %p218 = scmp.lt.s32.totalorder %s17, 1
      %s219 = scalar_select %p218, %s17, 1
      %s220 = smul.addr %s219, 2
      %s221 = smul.addr %s220, 4
      %s222 = scalar_lea.vmem %s0, %s221
      %p223 = pneg %p38
      %p224 = pneg %p35
      %p225 = pneg %p59
      %p226 = pneg %p56
      %p227 = pneg %p80
      %p228 = pneg %p77
      %p229 = pneg %p101
      %p230 = pneg %p98
      %p231 = pneg %p122
      %p232 = pneg %p119
      %p233 = pneg %p143
      %p234 = pneg %p140
      %p235 = pneg %p169
      %p236 = pneg %p166
      %p237 = scmp.lt.s32.totalorder %s17, 1
      %s238 = scalar_select %p237, %s17, 1
      %s239 = smul.addr %s238, 2
      %s240 = smul.addr %s239, 4
      %s241 = scalar_lea.vmem %s6, %s240
      %p242 = scmp.lt.s32.totalorder %s17, 1
      %s243 = scalar_select %p242, %s17, 1
      %s244 = smul.addr %s243, 2
      %s245 = smul.addr %s244, 4
      %s246 = scalar_lea.vmem %s0, %s245
      %p247 = scmp.lt.s32.totalorder %s17, 1
      %s248 = scalar_select %p247, %s17, 1
      %s249 = smul.addr %s248, 2
      %s250 = smul.addr %s249, 4
      %s251 = scalar_lea.vmem %s6, %s250
      %v253 = vld [vmem:[%s246] sm:$0xf]
      %v254 = vld [vmem:[%s246 + $0x4] sm:$0x1]
      %v255 = vld [vmem:[%s1] sm:$0xff]
      %v256 = vld [vmem:[%s1 + $0x8] sm:$0xff]
      %v257 = vld [vmem:[%s1 + $0x10] sm:$0xff]
      %v258 = vld [vmem:[%s1 + $0x18] sm:$0xff]
      %v259 = vld [vmem:[%s1 + $0x20] sm:$0xff]
      %v260 = vld [vmem:[%s1 + $0x28] sm:$0xff]
      %v261 = vld [vmem:[%s1 + $0x30] sm:$0xff]
      %v262 = vld [vmem:[%s1 + $0x38] sm:$0xff]
      %v263 = vld [vmem:[%s1 + $0x40] sm:$0xff]
      %v264 = vld [vmem:[%s1 + $0x48] sm:$0xff]
      %v265 = vld [vmem:[%s1 + $0x50] sm:$0xff]
      %v266 = vld [vmem:[%s1 + $0x58] sm:$0xff]
      %v267 = vld [vmem:[%s1 + $0x60] sm:$0xff]
      %v268 = vld [vmem:[%s1 + $0x68] sm:$0xff]
      %v269 = vld [vmem:[%s1 + $0x70] sm:$0xff]
      %v270 = vld [vmem:[%s1 + $0x78] sm:$0xff]
      %v273 = vunpack.c.l.b16 %v253
      %v274 = vunpack.c.l.b16 %v254
      %v275 = vpack.c.b16 %v274, %v273
      %v293 = vunpack.c.l.b16 %v255
      %v294 = vunpack.c.h.b16 %v255
      %v295 = vunpack.c.l.b16 %v256
      %v296 = vunpack.c.h.b16 %v256
      %v297 = vunpack.c.l.b16 %v257
      %v298 = vunpack.c.h.b16 %v257
      %v299 = vunpack.c.l.b16 %v258
      %v300 = vunpack.c.h.b16 %v258
      %v301 = vunpack.c.l.b16 %v259
      %v302 = vunpack.c.h.b16 %v259
      %v303 = vunpack.c.l.b16 %v260
      %v304 = vunpack.c.h.b16 %v260
      %v305 = vunpack.c.l.b16 %v261
      %v306 = vunpack.c.h.b16 %v261
      %v307 = vunpack.c.l.b16 %v262
      %v308 = vunpack.c.h.b16 %v262
      %v309 = vunpack.c.l.b16 %v263
      %v310 = vunpack.c.h.b16 %v263
      %v311 = vunpack.c.l.b16 %v264
      %v312 = vunpack.c.h.b16 %v264
      %v313 = vunpack.c.l.b16 %v265
      %v314 = vunpack.c.h.b16 %v265
      %v315 = vunpack.c.l.b16 %v266
      %v316 = vunpack.c.h.b16 %v266
      %v317 = vunpack.c.l.b16 %v267
      %v318 = vunpack.c.h.b16 %v267
      %v319 = vunpack.c.l.b16 %v268
      %v320 = vunpack.c.h.b16 %v268
      %v321 = vunpack.c.l.b16 %v269
      %v322 = vunpack.c.h.b16 %v269
      %v323 = vunpack.c.l.b16 %v270
      %v324 = vunpack.c.h.b16 %v270
      %v325 = vpack.c.b16 %v295, %v293
      %v326 = vpack.c.b16 %v296, %v294
      %v327 = vpack.c.b16 %v299, %v297
      %v328 = vpack.c.b16 %v300, %v298
      %v329 = vpack.c.b16 %v303, %v301
      %v330 = vpack.c.b16 %v304, %v302
      %v331 = vpack.c.b16 %v307, %v305
      %v332 = vpack.c.b16 %v308, %v306
      %v333 = vpack.c.b16 %v311, %v309
      %v334 = vpack.c.b16 %v312, %v310
      %v335 = vpack.c.b16 %v315, %v313
      %v336 = vpack.c.b16 %v316, %v314
      %v337 = vpack.c.b16 %v319, %v317
      %v338 = vpack.c.b16 %v320, %v318
      %v339 = vpack.c.b16 %v323, %v321
      %v340 = vpack.c.b16 %v324, %v322
      %357 = vmatprep.subr.bf16.mxu0 %v340
      %358 = vmatpush1.bf16.msra.mxu0 %v339
      %359 = vmatprep.subr.bf16.mxu0 %v338
      %360 = vmatpush1.bf16.msra.mxu0 %v337
      %361 = vmatprep.subr.bf16.mxu0 %v336
      %362 = vmatpush1.bf16.msra.mxu0 %v335
      %363 = vmatprep.subr.bf16.mxu0 %v334
      %364 = vmatpush1.bf16.msra.mxu0 %v333
      %365 = vmatprep.subr.bf16.mxu0 %v332
      %366 = vmatpush1.bf16.msra.mxu0 %v331
      %367 = vmatprep.subr.bf16.mxu0 %v330
      %368 = vmatpush1.bf16.msra.mxu0 %v329
      %369 = vmatprep.subr.bf16.mxu0 %v328
      %370 = vmatpush1.bf16.msra.mxu0 %v327
      %371 = vmatprep.subr.bf16.mxu0 %v326
      %372 = vmatpush1.bf16.msra.mxu0 %v325
      %373 = vmatprep.subr.bf16.mxu0 0
      %374 = vmatpush2.bf16.msra.mxu0 0
      %375 = vmatprep.subr.bf16.mxu0 0
      %376 = vmatpush2.bf16.msra.mxu0 0
      %377 = vmatprep.subr.bf16.mxu0 0
      %378 = vmatpush2.bf16.msra.mxu0 0
      %379 = vmatprep.subr.bf16.mxu0 0
      %380 = vmatpush2.bf16.msra.mxu0 0
      %381 = vmatprep.subr.bf16.mxu0 0
      %382 = vmatpush2.bf16.msra.mxu0 0
      %383 = vmatprep.subr.bf16.mxu0 0
      %384 = vmatpush2.bf16.msra.mxu0 0
      %385 = vmatprep.subr.bf16.mxu0 0
      %386 = vmatpush2.bf16.msra.mxu0 0
      %387 = vmatprep.subr.bf16.mxu0 0
      %388 = vmatpush2.bf16.msra.mxu0 0
      %389 = vmatprep.mubr.bf16.mxu0 0
      %390 = vmatmul.mubr.bf16.gmra.mxu0 %v275
      %v391 = vpop.f32.mrf.mxu0
      %v392 = vadd.f32 0.0, %v391
      %v393 = vpop.f32.mrf.mxu0
      %v394 = vadd.f32 0.0, %v393
      %v395 = vpop.f32.mrf.mxu0
      %v396 = vpop.f32.mrf.mxu0
      %397 = vdwg.mxu0
      %s398 = scalar_lea.vmem %s1, 128
      %v399 = vld [vmem:[%s398] sm:$0xff]
      %v400 = vld [vmem:[%s398 + $0x8] sm:$0xff]
      %v401 = vld [vmem:[%s398 + $0x10] sm:$0xff]
      %v402 = vld [vmem:[%s398 + $0x18] sm:$0xff]
      %v403 = vld [vmem:[%s398 + $0x20] sm:$0xff]
      %v404 = vld [vmem:[%s398 + $0x28] sm:$0xff]
      %v405 = vld [vmem:[%s398 + $0x30] sm:$0xff]
      %v406 = vld [vmem:[%s398 + $0x38] sm:$0xff]
      %v407 = vld [vmem:[%s398 + $0x40] sm:$0xff]
      %v408 = vld [vmem:[%s398 + $0x48] sm:$0xff]
      %v409 = vld [vmem:[%s398 + $0x50] sm:$0xff]
      %v410 = vld [vmem:[%s398 + $0x58] sm:$0xff]
      %v411 = vld [vmem:[%s398 + $0x60] sm:$0xff]
      %v412 = vld [vmem:[%s398 + $0x68] sm:$0xff]
      %v413 = vld [vmem:[%s398 + $0x70] sm:$0xff]
      %v414 = vld [vmem:[%s398 + $0x78] sm:$0xff]
      %v431 = vunpack.c.l.b16 %v399
      %v432 = vunpack.c.h.b16 %v399
      %v433 = vunpack.c.l.b16 %v400
      %v434 = vunpack.c.h.b16 %v400
      %v435 = vunpack.c.l.b16 %v401
      %v436 = vunpack.c.h.b16 %v401
      %v437 = vunpack.c.l.b16 %v402
      %v438 = vunpack.c.h.b16 %v402
      %v439 = vunpack.c.l.b16 %v403
      %v440 = vunpack.c.h.b16 %v403
      %v441 = vunpack.c.l.b16 %v404
      %v442 = vunpack.c.h.b16 %v404
      %v443 = vunpack.c.l.b16 %v405
      %v444 = vunpack.c.h.b16 %v405
      %v445 = vunpack.c.l.b16 %v406
      %v446 = vunpack.c.h.b16 %v406
      %v447 = vunpack.c.l.b16 %v407
      %v448 = vunpack.c.h.b16 %v407
      %v449 = vunpack.c.l.b16 %v408
      %v450 = vunpack.c.h.b16 %v408
      %v451 = vunpack.c.l.b16 %v409
      %v452 = vunpack.c.h.b16 %v409
      %v453 = vunpack.c.l.b16 %v410
      %v454 = vunpack.c.h.b16 %v410
      %v455 = vunpack.c.l.b16 %v411
      %v456 = vunpack.c.h.b16 %v411
      %v457 = vunpack.c.l.b16 %v412
      %v458 = vunpack.c.h.b16 %v412
      %v459 = vunpack.c.l.b16 %v413
      %v460 = vunpack.c.h.b16 %v413
      %v461 = vunpack.c.l.b16 %v414
      %v462 = vunpack.c.h.b16 %v414
      %v463 = vpack.c.b16 %v433, %v431
      %v464 = vpack.c.b16 %v434, %v432
      %v465 = vpack.c.b16 %v437, %v435
      %v466 = vpack.c.b16 %v438, %v436
      %v467 = vpack.c.b16 %v441, %v439
      %v468 = vpack.c.b16 %v442, %v440
      %v469 = vpack.c.b16 %v445, %v443
      %v470 = vpack.c.b16 %v446, %v444
      %v471 = vpack.c.b16 %v449, %v447
      %v472 = vpack.c.b16 %v450, %v448
      %v473 = vpack.c.b16 %v453, %v451
      %v474 = vpack.c.b16 %v454, %v452
      %v475 = vpack.c.b16 %v457, %v455
      %v476 = vpack.c.b16 %v458, %v456
      %v477 = vpack.c.b16 %v461, %v459
      %v478 = vpack.c.b16 %v462, %v460
      %495 = vmatprep.subr.bf16.mxu0 %v478
      %496 = vmatpush1.bf16.msra.mxu0 %v477
      %497 = vmatprep.subr.bf16.mxu0 %v476
      %498 = vmatpush1.bf16.msra.mxu0 %v475
      %499 = vmatprep.subr.bf16.mxu0 %v474
      %500 = vmatpush1.bf16.msra.mxu0 %v473
      %501 = vmatprep.subr.bf16.mxu0 %v472
      %502 = vmatpush1.bf16.msra.mxu0 %v471
      %503 = vmatprep.subr.bf16.mxu0 %v470
      %504 = vmatpush1.bf16.msra.mxu0 %v469
      %505 = vmatprep.subr.bf16.mxu0 %v468
      %506 = vmatpush1.bf16.msra.mxu0 %v467
      %507 = vmatprep.subr.bf16.mxu0 %v466
      %508 = vmatpush1.bf16.msra.mxu0 %v465
      %509 = vmatprep.subr.bf16.mxu0 %v464
      %510 = vmatpush1.bf16.msra.mxu0 %v463
      %511 = vmatprep.subr.bf16.mxu0 0
      %512 = vmatpush2.bf16.msra.mxu0 0
      %513 = vmatprep.subr.bf16.mxu0 0
      %514 = vmatpush2.bf16.msra.mxu0 0
      %515 = vmatprep.subr.bf16.mxu0 0
      %516 = vmatpush2.bf16.msra.mxu0 0
      %517 = vmatprep.subr.bf16.mxu0 0
      %518 = vmatpush2.bf16.msra.mxu0 0
      %519 = vmatprep.subr.bf16.mxu0 0
      %520 = vmatpush2.bf16.msra.mxu0 0
      %521 = vmatprep.subr.bf16.mxu0 0
      %522 = vmatpush2.bf16.msra.mxu0 0
      %523 = vmatprep.subr.bf16.mxu0 0
      %524 = vmatpush2.bf16.msra.mxu0 0
      %525 = vmatprep.subr.bf16.mxu0 0
      %526 = vmatpush2.bf16.msra.mxu0 0
      %527 = vmatprep.mubr.bf16.mxu0 0
      %528 = vmatmul.mubr.bf16.gmra.mxu0 %v275
      %v529 = vpop.f32.mrf.mxu0
      %v530 = vadd.f32 0.0, %v529
      %v531 = vpop.f32.mrf.mxu0
      %v532 = vadd.f32 0.0, %v531
      %v533 = vpop.f32.mrf.mxu0
      %v534 = vadd.f32 0.0, %v533
      %v535 = vpop.f32.mrf.mxu0
      %v536 = vadd.f32 0.0, %v535
      %537 = vdwg.mxu0
      %s538 = scalar_lea.vmem %s1, 256
      %v539 = vld [vmem:[%s538] sm:$0xff]
      %v540 = vld [vmem:[%s538 + $0x8] sm:$0xff]
      %v541 = vld [vmem:[%s538 + $0x10] sm:$0xff]
      %v542 = vld [vmem:[%s538 + $0x18] sm:$0xff]
      %v543 = vld [vmem:[%s538 + $0x20] sm:$0xff]
      %v544 = vld [vmem:[%s538 + $0x28] sm:$0xff]
      %v545 = vld [vmem:[%s538 + $0x30] sm:$0xff]
      %v546 = vld [vmem:[%s538 + $0x38] sm:$0xff]
      %v547 = vld [vmem:[%s538 + $0x40] sm:$0xff]
      %v548 = vld [vmem:[%s538 + $0x48] sm:$0xff]
      %v549 = vld [vmem:[%s538 + $0x50] sm:$0xff]
      %v550 = vld [vmem:[%s538 + $0x58] sm:$0xff]
      %v551 = vld [vmem:[%s538 + $0x60] sm:$0xff]
      %v552 = vld [vmem:[%s538 + $0x68] sm:$0xff]
      %v553 = vld [vmem:[%s538 + $0x70] sm:$0xff]
      %v554 = vld [vmem:[%s538 + $0x78] sm:$0xff]
      %v571 = vunpack.c.l.b16 %v539
      %v572 = vunpack.c.h.b16 %v539
      %v573 = vunpack.c.l.b16 %v540
      %v574 = vunpack.c.h.b16 %v540
      %v575 = vunpack.c.l.b16 %v541
      %v576 = vunpack.c.h.b16 %v541
      %v577 = vunpack.c.l.b16 %v542
      %v578 = vunpack.c.h.b16 %v542
      %v579 = vunpack.c.l.b16 %v543
      %v580 = vunpack.c.h.b16 %v543
      %v581 = vunpack.c.l.b16 %v544
      %v582 = vunpack.c.h.b16 %v544
      %v583 = vunpack.c.l.b16 %v545
      %v584 = vunpack.c.h.b16 %v545
      %v585 = vunpack.c.l.b16 %v546
      %v586 = vunpack.c.h.b16 %v546
      %v587 = vunpack.c.l.b16 %v547
      %v588 = vunpack.c.h.b16 %v547
      %v589 = vunpack.c.l.b16 %v548
      %v590 = vunpack.c.h.b16 %v548
      %v591 = vunpack.c.l.b16 %v549
      %v592 = vunpack.c.h.b16 %v549
      %v593 = vunpack.c.l.b16 %v550
      %v594 = vunpack.c.h.b16 %v550
      %v595 = vunpack.c.l.b16 %v551
      %v596 = vunpack.c.h.b16 %v551
      %v597 = vunpack.c.l.b16 %v552
      %v598 = vunpack.c.h.b16 %v552
      %v599 = vunpack.c.l.b16 %v553
      %v600 = vunpack.c.h.b16 %v553
      %v601 = vunpack.c.l.b16 %v554
      %v602 = vunpack.c.h.b16 %v554
      %v603 = vpack.c.b16 %v573, %v571
      %v604 = vpack.c.b16 %v574, %v572
      %v605 = vpack.c.b16 %v577, %v575
      %v606 = vpack.c.b16 %v578, %v576
      %v607 = vpack.c.b16 %v581, %v579
      %v608 = vpack.c.b16 %v582, %v580
      %v609 = vpack.c.b16 %v585, %v583
      %v610 = vpack.c.b16 %v586, %v584
      %v611 = vpack.c.b16 %v589, %v587
      %v612 = vpack.c.b16 %v590, %v588
      %v613 = vpack.c.b16 %v593, %v591
      %v614 = vpack.c.b16 %v594, %v592
      %v615 = vpack.c.b16 %v597, %v595
      %v616 = vpack.c.b16 %v598, %v596
      %v617 = vpack.c.b16 %v601, %v599
      %v618 = vpack.c.b16 %v602, %v600
      %635 = vmatprep.subr.bf16.mxu0 %v618
      %636 = vmatpush1.bf16.msra.mxu0 %v617
      %637 = vmatprep.subr.bf16.mxu0 %v616
      %638 = vmatpush1.bf16.msra.mxu0 %v615
      %639 = vmatprep.subr.bf16.mxu0 %v614
      %640 = vmatpush1.bf16.msra.mxu0 %v613
      %641 = vmatprep.subr.bf16.mxu0 %v612
      %642 = vmatpush1.bf16.msra.mxu0 %v611
      %643 = vmatprep.subr.bf16.mxu0 %v610
      %644 = vmatpush1.bf16.msra.mxu0 %v609
      %645 = vmatprep.subr.bf16.mxu0 %v608
      %646 = vmatpush1.bf16.msra.mxu0 %v607
      %647 = vmatprep.subr.bf16.mxu0 %v606
      %648 = vmatpush1.bf16.msra.mxu0 %v605
      %649 = vmatprep.subr.bf16.mxu0 %v604
      %650 = vmatpush1.bf16.msra.mxu0 %v603
      %651 = vmatprep.subr.bf16.mxu0 0
      %652 = vmatpush2.bf16.msra.mxu0 0
      %653 = vmatprep.subr.bf16.mxu0 0
      %654 = vmatpush2.bf16.msra.mxu0 0
      %655 = vmatprep.subr.bf16.mxu0 0
      %656 = vmatpush2.bf16.msra.mxu0 0
      %657 = vmatprep.subr.bf16.mxu0 0
      %658 = vmatpush2.bf16.msra.mxu0 0
      %659 = vmatprep.subr.bf16.mxu0 0
      %660 = vmatpush2.bf16.msra.mxu0 0
      %661 = vmatprep.subr.bf16.mxu0 0
      %662 = vmatpush2.bf16.msra.mxu0 0
      %663 = vmatprep.subr.bf16.mxu0 0
      %664 = vmatpush2.bf16.msra.mxu0 0
      %665 = vmatprep.subr.bf16.mxu0 0
      %666 = vmatpush2.bf16.msra.mxu0 0
      %667 = vmatprep.mubr.bf16.mxu0 0
      %668 = vmatmul.mubr.bf16.gmra.mxu0 %v275
      %v669 = vpop.f32.mrf.mxu0
      %v670 = vadd.f32 0.0, %v669
      %v671 = vpop.f32.mrf.mxu0
      %v672 = vadd.f32 0.0, %v671
      %v673 = vpop.f32.mrf.mxu0
      %v674 = vadd.f32 0.0, %v673
      %v675 = vpop.f32.mrf.mxu0
      %v676 = vadd.f32 0.0, %v675
      %677 = vdwg.mxu0
      %vm682 = vcmask 1046528
      %v683 = vrot.slane %v530, 1
      %v684 = vrot.slane %v534, 1
      %v685 = vsel %vm682, %v683, %v684
      %v686 = vrot.slane %v532, 1
      %v687 = vrot.slane %v536, 1
      %v688 = vsel %vm682, %v686, %v687
      %v691 = vadd.f32 %v392, %v685
      %v692 = vadd.f32 %v394, %v688
      %vm697 = vcmask 1045504
      %v698 = vrot.slane %v670, 2
      %v699 = vrot.slane %v674, 2
      %v700 = vsel %vm697, %v698, %v699
      %v701 = vrot.slane %v672, 2
      %v702 = vrot.slane %v676, 2
      %v703 = vsel %vm697, %v701, %v702
      %v706 = vadd.f32 %v691, %v700
      %v707 = vadd.f32 %v692, %v703
      %v708 = vld [vmem:[%s2] sm:$0x3]
      %v710 = vlaneseq
      %v711 = vshrl.u32 %v710, 7
      %v712 = vsub.s32 0, %v711
      %v713 = vrot.slane %v708, %v712
      %v714 = vlaneseq
      %v715 = vshrl.u32 %v714, 7
      %v716 = vsub.s32 1, %v715
      %v717 = vrot.slane %v708, %v716
      %v720 = vadd.f32 %v706, %v713
      %v721 = vadd.f32 %v707, %v717
      %v722 = vrot.slane %v720, 4
      %v723 = vadd.f32 %v720, %v722
      %v724 = vrot.slane %v723, 2
      %v725 = vadd.f32 %v723, %v724
      %v726 = vrot.slane %v725, 1
      %v727 = vadd.f32 %v725, %v726
      %v728 = vrot.slane %v721, 4
      %v729 = vadd.f32 %v721, %v728
      %v730 = vrot.slane %v729, 2
      %v731 = vadd.f32 %v729, %v730
      %v732 = vrot.slane %v731, 1
      %v733 = vadd.f32 %v731, %v732
      %v734 = vld [vmem:[%s5] sm:$0xff]
      %v735 = vld [vmem:[%s5 + $0x8] sm:$0xff]
      %v736 = vld [vmem:[%s5 + $0x10] sm:$0xff]
      %v737 = vld [vmem:[%s5 + $0x18] sm:$0xff]
      %v738 = vld [vmem:[%s5 + $0x20] sm:$0xff]
      %v739 = vld [vmem:[%s5 + $0x28] sm:$0xff]
      %v740 = vld [vmem:[%s5 + $0x30] sm:$0xff]
      %v741 = vld [vmem:[%s5 + $0x38] sm:$0xff]
      %v742 = vld [vmem:[%s5 + $0x40] sm:$0xff]
      %v743 = vld [vmem:[%s5 + $0x48] sm:$0xff]
      %v744 = vld [vmem:[%s5 + $0x50] sm:$0xff]
      %v745 = vld [vmem:[%s5 + $0x58] sm:$0xff]
      %v746 = vld [vmem:[%s5 + $0x60] sm:$0xff]
      %v747 = vld [vmem:[%s5 + $0x68] sm:$0xff]
      %v748 = vld [vmem:[%s5 + $0x70] sm:$0xff]
      %v749 = vld [vmem:[%s5 + $0x78] sm:$0xff]
      %v750 = vld [vmem:[%s5 + $0x80] sm:$0xff]
      %v751 = vld [vmem:[%s5 + $0x88] sm:$0xff]
      %v752 = vld [vmem:[%s5 + $0x90] sm:$0xff]
      %v753 = vld [vmem:[%s5 + $0x98] sm:$0xff]
      %v754 = vld [vmem:[%s5 + $0xa0] sm:$0xff]
      %v755 = vld [vmem:[%s5 + $0xa8] sm:$0xff]
      %v756 = vld [vmem:[%s5 + $0xb0] sm:$0xff]
      %v757 = vld [vmem:[%s5 + $0xb8] sm:$0xff]
      %v758 = vld [vmem:[%s5 + $0xc0] sm:$0xff]
      %v759 = vld [vmem:[%s5 + $0xc8] sm:$0xff]
      %v760 = vld [vmem:[%s5 + $0xd0] sm:$0xff]
      %v761 = vld [vmem:[%s5 + $0xd8] sm:$0xff]
      %v762 = vld [vmem:[%s5 + $0xe0] sm:$0xff]
      %v763 = vld [vmem:[%s5 + $0xe8] sm:$0xff]
      %v764 = vld [vmem:[%s5 + $0xf0] sm:$0xff]
      %v765 = vld [vmem:[%s5 + $0xf8] sm:$0xff]
      %v766 = vld [vmem:[%s5 + $0x100] sm:$0xff]
      %v767 = vld [vmem:[%s5 + $0x108] sm:$0xff]
      %v768 = vld [vmem:[%s5 + $0x110] sm:$0xff]
      %v769 = vld [vmem:[%s5 + $0x118] sm:$0xff]
      %v770 = vld [vmem:[%s5 + $0x120] sm:$0xff]
      %v771 = vld [vmem:[%s5 + $0x128] sm:$0xff]
      %v772 = vld [vmem:[%s5 + $0x130] sm:$0xff]
      %v773 = vld [vmem:[%s5 + $0x138] sm:$0xff]
      %v774 = vld [vmem:[%s5 + $0x140] sm:$0xff]
      %v775 = vld [vmem:[%s5 + $0x148] sm:$0xff]
      %v776 = vld [vmem:[%s5 + $0x150] sm:$0xff]
      %v777 = vld [vmem:[%s5 + $0x158] sm:$0xff]
      %v778 = vld [vmem:[%s5 + $0x160] sm:$0xff]
      %v779 = vld [vmem:[%s5 + $0x168] sm:$0xff]
      %v780 = vld [vmem:[%s5 + $0x170] sm:$0xff]
      %v781 = vld [vmem:[%s5 + $0x178] sm:$0xff]
      %v782 = vld [vmem:[%s5 + $0x180] sm:$0xff]
      %v783 = vld [vmem:[%s5 + $0x188] sm:$0xff]
      %v784 = vld [vmem:[%s5 + $0x190] sm:$0xff]
      %v785 = vld [vmem:[%s5 + $0x198] sm:$0xff]
      %v786 = vld [vmem:[%s5 + $0x1a0] sm:$0xff]
      %v787 = vld [vmem:[%s5 + $0x1a8] sm:$0xff]
      %v788 = vld [vmem:[%s5 + $0x1b0] sm:$0xff]
      %v789 = vld [vmem:[%s5 + $0x1b8] sm:$0xff]
      %v790 = vld [vmem:[%s5 + $0x1c0] sm:$0xff]
      %v791 = vld [vmem:[%s5 + $0x1c8] sm:$0xff]
      %v792 = vld [vmem:[%s5 + $0x1d0] sm:$0xff]
      %v793 = vld [vmem:[%s5 + $0x1d8] sm:$0xff]
      %v794 = vld [vmem:[%s5 + $0x1e0] sm:$0xff]
      %v795 = vld [vmem:[%s5 + $0x1e8] sm:$0xff]
      %v796 = vld [vmem:[%s5 + $0x1f0] sm:$0xff]
      %v797 = vld [vmem:[%s5 + $0x1f8] sm:$0xff]
      %798 = vmatprep.subr.mxu0 %v765
      %799 = vmatpush1.msra.mxu0 %v764
      %800 = vmatprep.subr.mxu0 %v763
      %801 = vmatpush1.msra.mxu0 %v762
      %802 = vmatprep.subr.mxu0 %v761
      %803 = vmatpush1.msra.mxu0 %v760
      %804 = vmatprep.subr.mxu0 %v759
      %805 = vmatpush1.msra.mxu0 %v758
      %806 = vmatprep.subr.mxu0 %v757
      %807 = vmatpush1.msra.mxu0 %v756
      %808 = vmatprep.subr.mxu0 %v755
      %809 = vmatpush1.msra.mxu0 %v754
      %810 = vmatprep.subr.mxu0 %v753
      %811 = vmatpush1.msra.mxu0 %v752
      %812 = vmatprep.subr.mxu0 %v751
      %813 = vmatpush1.msra.mxu0 %v750
      %814 = vmatprep.subr.mxu0 %v749
      %815 = vmatpush1.msra.mxu0 %v748
      %816 = vmatprep.subr.mxu0 %v747
      %817 = vmatpush1.msra.mxu0 %v746
      %818 = vmatprep.subr.mxu0 %v745
      %819 = vmatpush1.msra.mxu0 %v744
      %820 = vmatprep.subr.mxu0 %v743
      %821 = vmatpush1.msra.mxu0 %v742
      %822 = vmatprep.subr.mxu0 %v741
      %823 = vmatpush1.msra.mxu0 %v740
      %824 = vmatprep.subr.mxu0 %v739
      %825 = vmatpush1.msra.mxu0 %v738
      %826 = vmatprep.subr.mxu0 %v737
      %827 = vmatpush1.msra.mxu0 %v736
      %828 = vmatprep.subr.mxu0 %v735
      %829 = vmatpush1.msra.mxu0 %v734
      %830 = vmatprep.subr.mxu0 %v797
      %831 = vmatpush2.msra.mxu0 %v796
      %832 = vmatprep.subr.mxu0 %v795
      %833 = vmatpush2.msra.mxu0 %v794
      %834 = vmatprep.subr.mxu0 %v793
      %835 = vmatpush2.msra.mxu0 %v792
      %836 = vmatprep.subr.mxu0 %v791
      %837 = vmatpush2.msra.mxu0 %v790
      %838 = vmatprep.subr.mxu0 %v789
      %839 = vmatpush2.msra.mxu0 %v788
      %840 = vmatprep.subr.mxu0 %v787
      %841 = vmatpush2.msra.mxu0 %v786
      %842 = vmatprep.subr.mxu0 %v785
      %843 = vmatpush2.msra.mxu0 %v784
      %844 = vmatprep.subr.mxu0 %v783
      %845 = vmatpush2.msra.mxu0 %v782
      %846 = vmatprep.subr.mxu0 %v781
      %847 = vmatpush2.msra.mxu0 %v780
      %848 = vmatprep.subr.mxu0 %v779
      %849 = vmatpush2.msra.mxu0 %v778
      %850 = vmatprep.subr.mxu0 %v777
      %851 = vmatpush2.msra.mxu0 %v776
      %852 = vmatprep.subr.mxu0 %v775
      %853 = vmatpush2.msra.mxu0 %v774
      %854 = vmatprep.subr.mxu0 %v773
      %855 = vmatpush2.msra.mxu0 %v772
      %856 = vmatprep.subr.mxu0 %v771
      %857 = vmatpush2.msra.mxu0 %v770
      %858 = vmatprep.subr.mxu0 %v769
      %859 = vmatpush2.msra.mxu0 %v768
      %860 = vmatprep.subr.mxu0 %v767
      %861 = vmatpush2.msra.mxu0 %v766
      %862 = vmatprep.mubr.f32.mxu0 %v733
      %863 = vmatmul.mubr.f32.gmra.mxu0 %v727
      %v864 = vpop.f32.mrf.mxu0
      %v865 = vadd.f32 0.0, %v864
      %v866 = vpop.f32.mrf.mxu0
      %v867 = vadd.f32 0.0, %v866
      %868 = vdwg.mxu0
      %v869 = vmul.f32 %v865, 0.001953125
      %v870 = vmul.f32 %v867, 0.001953125
      %v871 = vlaneseq
      %v872 = vshrl.u32 %v871, 7
      %v873 = vsub.s32 0, %v872
      %v874 = vrot.slane %v869, %v873
      %v875 = vlaneseq
      %v876 = vshrl.u32 %v875, 7
      %v877 = vsub.s32 0, %v876
      %v878 = vrot.slane %v870, %v877
      %v879 = vsub.f32 %v720, %v874
      %v880 = vsub.f32 %v721, %v878
      %v881 = vmul.f32 %v879, %v879
      %v882 = vmul.f32 %v880, %v880
      %v883 = vrot.slane %v881, 4
      %v884 = vadd.f32 %v881, %v883
      %v885 = vrot.slane %v884, 2
      %v886 = vadd.f32 %v884, %v885
      %v887 = vrot.slane %v886, 1
      %v888 = vadd.f32 %v886, %v887
      %v889 = vrot.slane %v882, 4
      %v890 = vadd.f32 %v882, %v889
      %v891 = vrot.slane %v890, 2
      %v892 = vadd.f32 %v890, %v891
      %v893 = vrot.slane %v892, 1
      %v894 = vadd.f32 %v892, %v893
      %895 = vmatprep.subr.mxu0 %v765
      %896 = vmatpush1.msra.mxu0 %v764
      %897 = vmatprep.subr.mxu0 %v763
      %898 = vmatpush1.msra.mxu0 %v762
      %899 = vmatprep.subr.mxu0 %v761
      %900 = vmatpush1.msra.mxu0 %v760
      %901 = vmatprep.subr.mxu0 %v759
      %902 = vmatpush1.msra.mxu0 %v758
      %903 = vmatprep.subr.mxu0 %v757
      %904 = vmatpush1.msra.mxu0 %v756
      %905 = vmatprep.subr.mxu0 %v755
      %906 = vmatpush1.msra.mxu0 %v754
      %907 = vmatprep.subr.mxu0 %v753
      %908 = vmatpush1.msra.mxu0 %v752
      %909 = vmatprep.subr.mxu0 %v751
      %910 = vmatpush1.msra.mxu0 %v750
      %911 = vmatprep.subr.mxu0 %v749
      %912 = vmatpush1.msra.mxu0 %v748
      %913 = vmatprep.subr.mxu0 %v747
      %914 = vmatpush1.msra.mxu0 %v746
      %915 = vmatprep.subr.mxu0 %v745
      %916 = vmatpush1.msra.mxu0 %v744
      %917 = vmatprep.subr.mxu0 %v743
      %918 = vmatpush1.msra.mxu0 %v742
      %919 = vmatprep.subr.mxu0 %v741
      %920 = vmatpush1.msra.mxu0 %v740
      %921 = vmatprep.subr.mxu0 %v739
      %922 = vmatpush1.msra.mxu0 %v738
      %923 = vmatprep.subr.mxu0 %v737
      %924 = vmatpush1.msra.mxu0 %v736
      %925 = vmatprep.subr.mxu0 %v735
      %926 = vmatpush1.msra.mxu0 %v734
      %927 = vmatprep.subr.mxu0 %v797
      %928 = vmatpush2.msra.mxu0 %v796
      %929 = vmatprep.subr.mxu0 %v795
      %930 = vmatpush2.msra.mxu0 %v794
      %931 = vmatprep.subr.mxu0 %v793
      %932 = vmatpush2.msra.mxu0 %v792
      %933 = vmatprep.subr.mxu0 %v791
      %934 = vmatpush2.msra.mxu0 %v790
      %935 = vmatprep.subr.mxu0 %v789
      %936 = vmatpush2.msra.mxu0 %v788
      %937 = vmatprep.subr.mxu0 %v787
      %938 = vmatpush2.msra.mxu0 %v786
      %939 = vmatprep.subr.mxu0 %v785
      %940 = vmatpush2.msra.mxu0 %v784
      %941 = vmatprep.subr.mxu0 %v783
      %942 = vmatpush2.msra.mxu0 %v782
      %943 = vmatprep.subr.mxu0 %v781
      %944 = vmatpush2.msra.mxu0 %v780
      %945 = vmatprep.subr.mxu0 %v779
      %946 = vmatpush2.msra.mxu0 %v778
      %947 = vmatprep.subr.mxu0 %v777
      %948 = vmatpush2.msra.mxu0 %v776
      %949 = vmatprep.subr.mxu0 %v775
      %950 = vmatpush2.msra.mxu0 %v774
      %951 = vmatprep.subr.mxu0 %v773
      %952 = vmatpush2.msra.mxu0 %v772
      %953 = vmatprep.subr.mxu0 %v771
      %954 = vmatpush2.msra.mxu0 %v770
      %955 = vmatprep.subr.mxu0 %v769
      %956 = vmatpush2.msra.mxu0 %v768
      %957 = vmatprep.subr.mxu0 %v767
      %958 = vmatpush2.msra.mxu0 %v766
      %959 = vmatprep.mubr.f32.mxu0 %v894
      %960 = vmatmul.mubr.f32.gmra.mxu0 %v888
      %v961 = vpop.f32.mrf.mxu0
      %v962 = vadd.f32 0.0, %v961
      %v963 = vpop.f32.mrf.mxu0
      %v964 = vadd.f32 0.0, %v963
      %965 = vdwg.mxu0
      %v966 = vmul.f32 %v962, 0.001953125
      %v967 = vmul.f32 %v964, 0.001953125
      %v968 = vadd.f32 %v966, 1e-05
      %v969 = vadd.f32 %v967, 1e-05
      %v970 = vrsqrt.pop %v968
      %v971 = vrsqrt.pop %v969
      %v972 = vlaneseq
      %v973 = vshrl.u32 %v972, 7
      %v974 = vsub.s32 0, %v973
      %v975 = vrot.slane %v970, %v974
      %v976 = vlaneseq
      %v977 = vshrl.u32 %v976, 7
      %v978 = vsub.s32 0, %v977
      %v979 = vrot.slane %v971, %v978
      %v980 = vmul.f32 %v879, %v975
      %v981 = vmul.f32 %v880, %v979
      %v982 = vld [vmem:[%s3] sm:$0x3]
      %v984 = vlaneseq
      %v985 = vshrl.u32 %v984, 7
      %v986 = vsub.s32 0, %v985
      %v987 = vrot.slane %v982, %v986
      %v988 = vlaneseq
      %v989 = vshrl.u32 %v988, 7
      %v990 = vsub.s32 1, %v989
      %v991 = vrot.slane %v982, %v990
      %v994 = vmul.f32 %v980, %v987
      %v995 = vmul.f32 %v981, %v991
      %v996 = vld [vmem:[%s4] sm:$0x3]
      %v998 = vlaneseq
      %v999 = vshrl.u32 %v998, 7
      %v1000 = vsub.s32 0, %v999
      %v1001 = vrot.slane %v996, %v1000
      %v1002 = vlaneseq
      %v1003 = vshrl.u32 %v1002, 7
      %v1004 = vsub.s32 1, %v1003
      %v1005 = vrot.slane %v996, %v1004
      %v1008 = vadd.f32 %v994, %v1001
      %v1009 = vadd.f32 %v995, %v1005
      %vm1010 = vcmp.ge.f32.partialorder %v1008, 0.0
      %vm1011 = vcmp.ge.f32.partialorder %v1009, 0.0
      %v1012 = vmul.f32 %v1008, 0.01
      %v1013 = vmul.f32 %v1009, 0.01
      %v1014 = vsel %vm1010, %v1008, %v1012
      %v1015 = vsel %vm1011, %v1009, %v1013
      %v1016 = vpack.c.bf16 %v1014, %v1014
      %v1017 = vpack.c.bf16 %v1015, %v1015
      %v1020 = vunpack.c.l.b16 %v1016
      %v1021 = vunpack.c.l.b16 %v1017
      %v1022 = vpack.c.b16 %v1021, %v1020
      %1024 = vst [vmem:[%s251] sm:$0xff] %v1022
      %p1025 = scmp.lt.s32.totalorder %s17, 1
      %s1026 = scalar_select %p1025, %s17, 1
      %s1027 = smul.addr %s1026, 2
      %s1028 = smul.addr %s1027, 4
      %s1029 = scalar_lea.vmem %s6, %s1028
      // Predicated region
      $region45: #{sins_forward.3} parent=43 // pred_check
        %p1030 = pneg %p166
      $region46: #{sins_forward.3} parent=43 // pred_check_branch
        %1032 = sbr.rel (%p1030) target = $region48
      $region47: #{sins_forward.3} parent=43 // pred_region
        _
      $region48: #{sins_forward.3} parent=43 // pred_fallthru
        _
    $region44: #{sins_forward.3} parent=5 // pred_fallthru
      _
    %p1033 = scmp.le.s32.totalorder 2, %s12
    // Predicated region
    $region49: #{sins_forward.3} parent=5 // pred_check
      %p1034 = pneg %p1033
    $region50: #{sins_forward.3} parent=5 // pred_check_branch
      %1036 = sbr.rel (%p1034) target = $region52
    $region51: #{sins_forward.3} parent=5 // pred_region
      %s1037 = ssub.s32 %s12, 2
      // Predicated region
      $region53: #{sins_forward.3} parent=51 // pred_check
        %p1038 = pneg %p172
      $region54: #{sins_forward.3} parent=51 // pred_check_branch
        %1040 = sbr.rel (%p1038) target = $region56
      $region55: #{sins_forward.3} parent=51 // pred_region
        %p1041 = scmp.lt.s32.totalorder %s18, 1
        %s1042 = scalar_select %p1041, %s18, 1
        %s1043 = smul.addr %s1042, 2
        %s1044 = smul.addr %s1043, 4
        %s1045 = scalar_lea.vmem %s6, %s1044
      $region56: #{sins_forward.3} parent=51 // pred_fallthru
        _
    $region52: #{sins_forward.3} parent=5 // pred_fallthru
      _
  $region6: #{sins_forward.3} parent=0 // loop_footer
    %s16 = sadd.s32 1, %s12
  $region7: #{sins_forward.3} parent=0 // loop_footer_branch
    %11 = sbr.rel target = $region3
  $region8: #{sins_forward.3} parent=0 // loop_exit
    _

// kernel: reverse.5
$region0: #{reverse.5}
  %s0 = inlined_call_operand.vmem [shape: f32[2,8,15], index: 0, kind: input, shape index: {}]
  %s1 = inlined_call_operand.vmem [shape: f32[2,8,15], index: 1, kind: output, shape index: {}]
  %v2 = vlaneseq
  %v3 = vsub.s32 14, %v2
  %4 = vset.pattern.permute.xlu0 %v3
  $region1: #{reverse.5} parent=0
    #allocation0 [shape = 'u8[8192]{0}', space=vmem, size = 0x2000, scoped, tag = 'operand span for operand 0']
    #allocation1 [shape = 'u8[8192]{0}', space=vmem, size = 0x2000, scoped, tag = 'operand span for operand 1']
    // Predicated region
    $region2: #{reverse.5} parent=1 // pred_check
      _
    $region3: #{reverse.5} parent=1 // pred_check_branch
      %6 = sbr.rel (0) target = $region5
    $region4: #{reverse.5} parent=1 // pred_region
      // Predicated region
      $region6: #{reverse.5} parent=4 // pred_check
        _
      $region7: #{reverse.5} parent=4 // pred_check_branch
        %8 = sbr.rel (0) target = $region9
      $region8: #{reverse.5} parent=4 // pred_region
        // Predicated region
        $region21: #{reverse.5} parent=8 // pred_check
          _
        $region22: #{reverse.5} parent=8 // pred_check_branch
          %26 = sbr.rel (0) target = $region24
        $region23: #{reverse.5} parent=8 // pred_region
          loop: start=0, step=1, limit=1
          $region25: #{reverse.5} parent=23 // loop_pre_header
            _
          $region26: #{reverse.5} parent=23 // loop_header
            %s28 = sphi 0, %s32
            %p29 = scmp.ge.s32.totalorder %s28, 1
            %s33 = sphi %s0, %s0
            %s34 = sphi [#allocation0], [#allocation0]
          $region27: #{reverse.5} parent=23 // loop_header_branch
            %31 = sbr.rel (%p29) target = $region31
          $region28: #{reverse.5} parent=23 // loop_body
            %v35 = vld [vmem:[%s33] sm:$0xff]
            %36 = vst [vmem:[%s34] sm:$0xff] %v35
            %v37 = vld [vmem:[%s33 + $0x8] sm:$0xff]
            %38 = vst [vmem:[%s34 + $0x8] sm:$0xff] %v37
          $region29: #{reverse.5} parent=23 // loop_footer
            %s32 = sadd.s32 1, %s28
          $region30: #{reverse.5} parent=23 // loop_footer_branch
            %27 = sbr.rel target = $region26
          $region31: #{reverse.5} parent=23 // loop_exit
            _
        $region24: #{reverse.5} parent=8 // pred_fallthru
          _
        // Predicated region
        $region32: #{reverse.5} parent=8 // pred_check
          _
        $region33: #{reverse.5} parent=8 // pred_check_branch
          %40 = sbr.rel target = $region35
        $region34: #{reverse.5} parent=8 // pred_region
          _
        $region35: #{reverse.5} parent=8 // pred_fallthru
          _
      $region9: #{reverse.5} parent=4 // pred_fallthru
        _
      // Predicated region
      $region10: #{reverse.5} parent=4 // pred_check
        _
      $region11: #{reverse.5} parent=4 // pred_check_branch
        %10 = sbr.rel target = $region13
      $region12: #{reverse.5} parent=4 // pred_region
        %s12 = ssub.s32 256, 1
        loop: start=0, step=1, limit=1
        $region14: #{reverse.5} parent=12 // loop_pre_header
          _
        $region15: #{reverse.5} parent=12 // loop_header
          %s14 = sphi 0, %s18
          %p15 = scmp.ge.s32.totalorder %s14, 1
          %s19 = sphi %s0, %s0
          %s20 = sphi [#allocation0], [#allocation0]
        $region16: #{reverse.5} parent=12 // loop_header_branch
          %17 = sbr.rel (%p15) target = $region20
        $region17: #{reverse.5} parent=12 // loop_body
          %v21 = vld [vmem:[%s19] sm:%s12]
          %22 = vst [vmem:[%s20] sm:%s12] %v21
          %v23 = vld [vmem:[%s19 + $0x8] sm:%s12]
          %24 = vst [vmem:[%s20 + $0x8] sm:%s12] %v23
        $region18: #{reverse.5} parent=12 // loop_footer
          %s18 = sadd.s32 1, %s14
        $region19: #{reverse.5} parent=12 // loop_footer_branch
          %13 = sbr.rel target = $region15
        $region20: #{reverse.5} parent=12 // loop_exit
          _
      $region13: #{reverse.5} parent=4 // pred_fallthru
        _
    $region5: #{reverse.5} parent=1 // pred_fallthru
      _
    %41 = vnop
    %v42 = vld [vmem:[#allocation0] sm:$0xff]
    %43 = vperm.xlu0 %4, %v42
    %v44 = vpop.permute.xlu0 %43
    %45 = vst [vmem:[#allocation1] sm:$0xff] %v44
    %s46 = scalar_lea.vmem [#allocation1], 8
    %s47 = scalar_lea.vmem [#allocation0], 8
    %v48 = vld [vmem:[%s47] sm:$0xff]
    %49 = vperm.xlu0 %4, %v48
    %v50 = vpop.permute.xlu0 %49
    %51 = vst [vmem:[%s46] sm:$0xff] %v50
    // Predicated region
    $region36: #{reverse.5} parent=1 // pred_check
      _
    $region37: #{reverse.5} parent=1 // pred_check_branch
      %53 = sbr.rel (0) target = $region39
    $region38: #{reverse.5} parent=1 // pred_region
      // Predicated region
      $region40: #{reverse.5} parent=38 // pred_check
        _
      $region41: #{reverse.5} parent=38 // pred_check_branch
        %55 = sbr.rel (0) target = $region43
      $region42: #{reverse.5} parent=38 // pred_region
        // Predicated region
        $region55: #{reverse.5} parent=42 // pred_check
          _
        $region56: #{reverse.5} parent=42 // pred_check_branch
          %73 = sbr.rel (0) target = $region58
        $region57: #{reverse.5} parent=42 // pred_region
          loop: start=0, step=1, limit=1
          $region59: #{reverse.5} parent=57 // loop_pre_header
            _
          $region60: #{reverse.5} parent=57 // loop_header
            %s75 = sphi 0, %s79
            %p76 = scmp.ge.s32.totalorder %s75, 1
            %s80 = sphi [#allocation1], [#allocation1]
            %s81 = sphi %s1, %s1
          $region61: #{reverse.5} parent=57 // loop_header_branch
            %78 = sbr.rel (%p76) target = $region65
          $region62: #{reverse.5} parent=57 // loop_body
            %v82 = vld [vmem:[%s80] sm:$0xff]
            %83 = vst [vmem:[%s81] sm:$0xff] %v82
            %v84 = vld [vmem:[%s80 + $0x8] sm:$0xff]
            %85 = vst [vmem:[%s81 + $0x8] sm:$0xff] %v84
          $region63: #{reverse.5} parent=57 // loop_footer
            %s79 = sadd.s32 1, %s75
          $region64: #{reverse.5} parent=57 // loop_footer_branch
            %74 = sbr.rel target = $region60
          $region65: #{reverse.5} parent=57 // loop_exit
            _
        $region58: #{reverse.5} parent=42 // pred_fallthru
          _
        // Predicated region
        $region66: #{reverse.5} parent=42 // pred_check
          _
        $region67: #{reverse.5} parent=42 // pred_check_branch
          %87 = sbr.rel target = $region69
        $region68: #{reverse.5} parent=42 // pred_region
          _
        $region69: #{reverse.5} parent=42 // pred_fallthru
          _
      $region43: #{reverse.5} parent=38 // pred_fallthru
        _
      // Predicated region
      $region44: #{reverse.5} parent=38 // pred_check
        _
      $region45: #{reverse.5} parent=38 // pred_check_branch
        %57 = sbr.rel target = $region47
      $region46: #{reverse.5} parent=38 // pred_region
        %s59 = ssub.s32 256, 1
        loop: start=0, step=1, limit=1
        $region48: #{reverse.5} parent=46 // loop_pre_header
          _
        $region49: #{reverse.5} parent=46 // loop_header
          %s61 = sphi 0, %s65
          %p62 = scmp.ge.s32.totalorder %s61, 1
          %s66 = sphi [#allocation1], [#allocation1]
          %s67 = sphi %s1, %s1
        $region50: #{reverse.5} parent=46 // loop_header_branch
          %64 = sbr.rel (%p62) target = $region54
        $region51: #{reverse.5} parent=46 // loop_body
          %v68 = vld [vmem:[%s66] sm:%s59]
          %69 = vst [vmem:[%s67] sm:%s59] %v68
          %v70 = vld [vmem:[%s66 + $0x8] sm:%s59]
          %71 = vst [vmem:[%s67 + $0x8] sm:%s59] %v70
        $region52: #{reverse.5} parent=46 // loop_footer
          %s65 = sadd.s32 1, %s61
        $region53: #{reverse.5} parent=46 // loop_footer_branch
          %60 = sbr.rel target = $region49
        $region54: #{reverse.5} parent=46 // loop_exit
          _
      $region47: #{reverse.5} parent=38 // pred_fallthru
        _
    $region39: #{reverse.5} parent=1 // pred_fallthru
      _
    %88 = vnop

// kernel: sins_forward.5
$region0: #{sins_forward.5}
  #allocation0 [shape = 'u32[]', space=smem, size = 0x4, offset = 0x4, fixed_abs, tag = 'smem constant byte address 0x4 - core index']
  #allocation1 [shape = 'u32[144,128]{1,0:T(1,128)}', space=vmem, size = 0x12000, scoped, tag = 'internal scratch']
  %s0 = inlined_call_operand.vmem [shape: f32[2,1,128], index: 0, kind: input, shape index: {}]
  %s1 = inlined_call_operand.vmem [shape: bf16[2,1,16,16], index: 1, kind: input, shape index: {}]
  %s2 = inlined_call_operand.vmem [shape: bf16[16,128], index: 2, kind: input, shape index: {}]
  %s3 = inlined_call_operand.vmem [shape: f32[2,1,128], index: 3, kind: output, shape index: {}]
  %s4 = sld [smem:[#allocation0]]
  $region45: #{sins_forward.5} parent=0
    _
  %s6 = ssub.s32 1, %s4
  %s7 = scalar_select 0, %s6, %s4
  loop: start=0, step=1, limit=4
  $region2: #{sins_forward.5} parent=0 // loop_pre_header
    _
  $region3: #{sins_forward.5} parent=0 // loop_header
    %s9 = sphi 0, %s13
    %p10 = scmp.ge.s32.totalorder %s9, 4
    %s16 = sphi 0, %s28
    %s17 = sphi 0, %s24
    %s18 = sphi 0, %s16
    %s19 = sphi 0, %s17
    %s20 = sphi 0, %s18
    %s21 = sphi 0, %s19
    %s33 = sphi 0, %s35
    %s36 = sphi 0, %s33
    %s37 = sphi 0, %s36
    %s53 = sphi 0, %s37
    %s61 = sphi 0, %s63
    %s64 = sphi 0, %s61
    %s65 = sphi 0, %s64
    %s81 = sphi 0, %s65
    %s85 = sphi 0, %s85
    %s87 = sphi 0, %s85
    %s88 = sphi 0, %s87
    %s102 = sphi 0, %s88
    %s110 = sphi 0, %s112
    %s113 = sphi 0, %s110
    %s114 = sphi 0, %s113
    %s130 = sphi 0, %s114
  $region4: #{sins_forward.5} parent=0 // loop_header_branch
    %12 = sbr.rel (%p10) target = $region8
  $region5: #{sins_forward.5} parent=0 // loop_body
    %s14 = ssub.s32 %s9, 1
    %s15 = ssub.s32 %s9, 2
    %s22 = sadd.s32 1, %s17
    %p23 = scmp.ge.s32.totalorder %s22, 1
    %s24 = scalar_select %p23, 0, %s22
    %s25 = sadd.s32 1, %s16
    %s26 = scalar_select %p23, %s25, %s16
    %p27 = scmp.ge.s32.totalorder %s26, 2
    %s28 = scalar_select %p27, 0, %s26
    %s29 = ssub.s32 %s16, %s28
    %s30 = ssub.s32 %s17, %s24
    %s31 = sor.u32 %s29, %s30
    %p32 = scmp.eq.s32.totalorder %s31, 0
    %s34 = sadd.s32 %s33, 1
    %s35 = scalar_select %p32, %s33, %s34
    %p38 = pneg %p32
    %p39 = scmp.eq.s32.totalorder %s9, 1
    %p40 = por %p38, %p39
    %p41 = scmp.ne.s32.totalorder %s33, %s36
    %p42 = scmp.eq.s32.totalorder %s9, 0
    %p43 = por %p41, %p42
    %p44 = scmp.ne.s32.totalorder %s33, %s36
    %p45 = scmp.eq.s32.totalorder %s14, 1
    %p46 = por %p44, %p45
    %p47 = scmp.ne.s32.totalorder %s36, %s37
    %p48 = scmp.eq.s32.totalorder %s14, 0
    %p49 = por %p47, %p48
    %p50 = scmp.ne.s32.totalorder %s36, %s37
    %p51 = scmp.eq.s32.totalorder %s15, 1
    %p52 = por %p50, %p51
    %p54 = scmp.ne.s32.totalorder %s37, %s53
    %p55 = scmp.eq.s32.totalorder %s15, 0
    %p56 = por %p54, %p55
    %s57 = ssub.s32 %s16, %s28
    %s58 = ssub.s32 %s17, %s24
    %s59 = sor.u32 %s57, %s58
    %p60 = scmp.eq.s32.totalorder %s59, 0
    %s62 = sadd.s32 %s61, 1
    %s63 = scalar_select %p60, %s61, %s62
    %p66 = pneg %p60
    %p67 = scmp.eq.s32.totalorder %s9, 1
    %p68 = por %p66, %p67
    %p69 = scmp.ne.s32.totalorder %s61, %s64
    %p70 = scmp.eq.s32.totalorder %s9, 0
    %p71 = por %p69, %p70
    %p72 = scmp.ne.s32.totalorder %s61, %s64
    %p73 = scmp.eq.s32.totalorder %s14, 1
    %p74 = por %p72, %p73
    %p75 = scmp.ne.s32.totalorder %s64, %s65
    %p76 = scmp.eq.s32.totalorder %s14, 0
    %p77 = por %p75, %p76
    %p78 = scmp.ne.s32.totalorder %s64, %s65
    %p79 = scmp.eq.s32.totalorder %s15, 1
    %p80 = por %p78, %p79
    %p82 = scmp.ne.s32.totalorder %s65, %s81
    %p83 = scmp.eq.s32.totalorder %s15, 0
    %p84 = por %p82, %p83
    %s86 = sadd.s32 %s85, 1
    %p89 = scmp.eq.s32.totalorder %s9, 1
    %p90 = scmp.ne.s32.totalorder %s85, %s87
    %p91 = scmp.eq.s32.totalorder %s9, 0
    %p92 = por %p90, %p91
    %p93 = scmp.ne.s32.totalorder %s85, %s87
    %p94 = scmp.eq.s32.totalorder %s14, 1
    %p95 = por %p93, %p94
    %p96 = scmp.ne.s32.totalorder %s87, %s88
    %p97 = scmp.eq.s32.totalorder %s14, 0
    %p98 = por %p96, %p97
    %p99 = scmp.ne.s32.totalorder %s87, %s88
    %p100 = scmp.eq.s32.totalorder %s15, 1
    %p101 = por %p99, %p100
    %p103 = scmp.ne.s32.totalorder %s88, %s102
    %p104 = scmp.eq.s32.totalorder %s15, 0
    %p105 = por %p103, %p104
    %s106 = ssub.s32 %s16, %s28
    %s107 = ssub.s32 %s17, %s24
    %s108 = sor.u32 %s106, %s107
    %p109 = scmp.eq.s32.totalorder %s108, 0
    %s111 = sadd.s32 %s110, 1
    %s112 = scalar_select %p109, %s110, %s111
    %p115 = pneg %p109
    %p116 = scmp.eq.s32.totalorder %s9, 1
    %p117 = por %p115, %p116
    %p118 = scmp.ne.s32.totalorder %s110, %s113
    %p119 = scmp.eq.s32.totalorder %s9, 0
    %p120 = por %p118, %p119
    %p121 = scmp.ne.s32.totalorder %s110, %s113
    %p122 = scmp.eq.s32.totalorder %s14, 1
    %p123 = por %p121, %p122
    %p124 = scmp.ne.s32.totalorder %s113, %s114
    %p125 = scmp.eq.s32.totalorder %s14, 0
    %p126 = por %p124, %p125
    %p127 = scmp.ne.s32.totalorder %s113, %s114
    %p128 = scmp.eq.s32.totalorder %s15, 1
    %p129 = por %p127, %p128
    %p131 = scmp.ne.s32.totalorder %s114, %s130
    %p132 = scmp.eq.s32.totalorder %s15, 0
    %p133 = por %p131, %p132
    %p134 = scmp.le.s32.totalorder 1, %s9
    %p135 = scmp.lt.s32.totalorder %s9, 3
    %p136 = pnand %p134, %p135
    %p137 = pneg %p136
    // Predicated region
    $region9: #{sins_forward.5} parent=5 // pred_check
      _
    $region10: #{sins_forward.5} parent=5 // pred_check_branch
      %139 = sbr.rel (%p136) target = $region12
    $region11: #{sins_forward.5} parent=5 // pred_region
      %s140 = ssub.s32 %s9, 1
      // Predicated region
      $region13: #{sins_forward.5} parent=11 // pred_check
        %p141 = pneg %p98
      $region14: #{sins_forward.5} parent=11 // pred_check_branch
        %143 = sbr.rel (%p141) target = $region16
      $region15: #{sins_forward.5} parent=11 // pred_region
        _
      $region16: #{sins_forward.5} parent=11 // pred_fallthru
        _
    $region12: #{sins_forward.5} parent=5 // pred_fallthru
      _
    %p144 = scmp.lt.s32.totalorder %s9, 2
    // Predicated region
    $region17: #{sins_forward.5} parent=5 // pred_check
      %p145 = pneg %p144
    $region18: #{sins_forward.5} parent=5 // pred_check_branch
      %147 = sbr.rel (%p145) target = $region20
    $region19: #{sins_forward.5} parent=5 // pred_region
      // Predicated region
      $region21: #{sins_forward.5} parent=19 // pred_check
        %p148 = pneg %p43
      $region22: #{sins_forward.5} parent=19 // pred_check_branch
        %150 = sbr.rel (%p148) target = $region24
      $region23: #{sins_forward.5} parent=19 // pred_region
        %p151 = scmp.lt.s32.totalorder %s16, 1
        %s152 = scalar_select %p151, %s16, 1
        %p153 = scmp.lt.s32.totalorder %s17, 0
        %s154 = scalar_select %p153, %s17, 0
        %s155 = sadd.s32 %s154, %s152
        %s156 = scalar_lea.vmem %s0, %s155
      $region24: #{sins_forward.5} parent=19 // pred_fallthru
        _
      // Predicated region
      $region25: #{sins_forward.5} parent=19 // pred_check
        %p157 = pneg %p71
      $region26: #{sins_forward.5} parent=19 // pred_check_branch
        %159 = sbr.rel (%p157) target = $region28
      $region27: #{sins_forward.5} parent=19 // pred_region
        %p160 = scmp.lt.s32.totalorder %s16, 1
        %s161 = scalar_select %p160, %s16, 1
        %p162 = scmp.lt.s32.totalorder %s17, 0
        %s163 = scalar_select %p162, %s17, 0
        %s164 = smul.addr %s163, 2
        %s165 = smul.addr %s161, 2
        %s166 = sadd.s32 %s164, %s165
        %s167 = smul.addr %s166, 4
        %s168 = scalar_lea.vmem %s1, %s167
      $region28: #{sins_forward.5} parent=19 // pred_fallthru
        _
    $region20: #{sins_forward.5} parent=5 // pred_fallthru
      _
    %p169 = scmp.le.s32.totalorder 1, %s9
    %p170 = scmp.lt.s32.totalorder %s9, 3
    %p171 = pnand %p169, %p170
    %p172 = pneg %p171
    // Predicated region
    $region29: #{sins_forward.5} parent=5 // pred_check
      _
    $region30: #{sins_forward.5} parent=5 // pred_check_branch
      %174 = sbr.rel (%p171) target = $region32
    $region31: #{sins_forward.5} parent=5 // pred_region
      %s175 = ssub.s32 %s9, 1
      %p176 = scmp.lt.s32.totalorder %s18, 1
      %s177 = scalar_select %p176, %s18, 1
      %p178 = scmp.lt.s32.totalorder %s19, 0
      %s179 = scalar_select %p178, %s19, 0
      %s180 = sadd.s32 %s179, %s177
      %s181 = scalar_lea.vmem %s0, %s180
      %p182 = pneg %p49
      %p183 = pneg %p46
      %p184 = scmp.lt.s32.totalorder %s18, 1
      %s185 = scalar_select %p184, %s18, 1
      %p186 = scmp.lt.s32.totalorder %s19, 0
      %s187 = scalar_select %p186, %s19, 0
      %s188 = smul.addr %s187, 2
      %s189 = smul.addr %s185, 2
      %s190 = sadd.s32 %s188, %s189
      %s191 = smul.addr %s190, 4
      %s192 = scalar_lea.vmem %s1, %s191
      %p193 = pneg %p77
      %p194 = pneg %p74
      %p195 = pneg %p98
      %p196 = pneg %p95
      %p197 = pneg %p126
      %p198 = pneg %p123
      %p199 = scmp.lt.s32.totalorder %s18, 1
      %s200 = scalar_select %p199, %s18, 1
      %p201 = scmp.lt.s32.totalorder %s19, 0
      %s202 = scalar_select %p201, %s19, 0
      %s203 = sadd.s32 %s202, %s200
      %s204 = scalar_lea.vmem %s3, %s203
      %p205 = scmp.lt.s32.totalorder %s18, 1
      %s206 = scalar_select %p205, %s18, 1
      %p207 = scmp.lt.s32.totalorder %s19, 0
      %s208 = scalar_select %p207, %s19, 0
      %s209 = sadd.s32 %s208, %s206
      %s210 = scalar_lea.vmem %s0, %s209
      %p211 = scmp.lt.s32.totalorder %s18, 1
      %s212 = scalar_select %p211, %s18, 1
      %p213 = scmp.lt.s32.totalorder %s19, 0
      %s214 = scalar_select %p213, %s19, 0
      %s215 = smul.addr %s214, 2
      %s216 = smul.addr %s212, 2
      %s217 = sadd.s32 %s215, %s216
      %s218 = smul.addr %s217, 4
      %s219 = scalar_lea.vmem %s1, %s218
      %p220 = scmp.lt.s32.totalorder %s18, 1
      %s221 = scalar_select %p220, %s18, 1
      %p222 = scmp.lt.s32.totalorder %s19, 0
      %s223 = scalar_select %p222, %s19, 0
      %s224 = sadd.s32 %s223, %s221
      %s225 = scalar_lea.vmem %s3, %s224
      %v227 = vld [vmem:[%s210] sm:$0x1]
      %v228 = vld [vmem:[%s219] sm:$0xf]
      %v229 = vld [vmem:[%s219 + $0x4] sm:$0xf]
      %v230 = vld [vmem:[%s2] sm:$0xf]
      %v231 = vld [vmem:[%s2 + $0x4] sm:$0xf]
      %v234 = vunpack.c.l.b16 %v228
      %v235 = vunpack.c.l.b16 %v229
      %v236 = vpack.c.b16 %v235, %v234
      %v239 = vunpack.c.l.b16 %v230
      %v240 = vunpack.c.l.b16 %v231
      %v241 = vpack.c.b16 %v240, %v239
      %vm243 = vcmask 130048
      %v245 = vsel %vm243, %v236, 0
      %247 = vmatprep.subr.bf16.mxu0 0
      %248 = vmatpush1.bf16.msra.mxu0 0
      %249 = vmatprep.subr.bf16.mxu0 0
      %250 = vmatpush1.bf16.msra.mxu0 0
      %251 = vmatprep.subr.bf16.mxu0 0
      %252 = vmatpush1.bf16.msra.mxu0 0
      %253 = vmatprep.subr.bf16.mxu0 0
      %254 = vmatpush1.bf16.msra.mxu0 0
      %255 = vmatprep.subr.bf16.mxu0 0
      %256 = vmatpush1.bf16.msra.mxu0 0
      %257 = vmatprep.subr.bf16.mxu0 0
      %258 = vmatpush1.bf16.msra.mxu0 0
      %259 = vmatprep.subr.bf16.mxu0 0
      %260 = vmatpush1.bf16.msra.mxu0 0
      %261 = vmatprep.subr.bf16.mxu0 0
      %262 = vmatpush1.bf16.msra.mxu0 %v241
      %263 = vmatprep.subr.bf16.mxu0 0
      %264 = vmatpush2.bf16.msra.mxu0 0
      %265 = vmatprep.subr.bf16.mxu0 0
      %266 = vmatpush2.bf16.msra.mxu0 0
      %267 = vmatprep.subr.bf16.mxu0 0
      %268 = vmatpush2.bf16.msra.mxu0 0
      %269 = vmatprep.subr.bf16.mxu0 0
      %270 = vmatpush2.bf16.msra.mxu0 0
      %271 = vmatprep.subr.bf16.mxu0 0
      %272 = vmatpush2.bf16.msra.mxu0 0
      %273 = vmatprep.subr.bf16.mxu0 0
      %274 = vmatpush2.bf16.msra.mxu0 0
      %275 = vmatprep.subr.bf16.mxu0 0
      %276 = vmatpush2.bf16.msra.mxu0 0
      %277 = vmatprep.subr.bf16.mxu0 0
      %278 = vmatpush2.bf16.msra.mxu0 0
      %279 = vmatprep.mubr.bf16.mxu0 0
      %280 = vmatmul.mubr.bf16.gmra.mxu0 %v245
      %v281 = vpop.f32.mrf.mxu0
      %v282 = vadd.f32 0.0, %v281
      %v283 = vpop.f32.mrf.mxu0
      %v284 = vpop.f32.mrf.mxu0
      %v285 = vadd.f32 0.0, %v284
      %v286 = vpop.f32.mrf.mxu0
      %287 = vdwg.mxu0
      %v288 = vand.u32 2147483647, %v227
      %vm289 = vcmp.le.f32.partialorder %v288, 0.7853982
      %vm290 = vcmp.lt.s32.totalorder %v227, 0
      %v291 = vand.u32 %v227, 2139095040
      %v292 = vshrl.u32 %v291, 23
      %v293 = vsub.s32 %v292, 127
      %v294 = vand.u32 2147483647, %v227
      %v295 = vand.u32 %v294, 8388607
      %v296 = vor.u32 %v295, 8388608
      %v297 = vsub.s32 0, %v296
      %v298 = vadd.s32 %v293, 1
      %vm299 = vcmp.gt.s32.totalorder %v298, 0
      %v300 = vsel %vm299, %v298, 0
      %v301 = vshrl.u32 %v300, 5
      %v302 = vand.u32 %v300, 31
      %v303 = vsub.s32 32, %v302
      %v304 = vshrl.u32 683565275, %v303
      %v305 = vshll.u32 683565275, %v302
      %v306 = vshrl.u32 2475754826, %v303
      %v307 = vor.u32 %v305, %v306
      %v308 = vshll.u32 2475754826, %v302
      %v309 = vshrl.u32 2131351028, %v303
      %v310 = vor.u32 %v308, %v309
      %v311 = vshll.u32 2131351028, %v302
      %v312 = vshrl.u32 2102212464, %v303
      %v313 = vor.u32 %v311, %v312
      %v314 = vshll.u32 2102212464, %v302
      %v315 = vshrl.u32 920167782, %v303
      %v316 = vor.u32 %v314, %v315
      %v317 = vshll.u32 920167782, %v302
      %v318 = vshrl.u32 1326507024, %v303
      %v319 = vor.u32 %v317, %v318
      %vm320 = vcmp.lt.s32.totalorder %v301, 1
      %vm321 = vcmp.lt.s32.totalorder %v301, 2
      %vm322 = vcmp.lt.s32.totalorder %v301, 3
      %vm323 = vcmp.lt.s32.totalorder %v301, 4
      %v324 = vsel %vm320, %v304, %v307
      %v325 = vsel %vm323, %v313, 2102212464
      %v326 = vsel %vm322, %v310, %v325
      %v327 = vsel %vm321, %v324, %v326
      %v328 = vsel %vm320, %v307, %v310
      %v329 = vsel %vm323, %v316, 920167782
      %v330 = vsel %vm322, %v313, %v329
      %v331 = vsel %vm321, %v328, %v330
      %v332 = vsel %vm320, %v310, %v313
      %v333 = vsel %vm323, %v319, 1326507024
      %v334 = vsel %vm322, %v316, %v333
      %v335 = vsel %vm321, %v332, %v334
      %v336 = vshll.u32 %v296, 8
      %v337 = vmul.u32.u64.compose %v336, %v335
      %v338 = vextract.low.u32 %v337
      %v339 = vextract.high.u32 %v337
      %v340 = vmul.u32.u64.compose %v336, %v331
      %v341 = vextract.low.u32 %v340
      %v342 = vextract.high.u32 %v340
      %v343 = vmul.u32 %v336, %v327
      %v344 = vadd.s32 %v339, %v341
      %vm345 = vc.u32 %v339, %v341
      %v346 = vadd.s32 %v342, 1
      %v347 = vsel %vm345, %v346, %v342
      %v348 = vadd.s32 %v343, %v347
      %v349 = vadd.s32 %v348, 536870912
      %v350 = vshrl.u32 %v349, 30
      %v351 = vshll.u32 %v350, 30
      %v352 = vsub.s32 %v348, %v351
      %vm353 = vcmp.lt.s32.totalorder %v352, 0
      %v354 = vsub.s32 0, %v352
      %v355 = vsel %vm353, %v354, %v352
      %v356 = vclz %v355
      %v357 = vsub.s32 %v356, 2
      %vm358 = vcmp.gt.s32.totalorder 0, %v357
      %v359 = vsel %vm358, 0, %v357
      %v360 = vsub.s32 32, %v359
      %v361 = vshll.u32 %v352, %v359
      %v362 = vshrl.u32 %v344, %v360
      %v363 = vor.u32 %v361, %v362
      %v364 = vsub.s32 4294967266, %v359
      %v365 = vadd.s32 %v364, 127
      %v366 = vshll.u32 %v365, 23
      %v367 = vor.u32 4788187, %v366
      %v368 = vand.u32 2147483647, %v367
      %v370 = vcvt.s32.f32 %v363
      %v371 = vmul.f32 %v370, %v368
      %v372 = vxor.u32 %v371, 2147483648
      %v373 = vsel %vm290, %v372, %v371
      %v374 = vsub.s32 4, %v350
      %v375 = vsel %vm290, %v374, %v350
      %v376 = vsel %vm289, %v227, %v373
      %v377 = vsel %vm289, 0, %v375
      %v378 = vcosq.f32.pop %v376
      %v379 = vsinq.f32.pop %v376
      %vm380 = vweird.f32 %v227
      %v381 = vadd.s32 %v377, 3
      %v382 = vand.u32 %v381, 3
      %vm383 = vcmp.lt.s32.totalorder %v382, 2
      %vm384 = vcmp.eq.s32.totalorder %v382, 0
      %v385 = vxor.u32 %v379, 2147483648
      %v386 = vsel %vm384, %v378, %v385
      %vm387 = vcmp.eq.s32.totalorder %v382, 2
      %v388 = vxor.u32 %v378, 2147483648
      %v389 = vsel %vm387, %v388, %v379
      %v390 = vsel %vm383, %v386, %v389
      %v391 = vsel %vm380, nan, %v390
      %v392 = vand.u32 2147483647, %v227
      %vm393 = vcmp.le.f32.partialorder %v392, 0.7853982
      %vm394 = vcmp.lt.s32.totalorder %v227, 0
      %v395 = vand.u32 %v227, 2139095040
      %v396 = vshrl.u32 %v395, 23
      %v397 = vsub.s32 %v396, 127
      %v398 = vand.u32 2147483647, %v227
      %v399 = vand.u32 %v398, 8388607
      %v400 = vor.u32 %v399, 8388608
      %v401 = vsub.s32 0, %v400
      %v402 = vadd.s32 %v397, 1
      %vm403 = vcmp.gt.s32.totalorder %v402, 0
      %v404 = vsel %vm403, %v402, 0
      %v405 = vshrl.u32 %v404, 5
      %v406 = vand.u32 %v404, 31
      %v407 = vsub.s32 32, %v406
      %v408 = vshrl.u32 683565275, %v407
      %v409 = vshll.u32 683565275, %v406
      %v410 = vshrl.u32 2475754826, %v407
      %v411 = vor.u32 %v409, %v410
      %v412 = vshll.u32 2475754826, %v406
      %v413 = vshrl.u32 2131351028, %v407
      %v414 = vor.u32 %v412, %v413
      %v415 = vshll.u32 2131351028, %v406
      %v416 = vshrl.u32 2102212464, %v407
      %v417 = vor.u32 %v415, %v416
      %v418 = vshll.u32 2102212464, %v406
      %v419 = vshrl.u32 920167782, %v407
      %v420 = vor.u32 %v418, %v419
      %v421 = vshll.u32 920167782, %v406
      %v422 = vshrl.u32 1326507024, %v407
      %v423 = vor.u32 %v421, %v422
      %vm424 = vcmp.lt.s32.totalorder %v405, 1
      %vm425 = vcmp.lt.s32.totalorder %v405, 2
      %vm426 = vcmp.lt.s32.totalorder %v405, 3
      %vm427 = vcmp.lt.s32.totalorder %v405, 4
      %v428 = vsel %vm424, %v408, %v411
      %v429 = vsel %vm427, %v417, 2102212464
      %v430 = vsel %vm426, %v414, %v429
      %v431 = vsel %vm425, %v428, %v430
      %v432 = vsel %vm424, %v411, %v414
      %v433 = vsel %vm427, %v420, 920167782
      %v434 = vsel %vm426, %v417, %v433
      %v435 = vsel %vm425, %v432, %v434
      %v436 = vsel %vm424, %v414, %v417
      %v437 = vsel %vm427, %v423, 1326507024
      %v438 = vsel %vm426, %v420, %v437
      %v439 = vsel %vm425, %v436, %v438
      %v440 = vshll.u32 %v400, 8
      %v441 = vmul.u32.u64.compose %v440, %v439
      %v442 = vextract.low.u32 %v441
      %v443 = vextract.high.u32 %v441
      %v444 = vmul.u32.u64.compose %v440, %v435
      %v445 = vextract.low.u32 %v444
      %v446 = vextract.high.u32 %v444
      %v447 = vmul.u32 %v440, %v431
      %v448 = vadd.s32 %v443, %v445
      %vm449 = vc.u32 %v443, %v445
      %v450 = vadd.s32 %v446, 1
      %v451 = vsel %vm449, %v450, %v446
      %v452 = vadd.s32 %v447, %v451
      %v453 = vadd.s32 %v452, 536870912
      %v454 = vshrl.u32 %v453, 30
      %v455 = vshll.u32 %v454, 30
      %v456 = vsub.s32 %v452, %v455
      %vm457 = vcmp.lt.s32.totalorder %v456, 0
      %v458 = vsub.s32 0, %v456
      %v459 = vsel %vm457, %v458, %v456
      %v460 = vclz %v459
      %v461 = vsub.s32 %v460, 2
      %vm462 = vcmp.gt.s32.totalorder 0, %v461
      %v463 = vsel %vm462, 0, %v461
      %v464 = vsub.s32 32, %v463
      %v465 = vshll.u32 %v456, %v463
      %v466 = vshrl.u32 %v448, %v464
      %v467 = vor.u32 %v465, %v466
      %v468 = vsub.s32 4294967266, %v463
      %v469 = vadd.s32 %v468, 127
      %v470 = vshll.u32 %v469, 23
      %v471 = vor.u32 4788187, %v470
      %v472 = vand.u32 2147483647, %v471
      %v474 = vcvt.s32.f32 %v467
      %v475 = vmul.f32 %v474, %v472
      %v476 = vxor.u32 %v475, 2147483648
      %v477 = vsel %vm394, %v476, %v475
      %v478 = vsub.s32 4, %v454
      %v479 = vsel %vm394, %v478, %v454
      %v480 = vsel %vm393, %v227, %v477
      %v481 = vsel %vm393, 0, %v479
      %v482 = vcosq.f32.pop %v480
      %v483 = vsinq.f32.pop %v480
      %vm484 = vweird.f32 %v227
      %v485 = vand.u32 %v481, 3
      %vm486 = vcmp.lt.s32.totalorder %v485, 2
      %vm487 = vcmp.eq.s32.totalorder %v485, 0
      %v488 = vxor.u32 %v483, 2147483648
      %v489 = vsel %vm487, %v482, %v488
      %vm490 = vcmp.eq.s32.totalorder %v485, 2
      %v491 = vxor.u32 %v482, 2147483648
      %v492 = vsel %vm490, %v491, %v483
      %v493 = vsel %vm486, %v489, %v492
      %v494 = vsel %vm484, nan, %v493
      %v495 = vmul.f32 %v494, 2.0
      %v496 = vmul.f32 %v391, %v282
      %v497 = vmul.f32 %v495, %v391
      %v500 = vunpack.c.l.s4 1966171168
      %v501 = vunpack.c.0.s8 %v500
      %v502 = vlaneseq
      %v503 = vshrl.u32 %v502, 7
      %v504 = vsub.s32 %v501, %v503
      %v505 = vrot.slane %v282, %v504
      %v506 = vcombine.high %v505, %v505
      %v508 = vunpack.c.l.s4 1966171168
      %v509 = vunpack.c.0.s8 %v508
      %v510 = vlaneseq
      %v511 = vshrl.u32 %v510, 7
      %v512 = vsub.s32 %v509, %v511
      %v513 = vrot.slane %v505, %v512
      %v515 = vunpack.c.l.s4 1966171168
      %v516 = vunpack.c.0.s8 %v515
      %v517 = vlaneseq
      %v518 = vshrl.u32 %v517, 7
      %v519 = vsub.s32 %v516, %v518
      %v520 = vrot.slane %v506, %v519
      %v522 = vmul.f32 %v497, %v520
      %v523 = vadd.f32 %v496, %v522
      %v524 = vmul.f32 %v495, %v497
      %v525 = vsub.f32 %v524, %v391
      %v526 = vcombine.high %v513, %v513
      %v528 = vmul.f32 %v525, %v526
      %v529 = vadd.f32 %v523, %v528
      %v530 = vmul.f32 %v495, %v525
      %v531 = vsub.f32 %v530, %v497
      %v532 = vcombine.high %v520, %v520
      %v534 = vmul.f32 %v531, %v532
      %v535 = vadd.f32 %v529, %v534
      %v536 = vmul.f32 %v495, %v531
      %v537 = vsub.f32 %v536, %v525
      %v538 = vcombine.high %v282, %v282
      %v540 = vunpack.c.l.s4 1966171168
      %v541 = vunpack.c.0.s8 %v540
      %v542 = vlaneseq
      %v543 = vshrl.u32 %v542, 7
      %v544 = vsub.s32 %v541, %v543
      %v545 = vrot.slane %v538, %v544
      %v547 = vunpack.c.l.s4 1966171168
      %v548 = vunpack.c.0.s8 %v547
      %v549 = vlaneseq
      %v550 = vshrl.u32 %v549, 7
      %v551 = vsub.s32 %v548, %v550
      %v552 = vrot.slane %v545, %v551
      %v554 = vmul.f32 %v537, %v552
      %v555 = vadd.f32 %v535, %v554
      %v556 = vmul.f32 %v495, %v537
      %v557 = vsub.f32 %v556, %v531
      %v558 = vcombine.high %v545, %v545
      %v560 = vunpack.c.l.s4 1966171168
      %v561 = vunpack.c.0.s8 %v560
      %v562 = vlaneseq
      %v563 = vshrl.u32 %v562, 7
      %v564 = vsub.s32 %v561, %v563
      %v565 = vrot.slane %v558, %v564
      %v567 = vmul.f32 %v557, %v565
      %v568 = vadd.f32 %v555, %v567
      %v569 = vmul.f32 %v495, %v557
      %v570 = vsub.f32 %v569, %v537
      %v571 = vcombine.high %v552, %v552
      %v573 = vmul.f32 %v570, %v571
      %v574 = vadd.f32 %v568, %v573
      %v575 = vmul.f32 %v495, %v570
      %v576 = vsub.f32 %v575, %v557
      %v577 = vcombine.high %v565, %v565
      %v579 = vmul.f32 %v576, %v577
      %v580 = vadd.f32 %v574, %v579
      %v581 = vmul.f32 %v495, %v576
      %v582 = vsub.f32 %v581, %v570
      %v583 = vmul.f32 %v582, %v285
      %v584 = vadd.f32 %v580, %v583
      %v585 = vmul.f32 %v495, %v582
      %v586 = vsub.f32 %v585, %v576
      %v589 = vunpack.c.l.s4 1966171168
      %v590 = vunpack.c.0.s8 %v589
      %v591 = vlaneseq
      %v592 = vshrl.u32 %v591, 7
      %v593 = vsub.s32 %v590, %v592
      %v594 = vrot.slane %v285, %v593
      %v595 = vcombine.high %v594, %v594
      %v597 = vunpack.c.l.s4 1966171168
      %v598 = vunpack.c.0.s8 %v597
      %v599 = vlaneseq
      %v600 = vshrl.u32 %v599, 7
      %v601 = vsub.s32 %v598, %v600
      %v602 = vrot.slane %v594, %v601
      %v604 = vunpack.c.l.s4 1966171168
      %v605 = vunpack.c.0.s8 %v604
      %v606 = vlaneseq
      %v607 = vshrl.u32 %v606, 7
      %v608 = vsub.s32 %v605, %v607
      %v609 = vrot.slane %v595, %v608
      %v611 = vmul.f32 %v586, %v609
      %v612 = vadd.f32 %v584, %v611
      %v613 = vmul.f32 %v495, %v586
      %v614 = vsub.f32 %v613, %v582
      %v615 = vcombine.high %v602, %v602
      %v617 = vmul.f32 %v614, %v615
      %v618 = vadd.f32 %v612, %v617
      %v619 = vmul.f32 %v495, %v614
      %v620 = vsub.f32 %v619, %v586
      %v621 = vcombine.high %v609, %v609
      %v623 = vmul.f32 %v620, %v621
      %v624 = vadd.f32 %v618, %v623
      %v625 = vmul.f32 %v495, %v620
      %v626 = vsub.f32 %v625, %v614
      %v627 = vcombine.high %v285, %v285
      %v629 = vunpack.c.l.s4 1966171168
      %v630 = vunpack.c.0.s8 %v629
      %v631 = vlaneseq
      %v632 = vshrl.u32 %v631, 7
      %v633 = vsub.s32 %v630, %v632
      %v634 = vrot.slane %v627, %v633
      %v636 = vunpack.c.l.s4 1966171168
      %v637 = vunpack.c.0.s8 %v636
      %v638 = vlaneseq
      %v639 = vshrl.u32 %v638, 7
      %v640 = vsub.s32 %v637, %v639
      %v641 = vrot.slane %v634, %v640
      %v643 = vmul.f32 %v626, %v641
      %v644 = vadd.f32 %v624, %v643
      %v645 = vmul.f32 %v495, %v626
      %v646 = vsub.f32 %v645, %v620
      %v647 = vcombine.high %v634, %v634
      %v649 = vunpack.c.l.s4 1966171168
      %v650 = vunpack.c.0.s8 %v649
      %v651 = vlaneseq
      %v652 = vshrl.u32 %v651, 7
      %v653 = vsub.s32 %v650, %v652
      %v654 = vrot.slane %v647, %v653
      %v656 = vmul.f32 %v646, %v654
      %v657 = vadd.f32 %v644, %v656
      %v658 = vmul.f32 %v495, %v646
      %v659 = vsub.f32 %v658, %v626
      %v660 = vcombine.high %v641, %v641
      %v662 = vmul.f32 %v659, %v660
      %v663 = vadd.f32 %v657, %v662
      %v664 = vmul.f32 %v495, %v659
      %v665 = vsub.f32 %v664, %v646
      %v666 = vcombine.high %v654, %v654
      %v668 = vmul.f32 %v665, %v666
      %v669 = vadd.f32 %v663, %v668
      %670 = vst [vmem:[%s225] sm:$0x1] %v669
      %p671 = scmp.lt.s32.totalorder %s18, 1
      %s672 = scalar_select %p671, %s18, 1
      %p673 = scmp.lt.s32.totalorder %s19, 0
      %s674 = scalar_select %p673, %s19, 0
      %s675 = sadd.s32 %s674, %s672
      %s676 = scalar_lea.vmem %s3, %s675
      // Predicated region
      $region33: #{sins_forward.5} parent=31 // pred_check
        %p677 = pneg %p123
      $region34: #{sins_forward.5} parent=31 // pred_check_branch
        %679 = sbr.rel (%p677) target = $region36
      $region35: #{sins_forward.5} parent=31 // pred_region
        _
      $region36: #{sins_forward.5} parent=31 // pred_fallthru
        _
    $region32: #{sins_forward.5} parent=5 // pred_fallthru
      _
    %p680 = scmp.le.s32.totalorder 2, %s9
    // Predicated region
    $region37: #{sins_forward.5} parent=5 // pred_check
      %p681 = pneg %p680
    $region38: #{sins_forward.5} parent=5 // pred_check_branch
      %683 = sbr.rel (%p681) target = $region40
    $region39: #{sins_forward.5} parent=5 // pred_region
      %s684 = ssub.s32 %s9, 2
      // Predicated region
      $region41: #{sins_forward.5} parent=39 // pred_check
        %p685 = pneg %p129
      $region42: #{sins_forward.5} parent=39 // pred_check_branch
        %687 = sbr.rel (%p685) target = $region44
      $region43: #{sins_forward.5} parent=39 // pred_region
        %p688 = scmp.lt.s32.totalorder %s20, 1
        %s689 = scalar_select %p688, %s20, 1
        %p690 = scmp.lt.s32.totalorder %s21, 0
        %s691 = scalar_select %p690, %s21, 0
        %s692 = sadd.s32 %s691, %s689
        %s693 = scalar_lea.vmem %s3, %s692
      $region44: #{sins_forward.5} parent=39 // pred_fallthru
        _
    $region40: #{sins_forward.5} parent=5 // pred_fallthru
      _
  $region6: #{sins_forward.5} parent=0 // loop_footer
    %s13 = sadd.s32 1, %s9
  $region7: #{sins_forward.5} parent=0 // loop_footer_branch
    %8 = sbr.rel target = $region3
  $region8: #{sins_forward.5} parent=0 // loop_exit
    _

// kernel: reverse.3
$region0: #{reverse.3}
  %s0 = inlined_call_operand.vmem [shape: f32[2,9,15], index: 0, kind: input, shape index: {}]
  %s1 = inlined_call_operand.vmem [shape: f32[2,9,15], index: 1, kind: output, shape index: {}]
  %v2 = vlaneseq
  %v3 = vsub.s32 14, %v2
  %4 = vset.pattern.permute.xlu0 %v3
  $region1: #{reverse.3} parent=0
    #allocation0 [shape = 'u8[16384]{0}', space=vmem, size = 0x4000, scoped, tag = 'operand span for operand 0']
    #allocation1 [shape = 'u8[16384]{0}', space=vmem, size = 0x4000, scoped, tag = 'operand span for operand 1']
    // Predicated region
    $region2: #{reverse.3} parent=1 // pred_check
      _
    $region3: #{reverse.3} parent=1 // pred_check_branch
      %6 = sbr.rel (0) target = $region5
    $region4: #{reverse.3} parent=1 // pred_region
      // Predicated region
      $region6: #{reverse.3} parent=4 // pred_check
        _
      $region7: #{reverse.3} parent=4 // pred_check_branch
        %8 = sbr.rel (0) target = $region9
      $region8: #{reverse.3} parent=4 // pred_region
        // Predicated region
        $region21: #{reverse.3} parent=8 // pred_check
          _
        $region22: #{reverse.3} parent=8 // pred_check_branch
          %30 = sbr.rel (0) target = $region24
        $region23: #{reverse.3} parent=8 // pred_region
          loop: start=0, step=1, limit=1
          $region25: #{reverse.3} parent=23 // loop_pre_header
            _
          $region26: #{reverse.3} parent=23 // loop_header
            %s32 = sphi 0, %s36
            %p33 = scmp.ge.s32.totalorder %s32, 1
            %s37 = sphi %s0, %s0
            %s38 = sphi [#allocation0], [#allocation0]
          $region27: #{reverse.3} parent=23 // loop_header_branch
            %35 = sbr.rel (%p33) target = $region31
          $region28: #{reverse.3} parent=23 // loop_body
            %v39 = vld [vmem:[%s37] sm:$0xff]
            %40 = vst [vmem:[%s38] sm:$0xff] %v39
            %v41 = vld [vmem:[%s37 + $0x8] sm:$0xff]
            %42 = vst [vmem:[%s38 + $0x8] sm:$0xff] %v41
            %v43 = vld [vmem:[%s37 + $0x10] sm:$0xff]
            %44 = vst [vmem:[%s38 + $0x10] sm:$0xff] %v43
            %v45 = vld [vmem:[%s37 + $0x18] sm:$0xff]
            %46 = vst [vmem:[%s38 + $0x18] sm:$0xff] %v45
          $region29: #{reverse.3} parent=23 // loop_footer
            %s36 = sadd.s32 1, %s32
          $region30: #{reverse.3} parent=23 // loop_footer_branch
            %31 = sbr.rel target = $region26
          $region31: #{reverse.3} parent=23 // loop_exit
            _
        $region24: #{reverse.3} parent=8 // pred_fallthru
          _
        // Predicated region
        $region32: #{reverse.3} parent=8 // pred_check
          _
        $region33: #{reverse.3} parent=8 // pred_check_branch
          %48 = sbr.rel target = $region35
        $region34: #{reverse.3} parent=8 // pred_region
          _
        $region35: #{reverse.3} parent=8 // pred_fallthru
          _
      $region9: #{reverse.3} parent=4 // pred_fallthru
        _
      // Predicated region
      $region10: #{reverse.3} parent=4 // pred_check
        _
      $region11: #{reverse.3} parent=4 // pred_check_branch
        %10 = sbr.rel target = $region13
      $region12: #{reverse.3} parent=4 // pred_region
        %s12 = ssub.s32 256, 1
        loop: start=0, step=1, limit=1
        $region14: #{reverse.3} parent=12 // loop_pre_header
          _
        $region15: #{reverse.3} parent=12 // loop_header
          %s14 = sphi 0, %s18
          %p15 = scmp.ge.s32.totalorder %s14, 1
          %s19 = sphi %s0, %s0
          %s20 = sphi [#allocation0], [#allocation0]
        $region16: #{reverse.3} parent=12 // loop_header_branch
          %17 = sbr.rel (%p15) target = $region20
        $region17: #{reverse.3} parent=12 // loop_body
          %v21 = vld [vmem:[%s19] sm:%s12]
          %22 = vst [vmem:[%s20] sm:%s12] %v21
          %v23 = vld [vmem:[%s19 + $0x8] sm:%s12]
          %24 = vst [vmem:[%s20 + $0x8] sm:%s12] %v23
          %v25 = vld [vmem:[%s19 + $0x10] sm:%s12]
          %26 = vst [vmem:[%s20 + $0x10] sm:%s12] %v25
          %v27 = vld [vmem:[%s19 + $0x18] sm:%s12]
          %28 = vst [vmem:[%s20 + $0x18] sm:%s12] %v27
        $region18: #{reverse.3} parent=12 // loop_footer
          %s18 = sadd.s32 1, %s14
        $region19: #{reverse.3} parent=12 // loop_footer_branch
          %13 = sbr.rel target = $region15
        $region20: #{reverse.3} parent=12 // loop_exit
          _
      $region13: #{reverse.3} parent=4 // pred_fallthru
        _
    $region5: #{reverse.3} parent=1 // pred_fallthru
      _
    %49 = vnop
    %v50 = vld [vmem:[#allocation0] sm:$0xff]
    %51 = vperm.xlu0 %4, %v50
    %v52 = vpop.permute.xlu0 %51
    %53 = vst [vmem:[#allocation1] sm:$0xff] %v52
    %s54 = scalar_lea.vmem [#allocation1], 8
    %s55 = scalar_lea.vmem [#allocation0], 8
    %v56 = vld [vmem:[%s55] sm:$0xff]
    %57 = vperm.xlu0 %4, %v56
    %v58 = vpop.permute.xlu0 %57
    %59 = vst [vmem:[%s54] sm:$0xff] %v58
    %s60 = scalar_lea.vmem [#allocation1], 16
    %s61 = scalar_lea.vmem [#allocation0], 16
    %v62 = vld [vmem:[%s61] sm:$0xff]
    %63 = vperm.xlu0 %4, %v62
    %v64 = vpop.permute.xlu0 %63
    %65 = vst [vmem:[%s60] sm:$0xff] %v64
    %s66 = scalar_lea.vmem %s60, 8 [#allocation1]
    %s67 = scalar_lea.vmem %s61, 8 [#allocation0]
    %v68 = vld [vmem:[%s67] sm:$0xff]
    %69 = vperm.xlu0 %4, %v68
    %v70 = vpop.permute.xlu0 %69
    %71 = vst [vmem:[%s66] sm:$0xff] %v70
    // Predicated region
    $region36: #{reverse.3} parent=1 // pred_check
      _
    $region37: #{reverse.3} parent=1 // pred_check_branch
      %73 = sbr.rel (0) target = $region39
    $region38: #{reverse.3} parent=1 // pred_region
      // Predicated region
      $region40: #{reverse.3} parent=38 // pred_check
        _
      $region41: #{reverse.3} parent=38 // pred_check_branch
        %75 = sbr.rel (0) target = $region43
      $region42: #{reverse.3} parent=38 // pred_region
        // Predicated region
        $region55: #{reverse.3} parent=42 // pred_check
          _
        $region56: #{reverse.3} parent=42 // pred_check_branch
          %97 = sbr.rel (0) target = $region58
        $region57: #{reverse.3} parent=42 // pred_region
          loop: start=0, step=1, limit=1
          $region59: #{reverse.3} parent=57 // loop_pre_header
            _
          $region60: #{reverse.3} parent=57 // loop_header
            %s99 = sphi 0, %s103
            %p100 = scmp.ge.s32.totalorder %s99, 1
            %s104 = sphi [#allocation1], [#allocation1]
            %s105 = sphi %s1, %s1
          $region61: #{reverse.3} parent=57 // loop_header_branch
            %102 = sbr.rel (%p100) target = $region65
          $region62: #{reverse.3} parent=57 // loop_body
            %v106 = vld [vmem:[%s104] sm:$0xff]
            %107 = vst [vmem:[%s105] sm:$0xff] %v106
            %v108 = vld [vmem:[%s104 + $0x8] sm:$0xff]
            %109 = vst [vmem:[%s105 + $0x8] sm:$0xff] %v108
            %v110 = vld [vmem:[%s104 + $0x10] sm:$0xff]
            %111 = vst [vmem:[%s105 + $0x10] sm:$0xff] %v110
            %v112 = vld [vmem:[%s104 + $0x18] sm:$0xff]
            %113 = vst [vmem:[%s105 + $0x18] sm:$0xff] %v112
          $region63: #{reverse.3} parent=57 // loop_footer
            %s103 = sadd.s32 1, %s99
          $region64: #{reverse.3} parent=57 // loop_footer_branch
            %98 = sbr.rel target = $region60
          $region65: #{reverse.3} parent=57 // loop_exit
            _
        $region58: #{reverse.3} parent=42 // pred_fallthru
          _
        // Predicated region
        $region66: #{reverse.3} parent=42 // pred_check
          _
        $region67: #{reverse.3} parent=42 // pred_check_branch
          %115 = sbr.rel target = $region69
        $region68: #{reverse.3} parent=42 // pred_region
          _
        $region69: #{reverse.3} parent=42 // pred_fallthru
          _
      $region43: #{reverse.3} parent=38 // pred_fallthru
        _
      // Predicated region
      $region44: #{reverse.3} parent=38 // pred_check
        _
      $region45: #{reverse.3} parent=38 // pred_check_branch
        %77 = sbr.rel target = $region47
      $region46: #{reverse.3} parent=38 // pred_region
        %s79 = ssub.s32 256, 1
        loop: start=0, step=1, limit=1
        $region48: #{reverse.3} parent=46 // loop_pre_header
          _
        $region49: #{reverse.3} parent=46 // loop_header
          %s81 = sphi 0, %s85
          %p82 = scmp.ge.s32.totalorder %s81, 1
          %s86 = sphi [#allocation1], [#allocation1]
          %s87 = sphi %s1, %s1
        $region50: #{reverse.3} parent=46 // loop_header_branch
          %84 = sbr.rel (%p82) target = $region54
        $region51: #{reverse.3} parent=46 // loop_body
          %v88 = vld [vmem:[%s86] sm:%s79]
          %89 = vst [vmem:[%s87] sm:%s79] %v88
          %v90 = vld [vmem:[%s86 + $0x8] sm:%s79]
          %91 = vst [vmem:[%s87 + $0x8] sm:%s79] %v90
          %v92 = vld [vmem:[%s86 + $0x10] sm:%s79]
          %93 = vst [vmem:[%s87 + $0x10] sm:%s79] %v92
          %v94 = vld [vmem:[%s86 + $0x18] sm:%s79]
          %95 = vst [vmem:[%s87 + $0x18] sm:%s79] %v94
        $region52: #{reverse.3} parent=46 // loop_footer
          %s85 = sadd.s32 1, %s81
        $region53: #{reverse.3} parent=46 // loop_footer_branch
          %80 = sbr.rel target = $region49
        $region54: #{reverse.3} parent=46 // loop_exit
          _
      $region47: #{reverse.3} parent=38 // pred_fallthru
        _
    $region39: #{reverse.3} parent=1 // pred_fallthru
      _
    %116 = vnop

</llo_original>
